<compile_context>
chip_gen: v6e
topology: v6e:2x2x1
jax: 0.10.0
libtpu: 0.0.40
codegen_flags: <defaults>
</compile_context>

<pallas_src>
import functools

import numpy as np

import jax
import jax.numpy as jnp
from jax import lax
from jax.experimental import pallas as pl
from jax.experimental.pallas import tpu as pltpu

VMEM = pltpu.MemorySpace.VMEM


def _valid_row_mask(B, L0, K):
    """(B*L0, 1) f32: 1.0 on conv-output rows, 0.0 on the (K-1) causal left-pad rows."""
    pad = K - 1
    m = np.zeros((B * L0, 1), np.float32)
    for b in range(B):
        m[b * L0 + pad:(b + 1) * L0, 0] = 1.0
    return m


def _fused_rnn_model_kernel(x_ref, m1_ref, m2_ref, *refs, B, L, K, H, n_classes):
    """conv block 1 -> conv block 2 -> LSTM -> avg-pool -> FC -> sigmoid, all in VMEM."""
    (w11, b11, g11, be11, w12, b12, g12, be12, w13, b13, g13, be13,
     w21, b21, g21, be21, w22, b22, g22, be22, w23, b23, g23, be23,
     wih_ref, bg_ref, whh_ref, fcw_ref, fcb_ref,
     o_ref, pre1_ref, pre2_ref, xg_ref) = refs

    pad = K - 1

    def conv_block(x, L0, m_ref, prms, pre_ref):
        """ConvNormPool: conv1 -> BN+Swish -> pad -> conv2 -> BN+Swish -> pad -> conv3
        -> BN(conv1+conv3)+Swish -> pad -> MaxPool1d(2).  x: (B*L0, Cin) f32 value."""
        (cw1, cb1, cg1, cbe1, cw2, cb2, cg2, cbe2, cw3, cb3, cg3, cbe3) = prms
        N = B * L0
        n_valid = B * (L0 - pad)
        inv_nv = 1.0 / float(n_valid)
        mask = m_ref[...]                                  # (N, 1): 0 on causal pad rows

        def conv(xin, w_ref, b_ref):
            # 'valid' Conv1d evaluated in the padded/full-length row space: per-tap
            # static sublane roll (XLU, effectively free) + one small bf16 MXU dot per
            # tap, bias in the epilogue.  Roll wrap-around only lands on pad rows, which
            # `mask` zeroes downstream.
            # TODO(synk): a single im2col dot (lane-concat of the K rolled copies, K*Cin
            #             contraction) would cut this to one MXU issue per conv.
            acc = jnp.zeros((N, H), jnp.float32) + b_ref[...]
            for k in range(K):
                xk = xin if k == pad else pltpu.roll(xin, shift=pad - k, axis=0)
                acc = acc + jnp.dot(xk.astype(jnp.bfloat16), w_ref[k],
                                    preferred_element_type=jnp.float32)
            return acc                                     # pad rows hold garbage + bias

        def bn_swish_pad(y, g_ref, be_ref):
            # BatchNorm1d, training-mode biased batch stats over the B*(L0-pad) valid
            # rows, single pass (var = E[y^2] - mean^2), + Swish, then zero the pad rows
            # (== F.pad(x, (K-1, 0))).  Stats math stays in f32 (v5e has no bf16 VPU/EUP).
            ym = y * mask
            mean = jnp.sum(ym, axis=0, keepdims=True) * inv_nv
            var = jnp.sum(ym * y, axis=0, keepdims=True) * inv_nv - mean * mean
            yn = (y - mean) * lax.rsqrt(var + 1e-5) * g_ref[...] + be_ref[...]
            return (yn * jax.nn.sigmoid(yn)) * mask

        c1 = conv(x, cw1, cb1)
        h = bn_swish_pad(c1, cg1, cbe1)
        h = bn_swish_pad(conv(h, cw2, cb2), cg2, cbe2)
        c3 = conv(h, cw3, cb3)
        h = bn_swish_pad(c1 + c3, cg3, cbe3)               # fused residual, (N, H)

        # MaxPool1d(kernel=2, stride=2): stage into VMEM scratch, stride-2 sublane reads
        # (no 0/1 selection matmuls, no O(N^2) constants), pairwise max on the VPU.
        pre_ref[...] = h
        half = N // 2
        even = pre_ref[pl.ds(0, half, stride=2), :]
        odd = pre_ref[pl.ds(1, half, stride=2), :]
        return jnp.maximum(even, odd)                      # (B*(L0//2), H)

    block1 = (w11, b11, g11, be11, w12, b12, g12, be12, w13, b13, g13, be13)
    block2 = (w21, b21, g21, be21, w22, b22, g22, be22, w23, b23, g23, be23)

    h1 = conv_block(x_ref[...], L, m1_ref, block1, pre1_ref)       # (B*(L//2), H)
    seq = conv_block(h1, L // 2, m2_ref, block2, pre2_ref)         # (B*T, H), row = b*T + t
    T = L // 4

    # ---------------- LSTM head ----------------
    # x-part of all gates for the whole sequence in one MXU matmul (b_ih + b_hh folded),
    # staged in VMEM so each time step is a stride-T sublane read (in-kernel "transpose").
    xg_ref[...] = (jnp.dot(seq.astype(jnp.bfloat16), wih_ref[...],
                           preferred_element_type=jnp.float32) + bg_ref[...])
    whh = whh_ref[...]                                             # (H, 4H) bf16

    # PyTorch gate order i, f, g, o -> tanh only on lanes [2H, 3H).  tanh(z)=2*sigmoid(2z)-1
    # so one full-width sigmoid (EUP) per step replaces sigmoid + tanh.
    lane = lax.broadcasted_iota(jnp.int32, (B, 4 * H), 1)
    g_mask = (lane >= 2 * H) & (lane < 3 * H)

    h = jnp.zeros((B, H), jnp.float32)
    c = jnp.zeros((B, H), jnp.float32)
    h_sum = jnp.zeros((B, H), jnp.float32)
    # TODO(synk): for long T keep W_hh resident via pltpu.matmul_push_rhs / matmul_acc_lhs.
    for t in range(T):                                             # static unroll, T tiny
        x_t = xg_ref[pl.ds(t, B, stride=T), :]                     # rows b*T + t, all b
        gates = x_t + jnp.dot(h.astype(jnp.bfloat16), whh,
                              preferred_element_type=jnp.float32)  # (B, 4H)
        s = jax.nn.sigmoid(jnp.where(g_mask, 2.0 * gates, gates))
        act = jnp.where(g_mask, 2.0 * s - 1.0, s)
        i_g = act[:, 0:H]
        f_g = act[:, H:2 * H]
        g_g = act[:, 2 * H:3 * H]
        o_g = act[:, 3 * H:4 * H]
        c = f_g * c + i_g * g_g
        h = o_g * jnp.tanh(c)
        h_sum = h_sum + h                                          # AdaptiveAvgPool1d(1)

    avg = h_sum * (1.0 / T)
    if n_classes == 1:
        # n_classes == 1: VPU multiply + lane reduction instead of a 1-column MXU dot.
        logit = jnp.sum(avg * fcw_ref[...], axis=1, keepdims=True) + fcb_ref[...]
    else:
        logit = jnp.dot(avg.astype(jnp.bfloat16), fcw_ref[...],
                        preferred_element_type=jnp.float32) + fcb_ref[...]
    o_ref[...] = jax.nn.sigmoid(logit).astype(o_ref.dtype)


# -------------------------------------- wrapper --------------------------------------

def rnn_model_forward(x, params, kernel_size=5):
    """x: (B, C, L) float32 (PyTorch NCL).  Returns (B, n_classes) sigmoid outputs."""
    B, Cin, L = x.shape
    K = kernel_size
    H = params['conv1']['w1'].shape[0]
    n_classes = params['fc']['w'].shape[0]
    assert L % 4 == 0 and L >= K and (L // 2) >= K, (L, K)

    # NCL -> (B*L, Cin) with row = b*L + l  (channels on lanes for the conv matmuls)
    x2 = jnp.transpose(x, (0, 2, 1)).reshape(B * L, Cin).astype(jnp.float32)

    def pack_w(w):   # torch (Cout, Cin, K) -> (K, Cin, Cout) bf16: w_ref[k] is one tap
        return jnp.transpose(w, (2, 1, 0)).astype(jnp.bfloat16)

    def row(v):
        return v.reshape(1, -1).astype(jnp.float32)

    blocks = []
    for name in ('conv1', 'conv2'):
        p = params[name]
        blocks += [pack_w(p['w1']), row(p['b1']), row(p['g1']), row(p['be1']),
                   pack_w(p['w2']), row(p['b2']), row(p['g2']), row(p['be2']),
                   pack_w(p['w3']), row(p['b3']), row(p['g3']), row(p['be3'])]

    lstm, fc = params['lstm'], params['fc']
    wih_t = jnp.transpose(lstm['w_ih']).astype(jnp.bfloat16)            # (C, 4H)
    whh_t = jnp.transpose(lstm['w_hh']).astype(jnp.bfloat16)            # (H, 4H)
    bg = (lstm['b_ih'] + lstm['b_hh']).reshape(1, -1).astype(jnp.float32)
    if n_classes == 1:
        fcw = fc['w'].reshape(1, -1).astype(jnp.float32)                # VPU path
    else:
        fcw = jnp.transpose(fc['w']).astype(jnp.bfloat16)               # (H, n_classes)
    fcb = fc['b'].reshape(1, -1).astype(jnp.float32)

    m1 = jnp.asarray(_valid_row_mask(B, L, K))
    m2 = jnp.asarray(_valid_row_mask(B, L // 2, K))

    T = L // 4
    n_inputs = 3 + 24 + 5
    return pl.pallas_call(
        functools.partial(_fused_rnn_model_kernel, B=B, L=L, K=K, H=H,
                          n_classes=n_classes),
        out_shape=jax.ShapeDtypeStruct((B, n_classes), jnp.float32),
        in_specs=[pl.BlockSpec(memory_space=VMEM)] * n_inputs,
        out_specs=pl.BlockSpec(memory_space=VMEM),
        scratch_shapes=[pltpu.VMEM((B * L, H), jnp.float32),            # block1 pre-pool
                        pltpu.VMEM((B * (L // 2), H), jnp.float32),     # block2 pre-pool
                        pltpu.VMEM((B * T, 4 * H), jnp.float32)],       # LSTM x-gates
        compiler_params=pltpu.CompilerParams(vmem_limit_bytes=32 * 1024 * 1024),
    )(x2, m1, m2, *blocks, wih_t, bg, whh_t, fcw, fcb)


# ------------------------------------ params init ------------------------------------

def init_params(key, input_size, hid_size, n_classes=1, kernel_size=5):
    keys = iter(jax.random.split(key, 64))

    def uniform(shape, fan_in):
        bound = 1.0 / (fan_in ** 0.5)
        return jax.random.uniform(next(keys), shape, jnp.float32, -bound, bound)

    def conv_block(cin, cout, k):
        p = {}
        p['w1'] = uniform((cout, cin, k), cin * k)
        p['b1'] = uniform((cout,), cin * k)
        p['w2'] = uniform((cout, cout, k), cout * k)
        p['b2'] = uniform((cout,), cout * k)
        p['w3'] = uniform((cout, cout, k), cout * k)
        p['b3'] = uniform((cout,), cout * k)
        for i in (1, 2, 3):
            p[f'g{i}'] = 1.0 + 0.1 * jax.random.normal(next(keys), (cout,), jnp.float32)
            p[f'be{i}'] = 0.1 * jax.random.normal(next(keys), (cout,), jnp.float32)
        return p

    return {
        'conv1': conv_block(input_size, hid_size, kernel_size),
        'conv2': conv_block(hid_size, hid_size, kernel_size),
        'lstm': {
            'w_ih': uniform((4 * hid_size, hid_size), hid_size),
            'w_hh': uniform((4 * hid_size, hid_size), hid_size),
            'b_ih': uniform((4 * hid_size,), hid_size),
            'b_hh': uniform((4 * hid_size,), hid_size),
        },
        'fc': {
            'w': uniform((n_classes, hid_size), hid_size),
            'b': uniform((n_classes,), hid_size),
        },
    }


if __name__ == "__main__":
    key = jax.random.PRNGKey(0)
    k_param, k_x = jax.random.split(key)

    B, C_IN, L, HID, N_CLASSES, K = 2, 4, 16, 32, 1, 5
    params = init_params(k_param, C_IN, HID, n_classes=N_CLASSES, kernel_size=K)
    x = jax.random.normal(k_x, (B, C_IN, L), jnp.float32)   # (batch, channels, length)

    fwd = jax.jit(functools.partial(rnn_model_forward, kernel_size=K))
    out = fwd(x, params)
    jax.block_until_ready(out)

    assert out.shape == (B, N_CLASSES), out.shape
    assert bool(jnp.all(jnp.isfinite(out)))
    assert bool(jnp.all((out >= 0.0) & (out <= 1.0)))
    print("KERNEL_OK")
</pallas_src>

<mosaic_0001>
module attributes {stable_mosaic.version = 11 : i64} {
  func.func @_fused_rnn_model_kernel(%arg0: memref<32x4xf32, #tpu.memory_space<vmem>>, %arg1: memref<32x1xf32, #tpu.memory_space<vmem>>, %arg2: memref<16x1xf32, #tpu.memory_space<vmem>>, %arg3: memref<5x4x32xbf16, #tpu.memory_space<vmem>>, %arg4: memref<1x32xf32, #tpu.memory_space<vmem>>, %arg5: memref<1x32xf32, #tpu.memory_space<vmem>>, %arg6: memref<1x32xf32, #tpu.memory_space<vmem>>, %arg7: memref<5x32x32xbf16, #tpu.memory_space<vmem>>, %arg8: memref<1x32xf32, #tpu.memory_space<vmem>>, %arg9: memref<1x32xf32, #tpu.memory_space<vmem>>, %arg10: memref<1x32xf32, #tpu.memory_space<vmem>>, %arg11: memref<5x32x32xbf16, #tpu.memory_space<vmem>>, %arg12: memref<1x32xf32, #tpu.memory_space<vmem>>, %arg13: memref<1x32xf32, #tpu.memory_space<vmem>>, %arg14: memref<1x32xf32, #tpu.memory_space<vmem>>, %arg15: memref<5x32x32xbf16, #tpu.memory_space<vmem>>, %arg16: memref<1x32xf32, #tpu.memory_space<vmem>>, %arg17: memref<1x32xf32, #tpu.memory_space<vmem>>, %arg18: memref<1x32xf32, #tpu.memory_space<vmem>>, %arg19: memref<5x32x32xbf16, #tpu.memory_space<vmem>>, %arg20: memref<1x32xf32, #tpu.memory_space<vmem>>, %arg21: memref<1x32xf32, #tpu.memory_space<vmem>>, %arg22: memref<1x32xf32, #tpu.memory_space<vmem>>, %arg23: memref<5x32x32xbf16, #tpu.memory_space<vmem>>, %arg24: memref<1x32xf32, #tpu.memory_space<vmem>>, %arg25: memref<1x32xf32, #tpu.memory_space<vmem>>, %arg26: memref<1x32xf32, #tpu.memory_space<vmem>>, %arg27: memref<32x128xbf16, #tpu.memory_space<vmem>>, %arg28: memref<1x128xf32, #tpu.memory_space<vmem>>, %arg29: memref<32x128xbf16, #tpu.memory_space<vmem>>, %arg30: memref<1x32xf32, #tpu.memory_space<vmem>>, %arg31: memref<1x1xf32, #tpu.memory_space<vmem>>, %arg32: memref<2x1xf32, #tpu.memory_space<vmem>>, %arg33: memref<32x32xf32, #tpu.memory_space<vmem>>, %arg34: memref<16x32xf32, #tpu.memory_space<vmem>>, %arg35: memref<8x128xf32, #tpu.memory_space<vmem>>) attributes {dimension_semantics = [], scalar_prefetch = 0 : i64, scratch_operands = 3 : i64, tpu.core_type = #tpu.core_type<tc>} {
    %c0 = arith.constant 0 : index
    %c0_0 = arith.constant 0 : index
    %0 = vector.load %arg0[%c0, %c0_0] : memref<32x4xf32, #tpu.memory_space<vmem>>, vector<32x4xf32>
    %c0_1 = arith.constant 0 : index
    %c0_2 = arith.constant 0 : index
    %1 = vector.load %arg1[%c0_1, %c0_2] : memref<32x1xf32, #tpu.memory_space<vmem>>, vector<32x1xf32>
    %cst = arith.constant 0.000000e+00 : f32
    %2 = vector.broadcast %cst : f32 to vector<32x32xf32>
    %c0_3 = arith.constant 0 : index
    %c0_4 = arith.constant 0 : index
    %3 = vector.load %arg4[%c0_3, %c0_4] : memref<1x32xf32, #tpu.memory_space<vmem>>, vector<1x32xf32>
    %4 = vector.broadcast %3 : vector<1x32xf32> to vector<32x32xf32>
    %5 = arith.addf %2, %4 : vector<32x32xf32>
    %c4_i32 = arith.constant 4 : i32
    %6 = tpu.dynamic_rotate %0 by %c4_i32 dim 0 : vector<32x4xf32>, i32 -> vector<32x4xf32>
    %7 = arith.truncf %6 : vector<32x4xf32> to vector<32x4xbf16>
    %c0_5 = arith.constant 0 : index
    %c0_6 = arith.constant 0 : index
    %c0_7 = arith.constant 0 : index
    %8 = vector.load %arg3[%c0_5, %c0_6, %c0_7] : memref<5x4x32xbf16, #tpu.memory_space<vmem>>, vector<1x4x32xbf16>
    %9 = vector.shape_cast %8 : vector<1x4x32xbf16> to vector<4x32xbf16>
    %cst_8 = arith.constant dense<0.000000e+00> : vector<32x32xf32>
    %10 = tpu.matmul %7, %9, %cst_8 {dimension_numbers = #tpu.dot_dimension_numbers<[1], [0], [0], [1], [0, 0, 1, 1], [], []>} : vector<32x4xbf16>, vector<4x32xbf16>, vector<32x32xf32> -> vector<32x32xf32>
    %11 = arith.addf %5, %10 : vector<32x32xf32>
    %c3_i32 = arith.constant 3 : i32
    %12 = tpu.dynamic_rotate %0 by %c3_i32 dim 0 : vector<32x4xf32>, i32 -> vector<32x4xf32>
    %13 = arith.truncf %12 : vector<32x4xf32> to vector<32x4xbf16>
    %c1 = arith.constant 1 : index
    %c0_9 = arith.constant 0 : index
    %c0_10 = arith.constant 0 : index
    %14 = vector.load %arg3[%c1, %c0_9, %c0_10] : memref<5x4x32xbf16, #tpu.memory_space<vmem>>, vector<1x4x32xbf16>
    %15 = vector.shape_cast %14 : vector<1x4x32xbf16> to vector<4x32xbf16>
    %cst_11 = arith.constant dense<0.000000e+00> : vector<32x32xf32>
    %16 = tpu.matmul %13, %15, %cst_11 {dimension_numbers = #tpu.dot_dimension_numbers<[1], [0], [0], [1], [0, 0, 1, 1], [], []>} : vector<32x4xbf16>, vector<4x32xbf16>, vector<32x32xf32> -> vector<32x32xf32>
    %17 = arith.addf %11, %16 : vector<32x32xf32>
    %c2_i32 = arith.constant 2 : i32
    %18 = tpu.dynamic_rotate %0 by %c2_i32 dim 0 : vector<32x4xf32>, i32 -> vector<32x4xf32>
    %19 = arith.truncf %18 : vector<32x4xf32> to vector<32x4xbf16>
    %c2 = arith.constant 2 : index
    %c0_12 = arith.constant 0 : index
    %c0_13 = arith.constant 0 : index
    %20 = vector.load %arg3[%c2, %c0_12, %c0_13] : memref<5x4x32xbf16, #tpu.memory_space<vmem>>, vector<1x4x32xbf16>
    %21 = vector.shape_cast %20 : vector<1x4x32xbf16> to vector<4x32xbf16>
    %cst_14 = arith.constant dense<0.000000e+00> : vector<32x32xf32>
    %22 = tpu.matmul %19, %21, %cst_14 {dimension_numbers = #tpu.dot_dimension_numbers<[1], [0], [0], [1], [0, 0, 1, 1], [], []>} : vector<32x4xbf16>, vector<4x32xbf16>, vector<32x32xf32> -> vector<32x32xf32>
    %23 = arith.addf %17, %22 : vector<32x32xf32>
    %c1_i32 = arith.constant 1 : i32
    %24 = tpu.dynamic_rotate %0 by %c1_i32 dim 0 : vector<32x4xf32>, i32 -> vector<32x4xf32>
    %25 = arith.truncf %24 : vector<32x4xf32> to vector<32x4xbf16>
    %c3 = arith.constant 3 : index
    %c0_15 = arith.constant 0 : index
    %c0_16 = arith.constant 0 : index
    %26 = vector.load %arg3[%c3, %c0_15, %c0_16] : memref<5x4x32xbf16, #tpu.memory_space<vmem>>, vector<1x4x32xbf16>
    %27 = vector.shape_cast %26 : vector<1x4x32xbf16> to vector<4x32xbf16>
    %cst_17 = arith.constant dense<0.000000e+00> : vector<32x32xf32>
    %28 = tpu.matmul %25, %27, %cst_17 {dimension_numbers = #tpu.dot_dimension_numbers<[1], [0], [0], [1], [0, 0, 1, 1], [], []>} : vector<32x4xbf16>, vector<4x32xbf16>, vector<32x32xf32> -> vector<32x32xf32>
    %29 = arith.addf %23, %28 : vector<32x32xf32>
    %30 = arith.truncf %0 : vector<32x4xf32> to vector<32x4xbf16>
    %c4 = arith.constant 4 : index
    %c0_18 = arith.constant 0 : index
    %c0_19 = arith.constant 0 : index
    %31 = vector.load %arg3[%c4, %c0_18, %c0_19] : memref<5x4x32xbf16, #tpu.memory_space<vmem>>, vector<1x4x32xbf16>
    %32 = vector.shape_cast %31 : vector<1x4x32xbf16> to vector<4x32xbf16>
    %cst_20 = arith.constant dense<0.000000e+00> : vector<32x32xf32>
    %33 = tpu.matmul %30, %32, %cst_20 {dimension_numbers = #tpu.dot_dimension_numbers<[1], [0], [0], [1], [0, 0, 1, 1], [], []>} : vector<32x4xbf16>, vector<4x32xbf16>, vector<32x32xf32> -> vector<32x32xf32>
    %34 = arith.addf %29, %33 : vector<32x32xf32>
    %35 = vector.broadcast %1 : vector<32x1xf32> to vector<32x32xf32>
    %36 = arith.mulf %34, %35 : vector<32x32xf32>
    %cst_21 = arith.constant dense<0.000000e+00> : vector<32xf32>
    %37 = vector.multi_reduction <add>, %36, %cst_21 [0] : vector<32x32xf32> to vector<32xf32>
    %38 = vector.shape_cast %37 : vector<32xf32> to vector<1x32xf32>
    %cst_22 = arith.constant 0.0416666679 : f32
    %39 = vector.broadcast %cst_22 : f32 to vector<1x32xf32>
    %40 = arith.mulf %38, %39 : vector<1x32xf32>
    %41 = arith.mulf %36, %34 : vector<32x32xf32>
    %cst_23 = arith.constant dense<0.000000e+00> : vector<32xf32>
    %42 = vector.multi_reduction <add>, %41, %cst_23 [0] : vector<32x32xf32> to vector<32xf32>
    %43 = vector.shape_cast %42 : vector<32xf32> to vector<1x32xf32>
    %cst_24 = arith.constant 0.0416666679 : f32
    %44 = vector.broadcast %cst_24 : f32 to vector<1x32xf32>
    %45 = arith.mulf %43, %44 : vector<1x32xf32>
    %46 = arith.mulf %40, %40 : vector<1x32xf32>
    %47 = arith.subf %45, %46 : vector<1x32xf32>
    %48 = vector.broadcast %40 : vector<1x32xf32> to vector<32x32xf32>
    %49 = arith.subf %34, %48 : vector<32x32xf32>
    %cst_25 = arith.constant 9.99999974E-6 : f32
    %50 = vector.broadcast %cst_25 : f32 to vector<1x32xf32>
    %51 = arith.addf %47, %50 : vector<1x32xf32>
    %52 = math.rsqrt %51 : vector<1x32xf32>
    %53 = vector.broadcast %52 : vector<1x32xf32> to vector<32x32xf32>
    %54 = arith.mulf %49, %53 : vector<32x32xf32>
    %c0_26 = arith.constant 0 : index
    %c0_27 = arith.constant 0 : index
    %55 = vector.load %arg5[%c0_26, %c0_27] : memref<1x32xf32, #tpu.memory_space<vmem>>, vector<1x32xf32>
    %56 = vector.broadcast %55 : vector<1x32xf32> to vector<32x32xf32>
    %57 = arith.mulf %54, %56 : vector<32x32xf32>
    %c0_28 = arith.constant 0 : index
    %c0_29 = arith.constant 0 : index
    %58 = vector.load %arg6[%c0_28, %c0_29] : memref<1x32xf32, #tpu.memory_space<vmem>>, vector<1x32xf32>
    %59 = vector.broadcast %58 : vector<1x32xf32> to vector<32x32xf32>
    %60 = arith.addf %57, %59 : vector<32x32xf32>
    %61 = arith.negf %60 : vector<32x32xf32>
    %62 = math.exp %61 : vector<32x32xf32>
    %cst_30 = arith.constant 1.000000e+00 : f32
    %63 = vector.broadcast %cst_30 : f32 to vector<32x32xf32>
    %64 = arith.addf %63, %62 : vector<32x32xf32>
    %65 = arith.divf %63, %64 : vector<32x32xf32>
    %66 = arith.mulf %60, %65 : vector<32x32xf32>
    %67 = vector.broadcast %1 : vector<32x1xf32> to vector<32x32xf32>
    %68 = arith.mulf %66, %67 : vector<32x32xf32>
    %cst_31 = arith.constant 0.000000e+00 : f32
    %69 = vector.broadcast %cst_31 : f32 to vector<32x32xf32>
    %c0_32 = arith.constant 0 : index
    %c0_33 = arith.constant 0 : index
    %70 = vector.load %arg8[%c0_32, %c0_33] : memref<1x32xf32, #tpu.memory_space<vmem>>, vector<1x32xf32>
    %71 = vector.broadcast %70 : vector<1x32xf32> to vector<32x32xf32>
    %72 = arith.addf %69, %71 : vector<32x32xf32>
    %c4_i32_34 = arith.constant 4 : i32
    %73 = tpu.dynamic_rotate %68 by %c4_i32_34 dim 0 : vector<32x32xf32>, i32 -> vector<32x32xf32>
    %74 = arith.truncf %73 : vector<32x32xf32> to vector<32x32xbf16>
    %c0_35 = arith.constant 0 : index
    %c0_36 = arith.constant 0 : index
    %c0_37 = arith.constant 0 : index
    %75 = vector.load %arg7[%c0_35, %c0_36, %c0_37] : memref<5x32x32xbf16, #tpu.memory_space<vmem>>, vector<1x32x32xbf16>
    %76 = vector.shape_cast %75 : vector<1x32x32xbf16> to vector<32x32xbf16>
    %cst_38 = arith.constant dense<0.000000e+00> : vector<32x32xf32>
    %77 = tpu.matmul %74, %76, %cst_38 {dimension_numbers = #tpu.dot_dimension_numbers<[1], [0], [0], [1], [0, 0, 1, 1], [], []>} : vector<32x32xbf16>, vector<32x32xbf16>, vector<32x32xf32> -> vector<32x32xf32>
    %78 = arith.addf %72, %77 : vector<32x32xf32>
    %c3_i32_39 = arith.constant 3 : i32
    %79 = tpu.dynamic_rotate %68 by %c3_i32_39 dim 0 : vector<32x32xf32>, i32 -> vector<32x32xf32>
    %80 = arith.truncf %79 : vector<32x32xf32> to vector<32x32xbf16>
    %c1_40 = arith.constant 1 : index
    %c0_41 = arith.constant 0 : index
    %c0_42 = arith.constant 0 : index
    %81 = vector.load %arg7[%c1_40, %c0_41, %c0_42] : memref<5x32x32xbf16, #tpu.memory_space<vmem>>, vector<1x32x32xbf16>
    %82 = vector.shape_cast %81 : vector<1x32x32xbf16> to vector<32x32xbf16>
    %cst_43 = arith.constant dense<0.000000e+00> : vector<32x32xf32>
    %83 = tpu.matmul %80, %82, %cst_43 {dimension_numbers = #tpu.dot_dimension_numbers<[1], [0], [0], [1], [0, 0, 1, 1], [], []>} : vector<32x32xbf16>, vector<32x32xbf16>, vector<32x32xf32> -> vector<32x32xf32>
    %84 = arith.addf %78, %83 : vector<32x32xf32>
    %c2_i32_44 = arith.constant 2 : i32
    %85 = tpu.dynamic_rotate %68 by %c2_i32_44 dim 0 : vector<32x32xf32>, i32 -> vector<32x32xf32>
    %86 = arith.truncf %85 : vector<32x32xf32> to vector<32x32xbf16>
    %c2_45 = arith.constant 2 : index
    %c0_46 = arith.constant 0 : index
    %c0_47 = arith.constant 0 : index
    %87 = vector.load %arg7[%c2_45, %c0_46, %c0_47] : memref<5x32x32xbf16, #tpu.memory_space<vmem>>, vector<1x32x32xbf16>
    %88 = vector.shape_cast %87 : vector<1x32x32xbf16> to vector<32x32xbf16>
    %cst_48 = arith.constant dense<0.000000e+00> : vector<32x32xf32>
    %89 = tpu.matmul %86, %88, %cst_48 {dimension_numbers = #tpu.dot_dimension_numbers<[1], [0], [0], [1], [0, 0, 1, 1], [], []>} : vector<32x32xbf16>, vector<32x32xbf16>, vector<32x32xf32> -> vector<32x32xf32>
    %90 = arith.addf %84, %89 : vector<32x32xf32>
    %c1_i32_49 = arith.constant 1 : i32
    %91 = tpu.dynamic_rotate %68 by %c1_i32_49 dim 0 : vector<32x32xf32>, i32 -> vector<32x32xf32>
    %92 = arith.truncf %91 : vector<32x32xf32> to vector<32x32xbf16>
    %c3_50 = arith.constant 3 : index
    %c0_51 = arith.constant 0 : index
    %c0_52 = arith.constant 0 : index
    %93 = vector.load %arg7[%c3_50, %c0_51, %c0_52] : memref<5x32x32xbf16, #tpu.memory_space<vmem>>, vector<1x32x32xbf16>
    %94 = vector.shape_cast %93 : vector<1x32x32xbf16> to vector<32x32xbf16>
    %cst_53 = arith.constant dense<0.000000e+00> : vector<32x32xf32>
    %95 = tpu.matmul %92, %94, %cst_53 {dimension_numbers = #tpu.dot_dimension_numbers<[1], [0], [0], [1], [0, 0, 1, 1], [], []>} : vector<32x32xbf16>, vector<32x32xbf16>, vector<32x32xf32> -> vector<32x32xf32>
    %96 = arith.addf %90, %95 : vector<32x32xf32>
    %97 = arith.truncf %68 : vector<32x32xf32> to vector<32x32xbf16>
    %c4_54 = arith.constant 4 : index
    %c0_55 = arith.constant 0 : index
    %c0_56 = arith.constant 0 : index
    %98 = vector.load %arg7[%c4_54, %c0_55, %c0_56] : memref<5x32x32xbf16, #tpu.memory_space<vmem>>, vector<1x32x32xbf16>
    %99 = vector.shape_cast %98 : vector<1x32x32xbf16> to vector<32x32xbf16>
    %cst_57 = arith.constant dense<0.000000e+00> : vector<32x32xf32>
    %100 = tpu.matmul %97, %99, %cst_57 {dimension_numbers = #tpu.dot_dimension_numbers<[1], [0], [0], [1], [0, 0, 1, 1], [], []>} : vector<32x32xbf16>, vector<32x32xbf16>, vector<32x32xf32> -> vector<32x32xf32>
    %101 = arith.addf %96, %100 : vector<32x32xf32>
    %102 = vector.broadcast %1 : vector<32x1xf32> to vector<32x32xf32>
    %103 = arith.mulf %101, %102 : vector<32x32xf32>
    %cst_58 = arith.constant dense<0.000000e+00> : vector<32xf32>
    %104 = vector.multi_reduction <add>, %103, %cst_58 [0] : vector<32x32xf32> to vector<32xf32>
    %105 = vector.shape_cast %104 : vector<32xf32> to vector<1x32xf32>
    %cst_59 = arith.constant 0.0416666679 : f32
    %106 = vector.broadcast %cst_59 : f32 to vector<1x32xf32>
    %107 = arith.mulf %105, %106 : vector<1x32xf32>
    %108 = arith.mulf %103, %101 : vector<32x32xf32>
    %cst_60 = arith.constant dense<0.000000e+00> : vector<32xf32>
    %109 = vector.multi_reduction <add>, %108, %cst_60 [0] : vector<32x32xf32> to vector<32xf32>
    %110 = vector.shape_cast %109 : vector<32xf32> to vector<1x32xf32>
    %cst_61 = arith.constant 0.0416666679 : f32
    %111 = vector.broadcast %cst_61 : f32 to vector<1x32xf32>
    %112 = arith.mulf %110, %111 : vector<1x32xf32>
    %113 = arith.mulf %107, %107 : vector<1x32xf32>
    %114 = arith.subf %112, %113 : vector<1x32xf32>
    %115 = vector.broadcast %107 : vector<1x32xf32> to vector<32x32xf32>
    %116 = arith.subf %101, %115 : vector<32x32xf32>
    %cst_62 = arith.constant 9.99999974E-6 : f32
    %117 = vector.broadcast %cst_62 : f32 to vector<1x32xf32>
    %118 = arith.addf %114, %117 : vector<1x32xf32>
    %119 = math.rsqrt %118 : vector<1x32xf32>
    %120 = vector.broadcast %119 : vector<1x32xf32> to vector<32x32xf32>
    %121 = arith.mulf %116, %120 : vector<32x32xf32>
    %c0_63 = arith.constant 0 : index
    %c0_64 = arith.constant 0 : index
    %122 = vector.load %arg9[%c0_63, %c0_64] : memref<1x32xf32, #tpu.memory_space<vmem>>, vector<1x32xf32>
    %123 = vector.broadcast %122 : vector<1x32xf32> to vector<32x32xf32>
    %124 = arith.mulf %121, %123 : vector<32x32xf32>
    %c0_65 = arith.constant 0 : index
    %c0_66 = arith.constant 0 : index
    %125 = vector.load %arg10[%c0_65, %c0_66] : memref<1x32xf32, #tpu.memory_space<vmem>>, vector<1x32xf32>
    %126 = vector.broadcast %125 : vector<1x32xf32> to vector<32x32xf32>
    %127 = arith.addf %124, %126 : vector<32x32xf32>
    %128 = arith.negf %127 : vector<32x32xf32>
    %129 = math.exp %128 : vector<32x32xf32>
    %cst_67 = arith.constant 1.000000e+00 : f32
    %130 = vector.broadcast %cst_67 : f32 to vector<32x32xf32>
    %131 = arith.addf %130, %129 : vector<32x32xf32>
    %132 = arith.divf %130, %131 : vector<32x32xf32>
    %133 = arith.mulf %127, %132 : vector<32x32xf32>
    %134 = vector.broadcast %1 : vector<32x1xf32> to vector<32x32xf32>
    %135 = arith.mulf %133, %134 : vector<32x32xf32>
    %cst_68 = arith.constant 0.000000e+00 : f32
    %136 = vector.broadcast %cst_68 : f32 to vector<32x32xf32>
    %c0_69 = arith.constant 0 : index
    %c0_70 = arith.constant 0 : index
    %137 = vector.load %arg12[%c0_69, %c0_70] : memref<1x32xf32, #tpu.memory_space<vmem>>, vector<1x32xf32>
    %138 = vector.broadcast %137 : vector<1x32xf32> to vector<32x32xf32>
    %139 = arith.addf %136, %138 : vector<32x32xf32>
    %c4_i32_71 = arith.constant 4 : i32
    %140 = tpu.dynamic_rotate %135 by %c4_i32_71 dim 0 : vector<32x32xf32>, i32 -> vector<32x32xf32>
    %141 = arith.truncf %140 : vector<32x32xf32> to vector<32x32xbf16>
    %c0_72 = arith.constant 0 : index
    %c0_73 = arith.constant 0 : index
    %c0_74 = arith.constant 0 : index
    %142 = vector.load %arg11[%c0_72, %c0_73, %c0_74] : memref<5x32x32xbf16, #tpu.memory_space<vmem>>, vector<1x32x32xbf16>
    %143 = vector.shape_cast %142 : vector<1x32x32xbf16> to vector<32x32xbf16>
    %cst_75 = arith.constant dense<0.000000e+00> : vector<32x32xf32>
    %144 = tpu.matmul %141, %143, %cst_75 {dimension_numbers = #tpu.dot_dimension_numbers<[1], [0], [0], [1], [0, 0, 1, 1], [], []>} : vector<32x32xbf16>, vector<32x32xbf16>, vector<32x32xf32> -> vector<32x32xf32>
    %145 = arith.addf %139, %144 : vector<32x32xf32>
    %c3_i32_76 = arith.constant 3 : i32
    %146 = tpu.dynamic_rotate %135 by %c3_i32_76 dim 0 : vector<32x32xf32>, i32 -> vector<32x32xf32>
    %147 = arith.truncf %146 : vector<32x32xf32> to vector<32x32xbf16>
    %c1_77 = arith.constant 1 : index
    %c0_78 = arith.constant 0 : index
    %c0_79 = arith.constant 0 : index
    %148 = vector.load %arg11[%c1_77, %c0_78, %c0_79] : memref<5x32x32xbf16, #tpu.memory_space<vmem>>, vector<1x32x32xbf16>
    %149 = vector.shape_cast %148 : vector<1x32x32xbf16> to vector<32x32xbf16>
    %cst_80 = arith.constant dense<0.000000e+00> : vector<32x32xf32>
    %150 = tpu.matmul %147, %149, %cst_80 {dimension_numbers = #tpu.dot_dimension_numbers<[1], [0], [0], [1], [0, 0, 1, 1], [], []>} : vector<32x32xbf16>, vector<32x32xbf16>, vector<32x32xf32> -> vector<32x32xf32>
    %151 = arith.addf %145, %150 : vector<32x32xf32>
    %c2_i32_81 = arith.constant 2 : i32
    %152 = tpu.dynamic_rotate %135 by %c2_i32_81 dim 0 : vector<32x32xf32>, i32 -> vector<32x32xf32>
    %153 = arith.truncf %152 : vector<32x32xf32> to vector<32x32xbf16>
    %c2_82 = arith.constant 2 : index
    %c0_83 = arith.constant 0 : index
    %c0_84 = arith.constant 0 : index
    %154 = vector.load %arg11[%c2_82, %c0_83, %c0_84] : memref<5x32x32xbf16, #tpu.memory_space<vmem>>, vector<1x32x32xbf16>
    %155 = vector.shape_cast %154 : vector<1x32x32xbf16> to vector<32x32xbf16>
    %cst_85 = arith.constant dense<0.000000e+00> : vector<32x32xf32>
    %156 = tpu.matmul %153, %155, %cst_85 {dimension_numbers = #tpu.dot_dimension_numbers<[1], [0], [0], [1], [0, 0, 1, 1], [], []>} : vector<32x32xbf16>, vector<32x32xbf16>, vector<32x32xf32> -> vector<32x32xf32>
    %157 = arith.addf %151, %156 : vector<32x32xf32>
    %c1_i32_86 = arith.constant 1 : i32
    %158 = tpu.dynamic_rotate %135 by %c1_i32_86 dim 0 : vector<32x32xf32>, i32 -> vector<32x32xf32>
    %159 = arith.truncf %158 : vector<32x32xf32> to vector<32x32xbf16>
    %c3_87 = arith.constant 3 : index
    %c0_88 = arith.constant 0 : index
    %c0_89 = arith.constant 0 : index
    %160 = vector.load %arg11[%c3_87, %c0_88, %c0_89] : memref<5x32x32xbf16, #tpu.memory_space<vmem>>, vector<1x32x32xbf16>
    %161 = vector.shape_cast %160 : vector<1x32x32xbf16> to vector<32x32xbf16>
    %cst_90 = arith.constant dense<0.000000e+00> : vector<32x32xf32>
    %162 = tpu.matmul %159, %161, %cst_90 {dimension_numbers = #tpu.dot_dimension_numbers<[1], [0], [0], [1], [0, 0, 1, 1], [], []>} : vector<32x32xbf16>, vector<32x32xbf16>, vector<32x32xf32> -> vector<32x32xf32>
    %163 = arith.addf %157, %162 : vector<32x32xf32>
    %164 = arith.truncf %135 : vector<32x32xf32> to vector<32x32xbf16>
    %c4_91 = arith.constant 4 : index
    %c0_92 = arith.constant 0 : index
    %c0_93 = arith.constant 0 : index
    %165 = vector.load %arg11[%c4_91, %c0_92, %c0_93] : memref<5x32x32xbf16, #tpu.memory_space<vmem>>, vector<1x32x32xbf16>
    %166 = vector.shape_cast %165 : vector<1x32x32xbf16> to vector<32x32xbf16>
    %cst_94 = arith.constant dense<0.000000e+00> : vector<32x32xf32>
    %167 = tpu.matmul %164, %166, %cst_94 {dimension_numbers = #tpu.dot_dimension_numbers<[1], [0], [0], [1], [0, 0, 1, 1], [], []>} : vector<32x32xbf16>, vector<32x32xbf16>, vector<32x32xf32> -> vector<32x32xf32>
    %168 = arith.addf %163, %167 : vector<32x32xf32>
    %169 = arith.addf %34, %168 : vector<32x32xf32>
    %170 = vector.broadcast %1 : vector<32x1xf32> to vector<32x32xf32>
    %171 = arith.mulf %169, %170 : vector<32x32xf32>
    %cst_95 = arith.constant dense<0.000000e+00> : vector<32xf32>
    %172 = vector.multi_reduction <add>, %171, %cst_95 [0] : vector<32x32xf32> to vector<32xf32>
    %173 = vector.shape_cast %172 : vector<32xf32> to vector<1x32xf32>
    %cst_96 = arith.constant 0.0416666679 : f32
    %174 = vector.broadcast %cst_96 : f32 to vector<1x32xf32>
    %175 = arith.mulf %173, %174 : vector<1x32xf32>
    %176 = arith.mulf %171, %169 : vector<32x32xf32>
    %cst_97 = arith.constant dense<0.000000e+00> : vector<32xf32>
    %177 = vector.multi_reduction <add>, %176, %cst_97 [0] : vector<32x32xf32> to vector<32xf32>
    %178 = vector.shape_cast %177 : vector<32xf32> to vector<1x32xf32>
    %cst_98 = arith.constant 0.0416666679 : f32
    %179 = vector.broadcast %cst_98 : f32 to vector<1x32xf32>
    %180 = arith.mulf %178, %179 : vector<1x32xf32>
    %181 = arith.mulf %175, %175 : vector<1x32xf32>
    %182 = arith.subf %180, %181 : vector<1x32xf32>
    %183 = vector.broadcast %175 : vector<1x32xf32> to vector<32x32xf32>
    %184 = arith.subf %169, %183 : vector<32x32xf32>
    %cst_99 = arith.constant 9.99999974E-6 : f32
    %185 = vector.broadcast %cst_99 : f32 to vector<1x32xf32>
    %186 = arith.addf %182, %185 : vector<1x32xf32>
    %187 = math.rsqrt %186 : vector<1x32xf32>
    %188 = vector.broadcast %187 : vector<1x32xf32> to vector<32x32xf32>
    %189 = arith.mulf %184, %188 : vector<32x32xf32>
    %c0_100 = arith.constant 0 : index
    %c0_101 = arith.constant 0 : index
    %190 = vector.load %arg13[%c0_100, %c0_101] : memref<1x32xf32, #tpu.memory_space<vmem>>, vector<1x32xf32>
    %191 = vector.broadcast %190 : vector<1x32xf32> to vector<32x32xf32>
    %192 = arith.mulf %189, %191 : vector<32x32xf32>
    %c0_102 = arith.constant 0 : index
    %c0_103 = arith.constant 0 : index
    %193 = vector.load %arg14[%c0_102, %c0_103] : memref<1x32xf32, #tpu.memory_space<vmem>>, vector<1x32xf32>
    %194 = vector.broadcast %193 : vector<1x32xf32> to vector<32x32xf32>
    %195 = arith.addf %192, %194 : vector<32x32xf32>
    %196 = arith.negf %195 : vector<32x32xf32>
    %197 = math.exp %196 : vector<32x32xf32>
    %cst_104 = arith.constant 1.000000e+00 : f32
    %198 = vector.broadcast %cst_104 : f32 to vector<32x32xf32>
    %199 = arith.addf %198, %197 : vector<32x32xf32>
    %200 = arith.divf %198, %199 : vector<32x32xf32>
    %201 = arith.mulf %195, %200 : vector<32x32xf32>
    %202 = vector.broadcast %1 : vector<32x1xf32> to vector<32x32xf32>
    %203 = arith.mulf %201, %202 : vector<32x32xf32>
    %c0_105 = arith.constant 0 : index
    %c0_106 = arith.constant 0 : index
    %204 = vector.load %arg33[%c0_105, %c0_106] : memref<32x32xf32, #tpu.memory_space<vmem>>, vector<32x32xf32>
    tpu.vector_store %arg33[%c0_105, %c0_106], %203 {strides = array<i32>} : memref<32x32xf32, #tpu.memory_space<vmem>>, vector<32x32xf32>,
    %c0_107 = arith.constant 0 : index
    %c0_108 = arith.constant 0 : index
    %205 = tpu.strided_load %arg33[%c0_107, %c0_108] {strides = array<i32: 2, 1>} : memref<32x32xf32, #tpu.memory_space<vmem>>, vector<16x32xf32>
    %c1_109 = arith.constant 1 : index
    %c0_110 = arith.constant 0 : index
    %206 = tpu.strided_load %arg33[%c1_109, %c0_110] {strides = array<i32: 2, 1>} : memref<32x32xf32, #tpu.memory_space<vmem>>, vector<16x32xf32>
    %207 = arith.maximumf %205, %206 : vector<16x32xf32>
    %c0_111 = arith.constant 0 : index
    %c0_112 = arith.constant 0 : index
    %208 = vector.load %arg2[%c0_111, %c0_112] : memref<16x1xf32, #tpu.memory_space<vmem>>, vector<16x1xf32>
    %cst_113 = arith.constant 0.000000e+00 : f32
    %209 = vector.broadcast %cst_113 : f32 to vector<16x32xf32>
    %c0_114 = arith.constant 0 : index
    %c0_115 = arith.constant 0 : index
    %210 = vector.load %arg16[%c0_114, %c0_115] : memref<1x32xf32, #tpu.memory_space<vmem>>, vector<1x32xf32>
    %211 = vector.broadcast %210 : vector<1x32xf32> to vector<16x32xf32>
    %212 = arith.addf %209, %211 : vector<16x32xf32>
    %c4_i32_116 = arith.constant 4 : i32
    %213 = tpu.dynamic_rotate %207 by %c4_i32_116 dim 0 : vector<16x32xf32>, i32 -> vector<16x32xf32>
    %214 = arith.truncf %213 : vector<16x32xf32> to vector<16x32xbf16>
    %c0_117 = arith.constant 0 : index
    %c0_118 = arith.constant 0 : index
    %c0_119 = arith.constant 0 : index
    %215 = vector.load %arg15[%c0_117, %c0_118, %c0_119] : memref<5x32x32xbf16, #tpu.memory_space<vmem>>, vector<1x32x32xbf16>
    %216 = vector.shape_cast %215 : vector<1x32x32xbf16> to vector<32x32xbf16>
    %cst_120 = arith.constant dense<0.000000e+00> : vector<16x32xf32>
    %217 = tpu.matmul %214, %216, %cst_120 {dimension_numbers = #tpu.dot_dimension_numbers<[1], [0], [0], [1], [0, 0, 1, 1], [], []>} : vector<16x32xbf16>, vector<32x32xbf16>, vector<16x32xf32> -> vector<16x32xf32>
    %218 = arith.addf %212, %217 : vector<16x32xf32>
    %c3_i32_121 = arith.constant 3 : i32
    %219 = tpu.dynamic_rotate %207 by %c3_i32_121 dim 0 : vector<16x32xf32>, i32 -> vector<16x32xf32>
    %220 = arith.truncf %219 : vector<16x32xf32> to vector<16x32xbf16>
    %c1_122 = arith.constant 1 : index
    %c0_123 = arith.constant 0 : index
    %c0_124 = arith.constant 0 : index
    %221 = vector.load %arg15[%c1_122, %c0_123, %c0_124] : memref<5x32x32xbf16, #tpu.memory_space<vmem>>, vector<1x32x32xbf16>
    %222 = vector.shape_cast %221 : vector<1x32x32xbf16> to vector<32x32xbf16>
    %cst_125 = arith.constant dense<0.000000e+00> : vector<16x32xf32>
    %223 = tpu.matmul %220, %222, %cst_125 {dimension_numbers = #tpu.dot_dimension_numbers<[1], [0], [0], [1], [0, 0, 1, 1], [], []>} : vector<16x32xbf16>, vector<32x32xbf16>, vector<16x32xf32> -> vector<16x32xf32>
    %224 = arith.addf %218, %223 : vector<16x32xf32>
    %c2_i32_126 = arith.constant 2 : i32
    %225 = tpu.dynamic_rotate %207 by %c2_i32_126 dim 0 : vector<16x32xf32>, i32 -> vector<16x32xf32>
    %226 = arith.truncf %225 : vector<16x32xf32> to vector<16x32xbf16>
    %c2_127 = arith.constant 2 : index
    %c0_128 = arith.constant 0 : index
    %c0_129 = arith.constant 0 : index
    %227 = vector.load %arg15[%c2_127, %c0_128, %c0_129] : memref<5x32x32xbf16, #tpu.memory_space<vmem>>, vector<1x32x32xbf16>
    %228 = vector.shape_cast %227 : vector<1x32x32xbf16> to vector<32x32xbf16>
    %cst_130 = arith.constant dense<0.000000e+00> : vector<16x32xf32>
    %229 = tpu.matmul %226, %228, %cst_130 {dimension_numbers = #tpu.dot_dimension_numbers<[1], [0], [0], [1], [0, 0, 1, 1], [], []>} : vector<16x32xbf16>, vector<32x32xbf16>, vector<16x32xf32> -> vector<16x32xf32>
    %230 = arith.addf %224, %229 : vector<16x32xf32>
    %c1_i32_131 = arith.constant 1 : i32
    %231 = tpu.dynamic_rotate %207 by %c1_i32_131 dim 0 : vector<16x32xf32>, i32 -> vector<16x32xf32>
    %232 = arith.truncf %231 : vector<16x32xf32> to vector<16x32xbf16>
    %c3_132 = arith.constant 3 : index
    %c0_133 = arith.constant 0 : index
    %c0_134 = arith.constant 0 : index
    %233 = vector.load %arg15[%c3_132, %c0_133, %c0_134] : memref<5x32x32xbf16, #tpu.memory_space<vmem>>, vector<1x32x32xbf16>
    %234 = vector.shape_cast %233 : vector<1x32x32xbf16> to vector<32x32xbf16>
    %cst_135 = arith.constant dense<0.000000e+00> : vector<16x32xf32>
    %235 = tpu.matmul %232, %234, %cst_135 {dimension_numbers = #tpu.dot_dimension_numbers<[1], [0], [0], [1], [0, 0, 1, 1], [], []>} : vector<16x32xbf16>, vector<32x32xbf16>, vector<16x32xf32> -> vector<16x32xf32>
    %236 = arith.addf %230, %235 : vector<16x32xf32>
    %237 = arith.truncf %207 : vector<16x32xf32> to vector<16x32xbf16>
    %c4_136 = arith.constant 4 : index
    %c0_137 = arith.constant 0 : index
    %c0_138 = arith.constant 0 : index
    %238 = vector.load %arg15[%c4_136, %c0_137, %c0_138] : memref<5x32x32xbf16, #tpu.memory_space<vmem>>, vector<1x32x32xbf16>
    %239 = vector.shape_cast %238 : vector<1x32x32xbf16> to vector<32x32xbf16>
    %cst_139 = arith.constant dense<0.000000e+00> : vector<16x32xf32>
    %240 = tpu.matmul %237, %239, %cst_139 {dimension_numbers = #tpu.dot_dimension_numbers<[1], [0], [0], [1], [0, 0, 1, 1], [], []>} : vector<16x32xbf16>, vector<32x32xbf16>, vector<16x32xf32> -> vector<16x32xf32>
    %241 = arith.addf %236, %240 : vector<16x32xf32>
    %242 = vector.broadcast %208 : vector<16x1xf32> to vector<16x32xf32>
    %243 = arith.mulf %241, %242 : vector<16x32xf32>
    %cst_140 = arith.constant dense<0.000000e+00> : vector<32xf32>
    %244 = vector.multi_reduction <add>, %243, %cst_140 [0] : vector<16x32xf32> to vector<32xf32>
    %245 = vector.shape_cast %244 : vector<32xf32> to vector<1x32xf32>
    %cst_141 = arith.constant 1.250000e-01 : f32
    %246 = vector.broadcast %cst_141 : f32 to vector<1x32xf32>
    %247 = arith.mulf %245, %246 : vector<1x32xf32>
    %248 = arith.mulf %243, %241 : vector<16x32xf32>
    %cst_142 = arith.constant dense<0.000000e+00> : vector<32xf32>
    %249 = vector.multi_reduction <add>, %248, %cst_142 [0] : vector<16x32xf32> to vector<32xf32>
    %250 = vector.shape_cast %249 : vector<32xf32> to vector<1x32xf32>
    %cst_143 = arith.constant 1.250000e-01 : f32
    %251 = vector.broadcast %cst_143 : f32 to vector<1x32xf32>
    %252 = arith.mulf %250, %251 : vector<1x32xf32>
    %253 = arith.mulf %247, %247 : vector<1x32xf32>
    %254 = arith.subf %252, %253 : vector<1x32xf32>
    %255 = vector.broadcast %247 : vector<1x32xf32> to vector<16x32xf32>
    %256 = arith.subf %241, %255 : vector<16x32xf32>
    %cst_144 = arith.constant 9.99999974E-6 : f32
    %257 = vector.broadcast %cst_144 : f32 to vector<1x32xf32>
    %258 = arith.addf %254, %257 : vector<1x32xf32>
    %259 = math.rsqrt %258 : vector<1x32xf32>
    %260 = vector.broadcast %259 : vector<1x32xf32> to vector<16x32xf32>
    %261 = arith.mulf %256, %260 : vector<16x32xf32>
    %c0_145 = arith.constant 0 : index
    %c0_146 = arith.constant 0 : index
    %262 = vector.load %arg17[%c0_145, %c0_146] : memref<1x32xf32, #tpu.memory_space<vmem>>, vector<1x32xf32>
    %263 = vector.broadcast %262 : vector<1x32xf32> to vector<16x32xf32>
    %264 = arith.mulf %261, %263 : vector<16x32xf32>
    %c0_147 = arith.constant 0 : index
    %c0_148 = arith.constant 0 : index
    %265 = vector.load %arg18[%c0_147, %c0_148] : memref<1x32xf32, #tpu.memory_space<vmem>>, vector<1x32xf32>
    %266 = vector.broadcast %265 : vector<1x32xf32> to vector<16x32xf32>
    %267 = arith.addf %264, %266 : vector<16x32xf32>
    %268 = arith.negf %267 : vector<16x32xf32>
    %269 = math.exp %268 : vector<16x32xf32>
    %cst_149 = arith.constant 1.000000e+00 : f32
    %270 = vector.broadcast %cst_149 : f32 to vector<16x32xf32>
    %271 = arith.addf %270, %269 : vector<16x32xf32>
    %272 = arith.divf %270, %271 : vector<16x32xf32>
    %273 = arith.mulf %267, %272 : vector<16x32xf32>
    %274 = vector.broadcast %208 : vector<16x1xf32> to vector<16x32xf32>
    %275 = arith.mulf %273, %274 : vector<16x32xf32>
    %cst_150 = arith.constant 0.000000e+00 : f32
    %276 = vector.broadcast %cst_150 : f32 to vector<16x32xf32>
    %c0_151 = arith.constant 0 : index
    %c0_152 = arith.constant 0 : index
    %277 = vector.load %arg20[%c0_151, %c0_152] : memref<1x32xf32, #tpu.memory_space<vmem>>, vector<1x32xf32>
    %278 = vector.broadcast %277 : vector<1x32xf32> to vector<16x32xf32>
    %279 = arith.addf %276, %278 : vector<16x32xf32>
    %c4_i32_153 = arith.constant 4 : i32
    %280 = tpu.dynamic_rotate %275 by %c4_i32_153 dim 0 : vector<16x32xf32>, i32 -> vector<16x32xf32>
    %281 = arith.truncf %280 : vector<16x32xf32> to vector<16x32xbf16>
    %c0_154 = arith.constant 0 : index
    %c0_155 = arith.constant 0 : index
    %c0_156 = arith.constant 0 : index
    %282 = vector.load %arg19[%c0_154, %c0_155, %c0_156] : memref<5x32x32xbf16, #tpu.memory_space<vmem>>, vector<1x32x32xbf16>
    %283 = vector.shape_cast %282 : vector<1x32x32xbf16> to vector<32x32xbf16>
    %cst_157 = arith.constant dense<0.000000e+00> : vector<16x32xf32>
    %284 = tpu.matmul %281, %283, %cst_157 {dimension_numbers = #tpu.dot_dimension_numbers<[1], [0], [0], [1], [0, 0, 1, 1], [], []>} : vector<16x32xbf16>, vector<32x32xbf16>, vector<16x32xf32> -> vector<16x32xf32>
    %285 = arith.addf %279, %284 : vector<16x32xf32>
    %c3_i32_158 = arith.constant 3 : i32
    %286 = tpu.dynamic_rotate %275 by %c3_i32_158 dim 0 : vector<16x32xf32>, i32 -> vector<16x32xf32>
    %287 = arith.truncf %286 : vector<16x32xf32> to vector<16x32xbf16>
    %c1_159 = arith.constant 1 : index
    %c0_160 = arith.constant 0 : index
    %c0_161 = arith.constant 0 : index
    %288 = vector.load %arg19[%c1_159, %c0_160, %c0_161] : memref<5x32x32xbf16, #tpu.memory_space<vmem>>, vector<1x32x32xbf16>
    %289 = vector.shape_cast %288 : vector<1x32x32xbf16> to vector<32x32xbf16>
    %cst_162 = arith.constant dense<0.000000e+00> : vector<16x32xf32>
    %290 = tpu.matmul %287, %289, %cst_162 {dimension_numbers = #tpu.dot_dimension_numbers<[1], [0], [0], [1], [0, 0, 1, 1], [], []>} : vector<16x32xbf16>, vector<32x32xbf16>, vector<16x32xf32> -> vector<16x32xf32>
    %291 = arith.addf %285, %290 : vector<16x32xf32>
    %c2_i32_163 = arith.constant 2 : i32
    %292 = tpu.dynamic_rotate %275 by %c2_i32_163 dim 0 : vector<16x32xf32>, i32 -> vector<16x32xf32>
    %293 = arith.truncf %292 : vector<16x32xf32> to vector<16x32xbf16>
    %c2_164 = arith.constant 2 : index
    %c0_165 = arith.constant 0 : index
    %c0_166 = arith.constant 0 : index
    %294 = vector.load %arg19[%c2_164, %c0_165, %c0_166] : memref<5x32x32xbf16, #tpu.memory_space<vmem>>, vector<1x32x32xbf16>
    %295 = vector.shape_cast %294 : vector<1x32x32xbf16> to vector<32x32xbf16>
    %cst_167 = arith.constant dense<0.000000e+00> : vector<16x32xf32>
    %296 = tpu.matmul %293, %295, %cst_167 {dimension_numbers = #tpu.dot_dimension_numbers<[1], [0], [0], [1], [0, 0, 1, 1], [], []>} : vector<16x32xbf16>, vector<32x32xbf16>, vector<16x32xf32> -> vector<16x32xf32>
    %297 = arith.addf %291, %296 : vector<16x32xf32>
    %c1_i32_168 = arith.constant 1 : i32
    %298 = tpu.dynamic_rotate %275 by %c1_i32_168 dim 0 : vector<16x32xf32>, i32 -> vector<16x32xf32>
    %299 = arith.truncf %298 : vector<16x32xf32> to vector<16x32xbf16>
    %c3_169 = arith.constant 3 : index
    %c0_170 = arith.constant 0 : index
    %c0_171 = arith.constant 0 : index
    %300 = vector.load %arg19[%c3_169, %c0_170, %c0_171] : memref<5x32x32xbf16, #tpu.memory_space<vmem>>, vector<1x32x32xbf16>
    %301 = vector.shape_cast %300 : vector<1x32x32xbf16> to vector<32x32xbf16>
    %cst_172 = arith.constant dense<0.000000e+00> : vector<16x32xf32>
    %302 = tpu.matmul %299, %301, %cst_172 {dimension_numbers = #tpu.dot_dimension_numbers<[1], [0], [0], [1], [0, 0, 1, 1], [], []>} : vector<16x32xbf16>, vector<32x32xbf16>, vector<16x32xf32> -> vector<16x32xf32>
    %303 = arith.addf %297, %302 : vector<16x32xf32>
    %304 = arith.truncf %275 : vector<16x32xf32> to vector<16x32xbf16>
    %c4_173 = arith.constant 4 : index
    %c0_174 = arith.constant 0 : index
    %c0_175 = arith.constant 0 : index
    %305 = vector.load %arg19[%c4_173, %c0_174, %c0_175] : memref<5x32x32xbf16, #tpu.memory_space<vmem>>, vector<1x32x32xbf16>
    %306 = vector.shape_cast %305 : vector<1x32x32xbf16> to vector<32x32xbf16>
    %cst_176 = arith.constant dense<0.000000e+00> : vector<16x32xf32>
    %307 = tpu.matmul %304, %306, %cst_176 {dimension_numbers = #tpu.dot_dimension_numbers<[1], [0], [0], [1], [0, 0, 1, 1], [], []>} : vector<16x32xbf16>, vector<32x32xbf16>, vector<16x32xf32> -> vector<16x32xf32>
    %308 = arith.addf %303, %307 : vector<16x32xf32>
    %309 = vector.broadcast %208 : vector<16x1xf32> to vector<16x32xf32>
    %310 = arith.mulf %308, %309 : vector<16x32xf32>
    %cst_177 = arith.constant dense<0.000000e+00> : vector<32xf32>
    %311 = vector.multi_reduction <add>, %310, %cst_177 [0] : vector<16x32xf32> to vector<32xf32>
    %312 = vector.shape_cast %311 : vector<32xf32> to vector<1x32xf32>
    %cst_178 = arith.constant 1.250000e-01 : f32
    %313 = vector.broadcast %cst_178 : f32 to vector<1x32xf32>
    %314 = arith.mulf %312, %313 : vector<1x32xf32>
    %315 = arith.mulf %310, %308 : vector<16x32xf32>
    %cst_179 = arith.constant dense<0.000000e+00> : vector<32xf32>
    %316 = vector.multi_reduction <add>, %315, %cst_179 [0] : vector<16x32xf32> to vector<32xf32>
    %317 = vector.shape_cast %316 : vector<32xf32> to vector<1x32xf32>
    %cst_180 = arith.constant 1.250000e-01 : f32
    %318 = vector.broadcast %cst_180 : f32 to vector<1x32xf32>
    %319 = arith.mulf %317, %318 : vector<1x32xf32>
    %320 = arith.mulf %314, %314 : vector<1x32xf32>
    %321 = arith.subf %319, %320 : vector<1x32xf32>
    %322 = vector.broadcast %314 : vector<1x32xf32> to vector<16x32xf32>
    %323 = arith.subf %308, %322 : vector<16x32xf32>
    %cst_181 = arith.constant 9.99999974E-6 : f32
    %324 = vector.broadcast %cst_181 : f32 to vector<1x32xf32>
    %325 = arith.addf %321, %324 : vector<1x32xf32>
    %326 = math.rsqrt %325 : vector<1x32xf32>
    %327 = vector.broadcast %326 : vector<1x32xf32> to vector<16x32xf32>
    %328 = arith.mulf %323, %327 : vector<16x32xf32>
    %c0_182 = arith.constant 0 : index
    %c0_183 = arith.constant 0 : index
    %329 = vector.load %arg21[%c0_182, %c0_183] : memref<1x32xf32, #tpu.memory_space<vmem>>, vector<1x32xf32>
    %330 = vector.broadcast %329 : vector<1x32xf32> to vector<16x32xf32>
    %331 = arith.mulf %328, %330 : vector<16x32xf32>
    %c0_184 = arith.constant 0 : index
    %c0_185 = arith.constant 0 : index
    %332 = vector.load %arg22[%c0_184, %c0_185] : memref<1x32xf32, #tpu.memory_space<vmem>>, vector<1x32xf32>
    %333 = vector.broadcast %332 : vector<1x32xf32> to vector<16x32xf32>
    %334 = arith.addf %331, %333 : vector<16x32xf32>
    %335 = arith.negf %334 : vector<16x32xf32>
    %336 = math.exp %335 : vector<16x32xf32>
    %cst_186 = arith.constant 1.000000e+00 : f32
    %337 = vector.broadcast %cst_186 : f32 to vector<16x32xf32>
    %338 = arith.addf %337, %336 : vector<16x32xf32>
    %339 = arith.divf %337, %338 : vector<16x32xf32>
    %340 = arith.mulf %334, %339 : vector<16x32xf32>
    %341 = vector.broadcast %208 : vector<16x1xf32> to vector<16x32xf32>
    %342 = arith.mulf %340, %341 : vector<16x32xf32>
    %cst_187 = arith.constant 0.000000e+00 : f32
    %343 = vector.broadcast %cst_187 : f32 to vector<16x32xf32>
    %c0_188 = arith.constant 0 : index
    %c0_189 = arith.constant 0 : index
    %344 = vector.load %arg24[%c0_188, %c0_189] : memref<1x32xf32, #tpu.memory_space<vmem>>, vector<1x32xf32>
    %345 = vector.broadcast %344 : vector<1x32xf32> to vector<16x32xf32>
    %346 = arith.addf %343, %345 : vector<16x32xf32>
    %c4_i32_190 = arith.constant 4 : i32
    %347 = tpu.dynamic_rotate %342 by %c4_i32_190 dim 0 : vector<16x32xf32>, i32 -> vector<16x32xf32>
    %348 = arith.truncf %347 : vector<16x32xf32> to vector<16x32xbf16>
    %c0_191 = arith.constant 0 : index
    %c0_192 = arith.constant 0 : index
    %c0_193 = arith.constant 0 : index
    %349 = vector.load %arg23[%c0_191, %c0_192, %c0_193] : memref<5x32x32xbf16, #tpu.memory_space<vmem>>, vector<1x32x32xbf16>
    %350 = vector.shape_cast %349 : vector<1x32x32xbf16> to vector<32x32xbf16>
    %cst_194 = arith.constant dense<0.000000e+00> : vector<16x32xf32>
    %351 = tpu.matmul %348, %350, %cst_194 {dimension_numbers = #tpu.dot_dimension_numbers<[1], [0], [0], [1], [0, 0, 1, 1], [], []>} : vector<16x32xbf16>, vector<32x32xbf16>, vector<16x32xf32> -> vector<16x32xf32>
    %352 = arith.addf %346, %351 : vector<16x32xf32>
    %c3_i32_195 = arith.constant 3 : i32
    %353 = tpu.dynamic_rotate %342 by %c3_i32_195 dim 0 : vector<16x32xf32>, i32 -> vector<16x32xf32>
    %354 = arith.truncf %353 : vector<16x32xf32> to vector<16x32xbf16>
    %c1_196 = arith.constant 1 : index
    %c0_197 = arith.constant 0 : index
    %c0_198 = arith.constant 0 : index
    %355 = vector.load %arg23[%c1_196, %c0_197, %c0_198] : memref<5x32x32xbf16, #tpu.memory_space<vmem>>, vector<1x32x32xbf16>
    %356 = vector.shape_cast %355 : vector<1x32x32xbf16> to vector<32x32xbf16>
    %cst_199 = arith.constant dense<0.000000e+00> : vector<16x32xf32>
    %357 = tpu.matmul %354, %356, %cst_199 {dimension_numbers = #tpu.dot_dimension_numbers<[1], [0], [0], [1], [0, 0, 1, 1], [], []>} : vector<16x32xbf16>, vector<32x32xbf16>, vector<16x32xf32> -> vector<16x32xf32>
    %358 = arith.addf %352, %357 : vector<16x32xf32>
    %c2_i32_200 = arith.constant 2 : i32
    %359 = tpu.dynamic_rotate %342 by %c2_i32_200 dim 0 : vector<16x32xf32>, i32 -> vector<16x32xf32>
    %360 = arith.truncf %359 : vector<16x32xf32> to vector<16x32xbf16>
    %c2_201 = arith.constant 2 : index
    %c0_202 = arith.constant 0 : index
    %c0_203 = arith.constant 0 : index
    %361 = vector.load %arg23[%c2_201, %c0_202, %c0_203] : memref<5x32x32xbf16, #tpu.memory_space<vmem>>, vector<1x32x32xbf16>
    %362 = vector.shape_cast %361 : vector<1x32x32xbf16> to vector<32x32xbf16>
    %cst_204 = arith.constant dense<0.000000e+00> : vector<16x32xf32>
    %363 = tpu.matmul %360, %362, %cst_204 {dimension_numbers = #tpu.dot_dimension_numbers<[1], [0], [0], [1], [0, 0, 1, 1], [], []>} : vector<16x32xbf16>, vector<32x32xbf16>, vector<16x32xf32> -> vector<16x32xf32>
    %364 = arith.addf %358, %363 : vector<16x32xf32>
    %c1_i32_205 = arith.constant 1 : i32
    %365 = tpu.dynamic_rotate %342 by %c1_i32_205 dim 0 : vector<16x32xf32>, i32 -> vector<16x32xf32>
    %366 = arith.truncf %365 : vector<16x32xf32> to vector<16x32xbf16>
    %c3_206 = arith.constant 3 : index
    %c0_207 = arith.constant 0 : index
    %c0_208 = arith.constant 0 : index
    %367 = vector.load %arg23[%c3_206, %c0_207, %c0_208] : memref<5x32x32xbf16, #tpu.memory_space<vmem>>, vector<1x32x32xbf16>
    %368 = vector.shape_cast %367 : vector<1x32x32xbf16> to vector<32x32xbf16>
    %cst_209 = arith.constant dense<0.000000e+00> : vector<16x32xf32>
    %369 = tpu.matmul %366, %368, %cst_209 {dimension_numbers = #tpu.dot_dimension_numbers<[1], [0], [0], [1], [0, 0, 1, 1], [], []>} : vector<16x32xbf16>, vector<32x32xbf16>, vector<16x32xf32> -> vector<16x32xf32>
    %370 = arith.addf %364, %369 : vector<16x32xf32>
    %371 = arith.truncf %342 : vector<16x32xf32> to vector<16x32xbf16>
    %c4_210 = arith.constant 4 : index
    %c0_211 = arith.constant 0 : index
    %c0_212 = arith.constant 0 : index
    %372 = vector.load %arg23[%c4_210, %c0_211, %c0_212] : memref<5x32x32xbf16, #tpu.memory_space<vmem>>, vector<1x32x32xbf16>
    %373 = vector.shape_cast %372 : vector<1x32x32xbf16> to vector<32x32xbf16>
    %cst_213 = arith.constant dense<0.000000e+00> : vector<16x32xf32>
    %374 = tpu.matmul %371, %373, %cst_213 {dimension_numbers = #tpu.dot_dimension_numbers<[1], [0], [0], [1], [0, 0, 1, 1], [], []>} : vector<16x32xbf16>, vector<32x32xbf16>, vector<16x32xf32> -> vector<16x32xf32>
    %375 = arith.addf %370, %374 : vector<16x32xf32>
    %376 = arith.addf %241, %375 : vector<16x32xf32>
    %377 = vector.broadcast %208 : vector<16x1xf32> to vector<16x32xf32>
    %378 = arith.mulf %376, %377 : vector<16x32xf32>
    %cst_214 = arith.constant dense<0.000000e+00> : vector<32xf32>
    %379 = vector.multi_reduction <add>, %378, %cst_214 [0] : vector<16x32xf32> to vector<32xf32>
    %380 = vector.shape_cast %379 : vector<32xf32> to vector<1x32xf32>
    %cst_215 = arith.constant 1.250000e-01 : f32
    %381 = vector.broadcast %cst_215 : f32 to vector<1x32xf32>
    %382 = arith.mulf %380, %381 : vector<1x32xf32>
    %383 = arith.mulf %378, %376 : vector<16x32xf32>
    %cst_216 = arith.constant dense<0.000000e+00> : vector<32xf32>
    %384 = vector.multi_reduction <add>, %383, %cst_216 [0] : vector<16x32xf32> to vector<32xf32>
    %385 = vector.shape_cast %384 : vector<32xf32> to vector<1x32xf32>
    %cst_217 = arith.constant 1.250000e-01 : f32
    %386 = vector.broadcast %cst_217 : f32 to vector<1x32xf32>
    %387 = arith.mulf %385, %386 : vector<1x32xf32>
    %388 = arith.mulf %382, %382 : vector<1x32xf32>
    %389 = arith.subf %387, %388 : vector<1x32xf32>
    %390 = vector.broadcast %382 : vector<1x32xf32> to vector<16x32xf32>
    %391 = arith.subf %376, %390 : vector<16x32xf32>
    %cst_218 = arith.constant 9.99999974E-6 : f32
    %392 = vector.broadcast %cst_218 : f32 to vector<1x32xf32>
    %393 = arith.addf %389, %392 : vector<1x32xf32>
    %394 = math.rsqrt %393 : vector<1x32xf32>
    %395 = vector.broadcast %394 : vector<1x32xf32> to vector<16x32xf32>
    %396 = arith.mulf %391, %395 : vector<16x32xf32>
    %c0_219 = arith.constant 0 : index
    %c0_220 = arith.constant 0 : index
    %397 = vector.load %arg25[%c0_219, %c0_220] : memref<1x32xf32, #tpu.memory_space<vmem>>, vector<1x32xf32>
    %398 = vector.broadcast %397 : vector<1x32xf32> to vector<16x32xf32>
    %399 = arith.mulf %396, %398 : vector<16x32xf32>
    %c0_221 = arith.constant 0 : index
    %c0_222 = arith.constant 0 : index
    %400 = vector.load %arg26[%c0_221, %c0_222] : memref<1x32xf32, #tpu.memory_space<vmem>>, vector<1x32xf32>
    %401 = vector.broadcast %400 : vector<1x32xf32> to vector<16x32xf32>
    %402 = arith.addf %399, %401 : vector<16x32xf32>
    %403 = arith.negf %402 : vector<16x32xf32>
    %404 = math.exp %403 : vector<16x32xf32>
    %cst_223 = arith.constant 1.000000e+00 : f32
    %405 = vector.broadcast %cst_223 : f32 to vector<16x32xf32>
    %406 = arith.addf %405, %404 : vector<16x32xf32>
    %407 = arith.divf %405, %406 : vector<16x32xf32>
    %408 = arith.mulf %402, %407 : vector<16x32xf32>
    %409 = vector.broadcast %208 : vector<16x1xf32> to vector<16x32xf32>
    %410 = arith.mulf %408, %409 : vector<16x32xf32>
    %c0_224 = arith.constant 0 : index
    %c0_225 = arith.constant 0 : index
    %411 = vector.load %arg34[%c0_224, %c0_225] : memref<16x32xf32, #tpu.memory_space<vmem>>, vector<16x32xf32>
    tpu.vector_store %arg34[%c0_224, %c0_225], %410 {strides = array<i32>} : memref<16x32xf32, #tpu.memory_space<vmem>>, vector<16x32xf32>,
    %c0_226 = arith.constant 0 : index
    %c0_227 = arith.constant 0 : index
    %412 = tpu.strided_load %arg34[%c0_226, %c0_227] {strides = array<i32: 2, 1>} : memref<16x32xf32, #tpu.memory_space<vmem>>, vector<8x32xf32>
    %c1_228 = arith.constant 1 : index
    %c0_229 = arith.constant 0 : index
    %413 = tpu.strided_load %arg34[%c1_228, %c0_229] {strides = array<i32: 2, 1>} : memref<16x32xf32, #tpu.memory_space<vmem>>, vector<8x32xf32>
    %414 = arith.maximumf %412, %413 : vector<8x32xf32>
    %415 = arith.truncf %414 : vector<8x32xf32> to vector<8x32xbf16>
    %c0_230 = arith.constant 0 : index
    %c0_231 = arith.constant 0 : index
    %416 = vector.load %arg27[%c0_230, %c0_231] : memref<32x128xbf16, #tpu.memory_space<vmem>>, vector<32x128xbf16>
    %cst_232 = arith.constant dense<0.000000e+00> : vector<8x128xf32>
    %417 = tpu.matmul %415, %416, %cst_232 {dimension_numbers = #tpu.dot_dimension_numbers<[1], [0], [0], [1], [0, 0, 1, 1], [], []>} : vector<8x32xbf16>, vector<32x128xbf16>, vector<8x128xf32> -> vector<8x128xf32>
    %c0_233 = arith.constant 0 : index
    %c0_234 = arith.constant 0 : index
    %418 = vector.load %arg28[%c0_233, %c0_234] : memref<1x128xf32, #tpu.memory_space<vmem>>, vector<1x128xf32>
    %419 = vector.broadcast %418 : vector<1x128xf32> to vector<8x128xf32>
    %420 = arith.addf %417, %419 : vector<8x128xf32>
    %c0_235 = arith.constant 0 : index
    %c0_236 = arith.constant 0 : index
    %421 = vector.load %arg35[%c0_235, %c0_236] : memref<8x128xf32, #tpu.memory_space<vmem>>, vector<8x128xf32>
    tpu.vector_store %arg35[%c0_235, %c0_236], %420 {strides = array<i32>} : memref<8x128xf32, #tpu.memory_space<vmem>>, vector<8x128xf32>,
    %c0_237 = arith.constant 0 : index
    %c0_238 = arith.constant 0 : index
    %422 = vector.load %arg29[%c0_237, %c0_238] : memref<32x128xbf16, #tpu.memory_space<vmem>>, vector<32x128xbf16>
    %423 = tpu.iota {dimensions = array<i32: 1>} : vector<2x128xi32>
    %c64_i32 = arith.constant 64 : i32
    %424 = vector.broadcast %c64_i32 : i32 to vector<2x128xi32>
    %425 = arith.cmpi sge, %423, %424 : vector<2x128xi32>
    %c96_i32 = arith.constant 96 : i32
    %426 = vector.broadcast %c96_i32 : i32 to vector<2x128xi32>
    %427 = arith.cmpi slt, %423, %426 : vector<2x128xi32>
    %428 = arith.andi %425, %427 : vector<2x128xi1>
    %cst_239 = arith.constant 0.000000e+00 : f32
    %429 = vector.broadcast %cst_239 : f32 to vector<2x32xf32>
    %cst_240 = arith.constant 0.000000e+00 : f32
    %430 = vector.broadcast %cst_240 : f32 to vector<2x32xf32>
    %cst_241 = arith.constant 0.000000e+00 : f32
    %431 = vector.broadcast %cst_241 : f32 to vector<2x32xf32>
    %c0_242 = arith.constant 0 : index
    %c0_243 = arith.constant 0 : index
    %432 = tpu.strided_load %arg35[%c0_242, %c0_243] {strides = array<i32: 4, 1>} : memref<8x128xf32, #tpu.memory_space<vmem>>, vector<2x128xf32>
    %433 = arith.truncf %429 : vector<2x32xf32> to vector<2x32xbf16>
    %cst_244 = arith.constant dense<0.000000e+00> : vector<2x128xf32>
    %434 = tpu.matmul %433, %422, %cst_244 {dimension_numbers = #tpu.dot_dimension_numbers<[1], [0], [0], [1], [0, 0, 1, 1], [], []>} : vector<2x32xbf16>, vector<32x128xbf16>, vector<2x128xf32> -> vector<2x128xf32>
    %435 = arith.addf %432, %434 : vector<2x128xf32>
    %cst_245 = arith.constant 2.000000e+00 : f32
    %436 = vector.broadcast %cst_245 : f32 to vector<2x128xf32>
    %437 = arith.mulf %436, %435 : vector<2x128xf32>
    %438 = arith.select %428, %437, %435 : vector<2x128xi1>, vector<2x128xf32>
    %439 = arith.negf %438 : vector<2x128xf32>
    %440 = math.exp %439 : vector<2x128xf32>
    %cst_246 = arith.constant 1.000000e+00 : f32
    %441 = vector.broadcast %cst_246 : f32 to vector<2x128xf32>
    %442 = arith.addf %441, %440 : vector<2x128xf32>
    %443 = arith.divf %441, %442 : vector<2x128xf32>
    %cst_247 = arith.constant 2.000000e+00 : f32
    %444 = vector.broadcast %cst_247 : f32 to vector<2x128xf32>
    %445 = arith.mulf %444, %443 : vector<2x128xf32>
    %cst_248 = arith.constant 1.000000e+00 : f32
    %446 = vector.broadcast %cst_248 : f32 to vector<2x128xf32>
    %447 = arith.subf %445, %446 : vector<2x128xf32>
    %448 = arith.select %428, %447, %443 : vector<2x128xi1>, vector<2x128xf32>
    %449 = vector.extract_strided_slice %448 {offsets = [0, 0], sizes = [2, 32], strides = [1, 1]} : vector<2x128xf32> to vector<2x32xf32>
    %450 = vector.extract_strided_slice %448 {offsets = [0, 32], sizes = [2, 32], strides = [1, 1]} : vector<2x128xf32> to vector<2x32xf32>
    %451 = vector.extract_strided_slice %448 {offsets = [0, 64], sizes = [2, 32], strides = [1, 1]} : vector<2x128xf32> to vector<2x32xf32>
    %452 = vector.extract_strided_slice %448 {offsets = [0, 96], sizes = [2, 32], strides = [1, 1]} : vector<2x128xf32> to vector<2x32xf32>
    %453 = arith.mulf %450, %430 : vector<2x32xf32>
    %454 = arith.mulf %449, %451 : vector<2x32xf32>
    %455 = arith.addf %453, %454 : vector<2x32xf32>
    %456 = math.tanh %455 : vector<2x32xf32>
    %457 = arith.mulf %452, %456 : vector<2x32xf32>
    %458 = arith.addf %431, %457 : vector<2x32xf32>
    %c1_249 = arith.constant 1 : index
    %c0_250 = arith.constant 0 : index
    %459 = tpu.strided_load %arg35[%c1_249, %c0_250] {strides = array<i32: 4, 1>} : memref<8x128xf32, #tpu.memory_space<vmem>>, vector<2x128xf32>
    %460 = arith.truncf %457 : vector<2x32xf32> to vector<2x32xbf16>
    %cst_251 = arith.constant dense<0.000000e+00> : vector<2x128xf32>
    %461 = tpu.matmul %460, %422, %cst_251 {dimension_numbers = #tpu.dot_dimension_numbers<[1], [0], [0], [1], [0, 0, 1, 1], [], []>} : vector<2x32xbf16>, vector<32x128xbf16>, vector<2x128xf32> -> vector<2x128xf32>
    %462 = arith.addf %459, %461 : vector<2x128xf32>
    %cst_252 = arith.constant 2.000000e+00 : f32
    %463 = vector.broadcast %cst_252 : f32 to vector<2x128xf32>
    %464 = arith.mulf %463, %462 : vector<2x128xf32>
    %465 = arith.select %428, %464, %462 : vector<2x128xi1>, vector<2x128xf32>
    %466 = arith.negf %465 : vector<2x128xf32>
    %467 = math.exp %466 : vector<2x128xf32>
    %cst_253 = arith.constant 1.000000e+00 : f32
    %468 = vector.broadcast %cst_253 : f32 to vector<2x128xf32>
    %469 = arith.addf %468, %467 : vector<2x128xf32>
    %470 = arith.divf %468, %469 : vector<2x128xf32>
    %cst_254 = arith.constant 2.000000e+00 : f32
    %471 = vector.broadcast %cst_254 : f32 to vector<2x128xf32>
    %472 = arith.mulf %471, %470 : vector<2x128xf32>
    %cst_255 = arith.constant 1.000000e+00 : f32
    %473 = vector.broadcast %cst_255 : f32 to vector<2x128xf32>
    %474 = arith.subf %472, %473 : vector<2x128xf32>
    %475 = arith.select %428, %474, %470 : vector<2x128xi1>, vector<2x128xf32>
    %476 = vector.extract_strided_slice %475 {offsets = [0, 0], sizes = [2, 32], strides = [1, 1]} : vector<2x128xf32> to vector<2x32xf32>
    %477 = vector.extract_strided_slice %475 {offsets = [0, 32], sizes = [2, 32], strides = [1, 1]} : vector<2x128xf32> to vector<2x32xf32>
    %478 = vector.extract_strided_slice %475 {offsets = [0, 64], sizes = [2, 32], strides = [1, 1]} : vector<2x128xf32> to vector<2x32xf32>
    %479 = vector.extract_strided_slice %475 {offsets = [0, 96], sizes = [2, 32], strides = [1, 1]} : vector<2x128xf32> to vector<2x32xf32>
    %480 = arith.mulf %477, %455 : vector<2x32xf32>
    %481 = arith.mulf %476, %478 : vector<2x32xf32>
    %482 = arith.addf %480, %481 : vector<2x32xf32>
    %483 = math.tanh %482 : vector<2x32xf32>
    %484 = arith.mulf %479, %483 : vector<2x32xf32>
    %485 = arith.addf %458, %484 : vector<2x32xf32>
    %c2_256 = arith.constant 2 : index
    %c0_257 = arith.constant 0 : index
    %486 = tpu.strided_load %arg35[%c2_256, %c0_257] {strides = array<i32: 4, 1>} : memref<8x128xf32, #tpu.memory_space<vmem>>, vector<2x128xf32>
    %487 = arith.truncf %484 : vector<2x32xf32> to vector<2x32xbf16>
    %cst_258 = arith.constant dense<0.000000e+00> : vector<2x128xf32>
    %488 = tpu.matmul %487, %422, %cst_258 {dimension_numbers = #tpu.dot_dimension_numbers<[1], [0], [0], [1], [0, 0, 1, 1], [], []>} : vector<2x32xbf16>, vector<32x128xbf16>, vector<2x128xf32> -> vector<2x128xf32>
    %489 = arith.addf %486, %488 : vector<2x128xf32>
    %cst_259 = arith.constant 2.000000e+00 : f32
    %490 = vector.broadcast %cst_259 : f32 to vector<2x128xf32>
    %491 = arith.mulf %490, %489 : vector<2x128xf32>
    %492 = arith.select %428, %491, %489 : vector<2x128xi1>, vector<2x128xf32>
    %493 = arith.negf %492 : vector<2x128xf32>
    %494 = math.exp %493 : vector<2x128xf32>
    %cst_260 = arith.constant 1.000000e+00 : f32
    %495 = vector.broadcast %cst_260 : f32 to vector<2x128xf32>
    %496 = arith.addf %495, %494 : vector<2x128xf32>
    %497 = arith.divf %495, %496 : vector<2x128xf32>
    %cst_261 = arith.constant 2.000000e+00 : f32
    %498 = vector.broadcast %cst_261 : f32 to vector<2x128xf32>
    %499 = arith.mulf %498, %497 : vector<2x128xf32>
    %cst_262 = arith.constant 1.000000e+00 : f32
    %500 = vector.broadcast %cst_262 : f32 to vector<2x128xf32>
    %501 = arith.subf %499, %500 : vector<2x128xf32>
    %502 = arith.select %428, %501, %497 : vector<2x128xi1>, vector<2x128xf32>
    %503 = vector.extract_strided_slice %502 {offsets = [0, 0], sizes = [2, 32], strides = [1, 1]} : vector<2x128xf32> to vector<2x32xf32>
    %504 = vector.extract_strided_slice %502 {offsets = [0, 32], sizes = [2, 32], strides = [1, 1]} : vector<2x128xf32> to vector<2x32xf32>
    %505 = vector.extract_strided_slice %502 {offsets = [0, 64], sizes = [2, 32], strides = [1, 1]} : vector<2x128xf32> to vector<2x32xf32>
    %506 = vector.extract_strided_slice %502 {offsets = [0, 96], sizes = [2, 32], strides = [1, 1]} : vector<2x128xf32> to vector<2x32xf32>
    %507 = arith.mulf %504, %482 : vector<2x32xf32>
    %508 = arith.mulf %503, %505 : vector<2x32xf32>
    %509 = arith.addf %507, %508 : vector<2x32xf32>
    %510 = math.tanh %509 : vector<2x32xf32>
    %511 = arith.mulf %506, %510 : vector<2x32xf32>
    %512 = arith.addf %485, %511 : vector<2x32xf32>
    %c3_263 = arith.constant 3 : index
    %c0_264 = arith.constant 0 : index
    %513 = tpu.strided_load %arg35[%c3_263, %c0_264] {strides = array<i32: 4, 1>} : memref<8x128xf32, #tpu.memory_space<vmem>>, vector<2x128xf32>
    %514 = arith.truncf %511 : vector<2x32xf32> to vector<2x32xbf16>
    %cst_265 = arith.constant dense<0.000000e+00> : vector<2x128xf32>
    %515 = tpu.matmul %514, %422, %cst_265 {dimension_numbers = #tpu.dot_dimension_numbers<[1], [0], [0], [1], [0, 0, 1, 1], [], []>} : vector<2x32xbf16>, vector<32x128xbf16>, vector<2x128xf32> -> vector<2x128xf32>
    %516 = arith.addf %513, %515 : vector<2x128xf32>
    %cst_266 = arith.constant 2.000000e+00 : f32
    %517 = vector.broadcast %cst_266 : f32 to vector<2x128xf32>
    %518 = arith.mulf %517, %516 : vector<2x128xf32>
    %519 = arith.select %428, %518, %516 : vector<2x128xi1>, vector<2x128xf32>
    %520 = arith.negf %519 : vector<2x128xf32>
    %521 = math.exp %520 : vector<2x128xf32>
    %cst_267 = arith.constant 1.000000e+00 : f32
    %522 = vector.broadcast %cst_267 : f32 to vector<2x128xf32>
    %523 = arith.addf %522, %521 : vector<2x128xf32>
    %524 = arith.divf %522, %523 : vector<2x128xf32>
    %cst_268 = arith.constant 2.000000e+00 : f32
    %525 = vector.broadcast %cst_268 : f32 to vector<2x128xf32>
    %526 = arith.mulf %525, %524 : vector<2x128xf32>
    %cst_269 = arith.constant 1.000000e+00 : f32
    %527 = vector.broadcast %cst_269 : f32 to vector<2x128xf32>
    %528 = arith.subf %526, %527 : vector<2x128xf32>
    %529 = arith.select %428, %528, %524 : vector<2x128xi1>, vector<2x128xf32>
    %530 = vector.extract_strided_slice %529 {offsets = [0, 0], sizes = [2, 32], strides = [1, 1]} : vector<2x128xf32> to vector<2x32xf32>
    %531 = vector.extract_strided_slice %529 {offsets = [0, 32], sizes = [2, 32], strides = [1, 1]} : vector<2x128xf32> to vector<2x32xf32>
    %532 = vector.extract_strided_slice %529 {offsets = [0, 64], sizes = [2, 32], strides = [1, 1]} : vector<2x128xf32> to vector<2x32xf32>
    %533 = vector.extract_strided_slice %529 {offsets = [0, 96], sizes = [2, 32], strides = [1, 1]} : vector<2x128xf32> to vector<2x32xf32>
    %534 = arith.mulf %531, %509 : vector<2x32xf32>
    %535 = arith.mulf %530, %532 : vector<2x32xf32>
    %536 = arith.addf %534, %535 : vector<2x32xf32>
    %537 = math.tanh %536 : vector<2x32xf32>
    %538 = arith.mulf %533, %537 : vector<2x32xf32>
    %539 = arith.addf %512, %538 : vector<2x32xf32>
    %cst_270 = arith.constant 2.500000e-01 : f32
    %540 = vector.broadcast %cst_270 : f32 to vector<2x32xf32>
    %541 = arith.mulf %539, %540 : vector<2x32xf32>
    %c0_271 = arith.constant 0 : index
    %c0_272 = arith.constant 0 : index
    %542 = vector.load %arg30[%c0_271, %c0_272] : memref<1x32xf32, #tpu.memory_space<vmem>>, vector<1x32xf32>
    %543 = vector.broadcast %542 : vector<1x32xf32> to vector<2x32xf32>
    %544 = arith.mulf %541, %543 : vector<2x32xf32>
    %cst_273 = arith.constant dense<0.000000e+00> : vector<2xf32>
    %545 = vector.multi_reduction <add>, %544, %cst_273 [1] : vector<2x32xf32> to vector<2xf32>
    %546 = vector.shape_cast %545 : vector<2xf32> to vector<2x1xf32>
    %c0_274 = arith.constant 0 : index
    %c0_275 = arith.constant 0 : index
    %547 = vector.load %arg31[%c0_274, %c0_275] : memref<1x1xf32, #tpu.memory_space<vmem>>, vector<1x1xf32>
    %548 = vector.broadcast %547 : vector<1x1xf32> to vector<2x1xf32>
    %549 = arith.addf %546, %548 : vector<2x1xf32>
    %550 = arith.negf %549 : vector<2x1xf32>
    %551 = math.exp %550 : vector<2x1xf32>
    %cst_276 = arith.constant 1.000000e+00 : f32
    %552 = vector.broadcast %cst_276 : f32 to vector<2x1xf32>
    %553 = arith.addf %552, %551 : vector<2x1xf32>
    %554 = arith.divf %552, %553 : vector<2x1xf32>
    %c0_277 = arith.constant 0 : index
    %c0_278 = arith.constant 0 : index
    %555 = vector.load %arg32[%c0_277, %c0_278] : memref<2x1xf32, #tpu.memory_space<vmem>>, vector<2x1xf32>
    tpu.vector_store %arg32[%c0_277, %c0_278], %554 {strides = array<i32>} : memref<2x1xf32, #tpu.memory_space<vmem>>, vector<2x1xf32>,
    return
  }
}

</mosaic_0001>

<llo_original>
// kernel: rnn_model_forward.1
$region0: #{rnn_model_forward.1}
  #allocation0 [shape = 'u32[]', space=smem, size = 0x4, offset = 0x4, fixed_abs, tag = 'smem constant byte address 0x4 - core index']
  #allocation1 [shape = 'u32[144,128]{1,0:T(1,128)}', space=vmem, size = 0x12000, scoped, tag = 'internal scratch']
  #allocation2 [shape = 'f32[32,32]{1,0:T(8,128)}', space=vmem, size = 0x4000, scoped, tag = 'scratch operand']
  #allocation3 [shape = 'f32[16,32]{1,0:T(8,128)}', space=vmem, size = 0x2000, scoped, tag = 'scratch operand']
  #allocation4 [shape = 'f32[8,128]{1,0:T(8,128)}', space=vmem, size = 0x1000, scoped, tag = 'scratch operand']
  #allocation5 [shape = 'f32[1,1]{1,0:T(1,128)S(1)}', space=vmem, size = 0x200, scoped, tag = 'scoped memory for rnn_model_forward.1']
  %s0 = inlined_call_operand.smem [shape: u32[33], index: -1, kind: input, shape index: {}]
  %s1 = sld [smem:[%s0]]
  %s2 = scalar_lea.smem %s0, 1
  %s3 = sld [smem:[%s2]]
  %s4 = scalar_lea.smem %s0, 2
  %s5 = sld [smem:[%s4]]
  %s6 = scalar_lea.smem %s0, 3
  %s7 = sld [smem:[%s6]]
  %s8 = scalar_lea.smem %s0, 4
  %s9 = sld [smem:[%s8]]
  %s10 = scalar_lea.smem %s0, 5
  %s11 = sld [smem:[%s10]]
  %s12 = scalar_lea.smem %s0, 6
  %s13 = sld [smem:[%s12]]
  %s14 = scalar_lea.smem %s0, 7
  %s15 = sld [smem:[%s14]]
  %s16 = scalar_lea.smem %s0, 8
  %s17 = sld [smem:[%s16]]
  %s18 = scalar_lea.smem %s0, 9
  %s19 = sld [smem:[%s18]]
  %s20 = scalar_lea.smem %s0, 10
  %s21 = sld [smem:[%s20]]
  %s22 = scalar_lea.smem %s0, 11
  %s23 = sld [smem:[%s22]]
  %s24 = scalar_lea.smem %s0, 12
  %s25 = sld [smem:[%s24]]
  %s26 = scalar_lea.smem %s0, 13
  %s27 = sld [smem:[%s26]]
  %s28 = scalar_lea.smem %s0, 14
  %s29 = sld [smem:[%s28]]
  %s30 = scalar_lea.smem %s0, 15
  %s31 = sld [smem:[%s30]]
  %s32 = scalar_lea.smem %s0, 16
  %s33 = sld [smem:[%s32]]
  %s34 = scalar_lea.smem %s0, 17
  %s35 = sld [smem:[%s34]]
  %s36 = scalar_lea.smem %s0, 18
  %s37 = sld [smem:[%s36]]
  %s38 = scalar_lea.smem %s0, 19
  %s39 = sld [smem:[%s38]]
  %s40 = scalar_lea.smem %s0, 20
  %s41 = sld [smem:[%s40]]
  %s42 = scalar_lea.smem %s0, 21
  %s43 = sld [smem:[%s42]]
  %s44 = scalar_lea.smem %s0, 22
  %s45 = sld [smem:[%s44]]
  %s46 = scalar_lea.smem %s0, 23
  %s47 = sld [smem:[%s46]]
  %s48 = scalar_lea.smem %s0, 24
  %s49 = sld [smem:[%s48]]
  %s50 = scalar_lea.smem %s0, 25
  %s51 = sld [smem:[%s50]]
  %s52 = scalar_lea.smem %s0, 26
  %s53 = sld [smem:[%s52]]
  %s54 = scalar_lea.smem %s0, 27
  %s55 = sld [smem:[%s54]]
  %s56 = scalar_lea.smem %s0, 28
  %s57 = sld [smem:[%s56]]
  %s58 = scalar_lea.smem %s0, 29
  %s59 = sld [smem:[%s58]]
  %s60 = scalar_lea.smem %s0, 30
  %s61 = sld [smem:[%s60]]
  %s62 = scalar_lea.smem %s0, 31
  %s63 = sld [smem:[%s62]]
  %s64 = scalar_lea.smem %s0, 32
  %s65 = sld [smem:[%s64]]
  %s66 = sld [smem:[#allocation0]]
  $region138: #{rnn_model_forward.1} parent=0
    _
  %s68 = ssub.s32 1, %s66
  %s69 = scalar_select 0, %s68, %s66
  %v70 = vstv %s63
  %71 = vst [vmem:[#allocation5] sm:$0x1] %v70
  // Predicated region
  $region2: #{rnn_model_forward.1} parent=0 // pred_check
    _
  $region3: #{rnn_model_forward.1} parent=0 // pred_check_branch
    %73 = sbr.rel (0) target = $region5
  $region4: #{rnn_model_forward.1} parent=0 // pred_region
    _
  $region5: #{rnn_model_forward.1} parent=0 // pred_fallthru
    _
  // Predicated region
  $region6: #{rnn_model_forward.1} parent=0 // pred_check
    _
  $region7: #{rnn_model_forward.1} parent=0 // pred_check_branch
    %75 = sbr.rel (0) target = $region9
  $region8: #{rnn_model_forward.1} parent=0 // pred_region
    _
  $region9: #{rnn_model_forward.1} parent=0 // pred_fallthru
    _
  // Predicated region
  $region10: #{rnn_model_forward.1} parent=0 // pred_check
    _
  $region11: #{rnn_model_forward.1} parent=0 // pred_check_branch
    %77 = sbr.rel (0) target = $region13
  $region12: #{rnn_model_forward.1} parent=0 // pred_region
    _
  $region13: #{rnn_model_forward.1} parent=0 // pred_fallthru
    _
  // Predicated region
  $region14: #{rnn_model_forward.1} parent=0 // pred_check
    _
  $region15: #{rnn_model_forward.1} parent=0 // pred_check_branch
    %79 = sbr.rel (0) target = $region17
  $region16: #{rnn_model_forward.1} parent=0 // pred_region
    _
  $region17: #{rnn_model_forward.1} parent=0 // pred_fallthru
    _
  // Predicated region
  $region18: #{rnn_model_forward.1} parent=0 // pred_check
    _
  $region19: #{rnn_model_forward.1} parent=0 // pred_check_branch
    %81 = sbr.rel (0) target = $region21
  $region20: #{rnn_model_forward.1} parent=0 // pred_region
    _
  $region21: #{rnn_model_forward.1} parent=0 // pred_fallthru
    _
  // Predicated region
  $region22: #{rnn_model_forward.1} parent=0 // pred_check
    _
  $region23: #{rnn_model_forward.1} parent=0 // pred_check_branch
    %83 = sbr.rel (0) target = $region25
  $region24: #{rnn_model_forward.1} parent=0 // pred_region
    _
  $region25: #{rnn_model_forward.1} parent=0 // pred_fallthru
    _
  // Predicated region
  $region26: #{rnn_model_forward.1} parent=0 // pred_check
    _
  $region27: #{rnn_model_forward.1} parent=0 // pred_check_branch
    %85 = sbr.rel (0) target = $region29
  $region28: #{rnn_model_forward.1} parent=0 // pred_region
    _
  $region29: #{rnn_model_forward.1} parent=0 // pred_fallthru
    _
  // Predicated region
  $region30: #{rnn_model_forward.1} parent=0 // pred_check
    _
  $region31: #{rnn_model_forward.1} parent=0 // pred_check_branch
    %87 = sbr.rel (0) target = $region33
  $region32: #{rnn_model_forward.1} parent=0 // pred_region
    _
  $region33: #{rnn_model_forward.1} parent=0 // pred_fallthru
    _
  // Predicated region
  $region34: #{rnn_model_forward.1} parent=0 // pred_check
    _
  $region35: #{rnn_model_forward.1} parent=0 // pred_check_branch
    %89 = sbr.rel (0) target = $region37
  $region36: #{rnn_model_forward.1} parent=0 // pred_region
    _
  $region37: #{rnn_model_forward.1} parent=0 // pred_fallthru
    _
  // Predicated region
  $region38: #{rnn_model_forward.1} parent=0 // pred_check
    _
  $region39: #{rnn_model_forward.1} parent=0 // pred_check_branch
    %91 = sbr.rel (0) target = $region41
  $region40: #{rnn_model_forward.1} parent=0 // pred_region
    _
  $region41: #{rnn_model_forward.1} parent=0 // pred_fallthru
    _
  // Predicated region
  $region42: #{rnn_model_forward.1} parent=0 // pred_check
    _
  $region43: #{rnn_model_forward.1} parent=0 // pred_check_branch
    %93 = sbr.rel (0) target = $region45
  $region44: #{rnn_model_forward.1} parent=0 // pred_region
    _
  $region45: #{rnn_model_forward.1} parent=0 // pred_fallthru
    _
  // Predicated region
  $region46: #{rnn_model_forward.1} parent=0 // pred_check
    _
  $region47: #{rnn_model_forward.1} parent=0 // pred_check_branch
    %95 = sbr.rel (0) target = $region49
  $region48: #{rnn_model_forward.1} parent=0 // pred_region
    _
  $region49: #{rnn_model_forward.1} parent=0 // pred_fallthru
    _
  // Predicated region
  $region50: #{rnn_model_forward.1} parent=0 // pred_check
    _
  $region51: #{rnn_model_forward.1} parent=0 // pred_check_branch
    %97 = sbr.rel (0) target = $region53
  $region52: #{rnn_model_forward.1} parent=0 // pred_region
    _
  $region53: #{rnn_model_forward.1} parent=0 // pred_fallthru
    _
  // Predicated region
  $region54: #{rnn_model_forward.1} parent=0 // pred_check
    _
  $region55: #{rnn_model_forward.1} parent=0 // pred_check_branch
    %99 = sbr.rel (0) target = $region57
  $region56: #{rnn_model_forward.1} parent=0 // pred_region
    _
  $region57: #{rnn_model_forward.1} parent=0 // pred_fallthru
    _
  // Predicated region
  $region58: #{rnn_model_forward.1} parent=0 // pred_check
    _
  $region59: #{rnn_model_forward.1} parent=0 // pred_check_branch
    %101 = sbr.rel (0) target = $region61
  $region60: #{rnn_model_forward.1} parent=0 // pred_region
    _
  $region61: #{rnn_model_forward.1} parent=0 // pred_fallthru
    _
  // Predicated region
  $region62: #{rnn_model_forward.1} parent=0 // pred_check
    _
  $region63: #{rnn_model_forward.1} parent=0 // pred_check_branch
    %103 = sbr.rel (0) target = $region65
  $region64: #{rnn_model_forward.1} parent=0 // pred_region
    _
  $region65: #{rnn_model_forward.1} parent=0 // pred_fallthru
    _
  // Predicated region
  $region66: #{rnn_model_forward.1} parent=0 // pred_check
    _
  $region67: #{rnn_model_forward.1} parent=0 // pred_check_branch
    %105 = sbr.rel (0) target = $region69
  $region68: #{rnn_model_forward.1} parent=0 // pred_region
    _
  $region69: #{rnn_model_forward.1} parent=0 // pred_fallthru
    _
  // Predicated region
  $region70: #{rnn_model_forward.1} parent=0 // pred_check
    _
  $region71: #{rnn_model_forward.1} parent=0 // pred_check_branch
    %107 = sbr.rel (0) target = $region73
  $region72: #{rnn_model_forward.1} parent=0 // pred_region
    _
  $region73: #{rnn_model_forward.1} parent=0 // pred_fallthru
    _
  // Predicated region
  $region74: #{rnn_model_forward.1} parent=0 // pred_check
    _
  $region75: #{rnn_model_forward.1} parent=0 // pred_check_branch
    %109 = sbr.rel (0) target = $region77
  $region76: #{rnn_model_forward.1} parent=0 // pred_region
    _
  $region77: #{rnn_model_forward.1} parent=0 // pred_fallthru
    _
  // Predicated region
  $region78: #{rnn_model_forward.1} parent=0 // pred_check
    _
  $region79: #{rnn_model_forward.1} parent=0 // pred_check_branch
    %111 = sbr.rel (0) target = $region81
  $region80: #{rnn_model_forward.1} parent=0 // pred_region
    _
  $region81: #{rnn_model_forward.1} parent=0 // pred_fallthru
    _
  // Predicated region
  $region82: #{rnn_model_forward.1} parent=0 // pred_check
    _
  $region83: #{rnn_model_forward.1} parent=0 // pred_check_branch
    %113 = sbr.rel (0) target = $region85
  $region84: #{rnn_model_forward.1} parent=0 // pred_region
    _
  $region85: #{rnn_model_forward.1} parent=0 // pred_fallthru
    _
  // Predicated region
  $region86: #{rnn_model_forward.1} parent=0 // pred_check
    _
  $region87: #{rnn_model_forward.1} parent=0 // pred_check_branch
    %115 = sbr.rel (0) target = $region89
  $region88: #{rnn_model_forward.1} parent=0 // pred_region
    _
  $region89: #{rnn_model_forward.1} parent=0 // pred_fallthru
    _
  // Predicated region
  $region90: #{rnn_model_forward.1} parent=0 // pred_check
    _
  $region91: #{rnn_model_forward.1} parent=0 // pred_check_branch
    %117 = sbr.rel (0) target = $region93
  $region92: #{rnn_model_forward.1} parent=0 // pred_region
    _
  $region93: #{rnn_model_forward.1} parent=0 // pred_fallthru
    _
  // Predicated region
  $region94: #{rnn_model_forward.1} parent=0 // pred_check
    _
  $region95: #{rnn_model_forward.1} parent=0 // pred_check_branch
    %119 = sbr.rel (0) target = $region97
  $region96: #{rnn_model_forward.1} parent=0 // pred_region
    _
  $region97: #{rnn_model_forward.1} parent=0 // pred_fallthru
    _
  // Predicated region
  $region98: #{rnn_model_forward.1} parent=0 // pred_check
    _
  $region99: #{rnn_model_forward.1} parent=0 // pred_check_branch
    %121 = sbr.rel (0) target = $region101
  $region100: #{rnn_model_forward.1} parent=0 // pred_region
    _
  $region101: #{rnn_model_forward.1} parent=0 // pred_fallthru
    _
  // Predicated region
  $region102: #{rnn_model_forward.1} parent=0 // pred_check
    _
  $region103: #{rnn_model_forward.1} parent=0 // pred_check_branch
    %123 = sbr.rel (0) target = $region105
  $region104: #{rnn_model_forward.1} parent=0 // pred_region
    _
  $region105: #{rnn_model_forward.1} parent=0 // pred_fallthru
    _
  // Predicated region
  $region106: #{rnn_model_forward.1} parent=0 // pred_check
    _
  $region107: #{rnn_model_forward.1} parent=0 // pred_check_branch
    %125 = sbr.rel (0) target = $region109
  $region108: #{rnn_model_forward.1} parent=0 // pred_region
    _
  $region109: #{rnn_model_forward.1} parent=0 // pred_fallthru
    _
  // Predicated region
  $region110: #{rnn_model_forward.1} parent=0 // pred_check
    _
  $region111: #{rnn_model_forward.1} parent=0 // pred_check_branch
    %127 = sbr.rel (0) target = $region113
  $region112: #{rnn_model_forward.1} parent=0 // pred_region
    _
  $region113: #{rnn_model_forward.1} parent=0 // pred_fallthru
    _
  // Predicated region
  $region114: #{rnn_model_forward.1} parent=0 // pred_check
    _
  $region115: #{rnn_model_forward.1} parent=0 // pred_check_branch
    %129 = sbr.rel (0) target = $region117
  $region116: #{rnn_model_forward.1} parent=0 // pred_region
    _
  $region117: #{rnn_model_forward.1} parent=0 // pred_fallthru
    _
  // Predicated region
  $region118: #{rnn_model_forward.1} parent=0 // pred_check
    _
  $region119: #{rnn_model_forward.1} parent=0 // pred_check_branch
    %131 = sbr.rel (0) target = $region121
  $region120: #{rnn_model_forward.1} parent=0 // pred_region
    _
  $region121: #{rnn_model_forward.1} parent=0 // pred_fallthru
    _
  // Predicated region
  $region122: #{rnn_model_forward.1} parent=0 // pred_check
    _
  $region123: #{rnn_model_forward.1} parent=0 // pred_check_branch
    %133 = sbr.rel (0) target = $region125
  $region124: #{rnn_model_forward.1} parent=0 // pred_region
    _
  $region125: #{rnn_model_forward.1} parent=0 // pred_fallthru
    _
  // Predicated region
  $region126: #{rnn_model_forward.1} parent=0 // pred_check
    _
  $region127: #{rnn_model_forward.1} parent=0 // pred_check_branch
    %135 = sbr.rel (0) target = $region129
  $region128: #{rnn_model_forward.1} parent=0 // pred_region
    _
  $region129: #{rnn_model_forward.1} parent=0 // pred_fallthru
    _
  %v137 = vld [vmem:[%s1] sm:$0xff]
  %v138 = vld [vmem:[%s1 + $0x8] sm:$0xff]
  %v139 = vld [vmem:[%s1 + $0x10] sm:$0xff]
  %v140 = vld [vmem:[%s1 + $0x18] sm:$0xff]
  %v141 = vld [vmem:[%s3] sm:$0xff]
  %v142 = vld [vmem:[%s3 + $0x8] sm:$0xff]
  %v143 = vld [vmem:[%s3 + $0x10] sm:$0xff]
  %v144 = vld [vmem:[%s3 + $0x18] sm:$0xff]
  %v145 = vld [vmem:[%s9] sm:$0x1]
  %v147 = vlaneseq
  %v148 = vshrl.u32 %v147, 7
  %v149 = vsub.s32 0, %v148
  %v150 = vrot.slane %v145, %v149
  %v152 = vadd.f32 %v150, 0.0
  %v153 = vrot.slane %v137, 4
  %v154 = vrot.slane %v138, 4
  %v155 = vrot.slane %v139, 4
  %v156 = vrot.slane %v140, 4
  %v157 = vlaneseq
  %v158 = vshrl.u32 %v157, 7
  %vm159 = vcmp.lt.s32.totalorder %v158, 4
  %v160 = vsel %vm159, %v155, %v156
  %v161 = vsel %vm159, %v154, %v155
  %v162 = vsel %vm159, %v153, %v154
  %v163 = vsel %vm159, %v156, %v153
  %v164 = vpack.c.bf16 %v162, %v163
  %v165 = vpack.c.bf16 %v160, %v161
  %v166 = vld [vmem:[%s7] sm:$0x3]
  %vm167 = vcmask 31744
  %v169 = vsel %vm167, %v164, 0
  %v172 = vsel %vm167, %v165, 0
  %vm174 = vcmask 1041408
  %v176 = vsel %vm174, %v166, 0
  %178 = vmatprep.subr.bf16.mxu0 0
  %179 = vmatpush1.bf16.msra.mxu0 0
  %180 = vmatprep.subr.bf16.mxu0 0
  %181 = vmatpush1.bf16.msra.mxu0 0
  %182 = vmatprep.subr.bf16.mxu0 0
  %183 = vmatpush1.bf16.msra.mxu0 0
  %184 = vmatprep.subr.bf16.mxu0 0
  %185 = vmatpush1.bf16.msra.mxu0 0
  %186 = vmatprep.subr.bf16.mxu0 0
  %187 = vmatpush1.bf16.msra.mxu0 0
  %188 = vmatprep.subr.bf16.mxu0 0
  %189 = vmatpush1.bf16.msra.mxu0 0
  %190 = vmatprep.subr.bf16.mxu0 0
  %191 = vmatpush1.bf16.msra.mxu0 0
  %192 = vmatprep.subr.bf16.mxu0 0
  %193 = vmatpush1.bf16.msra.mxu0 %v176
  %194 = vmatprep.subr.bf16.mxu0 0
  %195 = vmatpush2.bf16.msra.mxu0 0
  %196 = vmatprep.subr.bf16.mxu0 0
  %197 = vmatpush2.bf16.msra.mxu0 0
  %198 = vmatprep.subr.bf16.mxu0 0
  %199 = vmatpush2.bf16.msra.mxu0 0
  %200 = vmatprep.subr.bf16.mxu0 0
  %201 = vmatpush2.bf16.msra.mxu0 0
  %202 = vmatprep.subr.bf16.mxu0 0
  %203 = vmatpush2.bf16.msra.mxu0 0
  %204 = vmatprep.subr.bf16.mxu0 0
  %205 = vmatpush2.bf16.msra.mxu0 0
  %206 = vmatprep.subr.bf16.mxu0 0
  %207 = vmatpush2.bf16.msra.mxu0 0
  %208 = vmatprep.subr.bf16.mxu0 0
  %209 = vmatpush2.bf16.msra.mxu0 0
  %210 = vmatprep.mubr.bf16.mxu0 0
  %211 = vmatmul.mubr.bf16.gmra.mxu0 %v169
  %v212 = vpop.f32.mrf.mxu0
  %v213 = vadd.f32 0.0, %v212
  %v214 = vpop.f32.mrf.mxu0
  %v215 = vpop.f32.mrf.mxu0
  %v216 = vadd.f32 0.0, %v215
  %v217 = vpop.f32.mrf.mxu0
  %218 = vmatprep.mubr.bf16.mxu0 0
  %219 = vmatmul.mubr.bf16.gmra.mxu0 %v172
  %v220 = vpop.f32.mrf.mxu0
  %v221 = vadd.f32 0.0, %v220
  %v222 = vpop.f32.mrf.mxu0
  %v223 = vpop.f32.mrf.mxu0
  %v224 = vadd.f32 0.0, %v223
  %v225 = vpop.f32.mrf.mxu0
  %226 = vdwg.mxu0
  %v227 = vadd.f32 %v152, %v213
  %v228 = vadd.f32 %v152, %v216
  %v229 = vadd.f32 %v152, %v221
  %v230 = vadd.f32 %v152, %v224
  %v231 = vrot.slane %v137, 5
  %v232 = vrot.slane %v138, 5
  %v233 = vrot.slane %v139, 5
  %v234 = vrot.slane %v140, 5
  %vm235 = vcmp.lt.s32.totalorder %v158, 3
  %v236 = vsel %vm235, %v233, %v234
  %v237 = vsel %vm235, %v232, %v233
  %v238 = vsel %vm235, %v231, %v232
  %v239 = vsel %vm235, %v234, %v231
  %v240 = vpack.c.bf16 %v238, %v239
  %v241 = vpack.c.bf16 %v236, %v237
  %s242 = scalar_lea.vmem %s7, 2
  %v243 = vld [vmem:[%s242] sm:$0x3]
  %v245 = vsel %vm167, %v240, 0
  %v248 = vsel %vm167, %v241, 0
  %v251 = vsel %vm174, %v243, 0
  %253 = vmatprep.subr.bf16.mxu0 0
  %254 = vmatpush1.bf16.msra.mxu0 0
  %255 = vmatprep.subr.bf16.mxu0 0
  %256 = vmatpush1.bf16.msra.mxu0 0
  %257 = vmatprep.subr.bf16.mxu0 0
  %258 = vmatpush1.bf16.msra.mxu0 0
  %259 = vmatprep.subr.bf16.mxu0 0
  %260 = vmatpush1.bf16.msra.mxu0 0
  %261 = vmatprep.subr.bf16.mxu0 0
  %262 = vmatpush1.bf16.msra.mxu0 0
  %263 = vmatprep.subr.bf16.mxu0 0
  %264 = vmatpush1.bf16.msra.mxu0 0
  %265 = vmatprep.subr.bf16.mxu0 0
  %266 = vmatpush1.bf16.msra.mxu0 0
  %267 = vmatprep.subr.bf16.mxu0 0
  %268 = vmatpush1.bf16.msra.mxu0 %v251
  %269 = vmatprep.subr.bf16.mxu0 0
  %270 = vmatpush2.bf16.msra.mxu0 0
  %271 = vmatprep.subr.bf16.mxu0 0
  %272 = vmatpush2.bf16.msra.mxu0 0
  %273 = vmatprep.subr.bf16.mxu0 0
  %274 = vmatpush2.bf16.msra.mxu0 0
  %275 = vmatprep.subr.bf16.mxu0 0
  %276 = vmatpush2.bf16.msra.mxu0 0
  %277 = vmatprep.subr.bf16.mxu0 0
  %278 = vmatpush2.bf16.msra.mxu0 0
  %279 = vmatprep.subr.bf16.mxu0 0
  %280 = vmatpush2.bf16.msra.mxu0 0
  %281 = vmatprep.subr.bf16.mxu0 0
  %282 = vmatpush2.bf16.msra.mxu0 0
  %283 = vmatprep.subr.bf16.mxu0 0
  %284 = vmatpush2.bf16.msra.mxu0 0
  %285 = vmatprep.mubr.bf16.mxu0 0
  %286 = vmatmul.mubr.bf16.gmra.mxu0 %v245
  %v287 = vpop.f32.mrf.mxu0
  %v288 = vadd.f32 0.0, %v287
  %v289 = vpop.f32.mrf.mxu0
  %v290 = vpop.f32.mrf.mxu0
  %v291 = vadd.f32 0.0, %v290
  %v292 = vpop.f32.mrf.mxu0
  %293 = vmatprep.mubr.bf16.mxu0 0
  %294 = vmatmul.mubr.bf16.gmra.mxu0 %v248
  %v295 = vpop.f32.mrf.mxu0
  %v296 = vadd.f32 0.0, %v295
  %v297 = vpop.f32.mrf.mxu0
  %v298 = vpop.f32.mrf.mxu0
  %v299 = vadd.f32 0.0, %v298
  %v300 = vpop.f32.mrf.mxu0
  %301 = vdwg.mxu0
  %v302 = vadd.f32 %v227, %v288
  %v303 = vadd.f32 %v228, %v291
  %v304 = vadd.f32 %v229, %v296
  %v305 = vadd.f32 %v230, %v299
  %v306 = vrot.slane %v137, 6
  %v307 = vrot.slane %v138, 6
  %v308 = vrot.slane %v139, 6
  %v309 = vrot.slane %v140, 6
  %vm310 = vcmp.lt.s32.totalorder %v158, 2
  %v311 = vsel %vm310, %v308, %v309
  %v312 = vsel %vm310, %v307, %v308
  %v313 = vsel %vm310, %v306, %v307
  %v314 = vsel %vm310, %v309, %v306
  %v315 = vpack.c.bf16 %v313, %v314
  %v316 = vpack.c.bf16 %v311, %v312
  %s317 = scalar_lea.vmem %s7, 4
  %v318 = vld [vmem:[%s317] sm:$0x3]
  %v320 = vsel %vm167, %v315, 0
  %v323 = vsel %vm167, %v316, 0
  %v326 = vsel %vm174, %v318, 0
  %328 = vmatprep.subr.bf16.mxu0 0
  %329 = vmatpush1.bf16.msra.mxu0 0
  %330 = vmatprep.subr.bf16.mxu0 0
  %331 = vmatpush1.bf16.msra.mxu0 0
  %332 = vmatprep.subr.bf16.mxu0 0
  %333 = vmatpush1.bf16.msra.mxu0 0
  %334 = vmatprep.subr.bf16.mxu0 0
  %335 = vmatpush1.bf16.msra.mxu0 0
  %336 = vmatprep.subr.bf16.mxu0 0
  %337 = vmatpush1.bf16.msra.mxu0 0
  %338 = vmatprep.subr.bf16.mxu0 0
  %339 = vmatpush1.bf16.msra.mxu0 0
  %340 = vmatprep.subr.bf16.mxu0 0
  %341 = vmatpush1.bf16.msra.mxu0 0
  %342 = vmatprep.subr.bf16.mxu0 0
  %343 = vmatpush1.bf16.msra.mxu0 %v326
  %344 = vmatprep.subr.bf16.mxu0 0
  %345 = vmatpush2.bf16.msra.mxu0 0
  %346 = vmatprep.subr.bf16.mxu0 0
  %347 = vmatpush2.bf16.msra.mxu0 0
  %348 = vmatprep.subr.bf16.mxu0 0
  %349 = vmatpush2.bf16.msra.mxu0 0
  %350 = vmatprep.subr.bf16.mxu0 0
  %351 = vmatpush2.bf16.msra.mxu0 0
  %352 = vmatprep.subr.bf16.mxu0 0
  %353 = vmatpush2.bf16.msra.mxu0 0
  %354 = vmatprep.subr.bf16.mxu0 0
  %355 = vmatpush2.bf16.msra.mxu0 0
  %356 = vmatprep.subr.bf16.mxu0 0
  %357 = vmatpush2.bf16.msra.mxu0 0
  %358 = vmatprep.subr.bf16.mxu0 0
  %359 = vmatpush2.bf16.msra.mxu0 0
  %360 = vmatprep.mubr.bf16.mxu0 0
  %361 = vmatmul.mubr.bf16.gmra.mxu0 %v320
  %v362 = vpop.f32.mrf.mxu0
  %v363 = vadd.f32 0.0, %v362
  %v364 = vpop.f32.mrf.mxu0
  %v365 = vpop.f32.mrf.mxu0
  %v366 = vadd.f32 0.0, %v365
  %v367 = vpop.f32.mrf.mxu0
  %368 = vmatprep.mubr.bf16.mxu0 0
  %369 = vmatmul.mubr.bf16.gmra.mxu0 %v323
  %v370 = vpop.f32.mrf.mxu0
  %v371 = vadd.f32 0.0, %v370
  %v372 = vpop.f32.mrf.mxu0
  %v373 = vpop.f32.mrf.mxu0
  %v374 = vadd.f32 0.0, %v373
  %v375 = vpop.f32.mrf.mxu0
  %376 = vdwg.mxu0
  %v377 = vadd.f32 %v302, %v363
  %v378 = vadd.f32 %v303, %v366
  %v379 = vadd.f32 %v304, %v371
  %v380 = vadd.f32 %v305, %v374
  %v381 = vrot.slane %v137, 7
  %v382 = vrot.slane %v138, 7
  %v383 = vrot.slane %v139, 7
  %v384 = vrot.slane %v140, 7
  %vm385 = vcmp.lt.s32.totalorder %v158, 1
  %v386 = vsel %vm385, %v383, %v384
  %v387 = vsel %vm385, %v382, %v383
  %v388 = vsel %vm385, %v381, %v382
  %v389 = vsel %vm385, %v384, %v381
  %v390 = vpack.c.bf16 %v388, %v389
  %v391 = vpack.c.bf16 %v386, %v387
  %s392 = scalar_lea.vmem %s7, 6
  %v393 = vld [vmem:[%s392] sm:$0x3]
  %v395 = vsel %vm167, %v390, 0
  %v398 = vsel %vm167, %v391, 0
  %v401 = vsel %vm174, %v393, 0
  %403 = vmatprep.subr.bf16.mxu0 0
  %404 = vmatpush1.bf16.msra.mxu0 0
  %405 = vmatprep.subr.bf16.mxu0 0
  %406 = vmatpush1.bf16.msra.mxu0 0
  %407 = vmatprep.subr.bf16.mxu0 0
  %408 = vmatpush1.bf16.msra.mxu0 0
  %409 = vmatprep.subr.bf16.mxu0 0
  %410 = vmatpush1.bf16.msra.mxu0 0
  %411 = vmatprep.subr.bf16.mxu0 0
  %412 = vmatpush1.bf16.msra.mxu0 0
  %413 = vmatprep.subr.bf16.mxu0 0
  %414 = vmatpush1.bf16.msra.mxu0 0
  %415 = vmatprep.subr.bf16.mxu0 0
  %416 = vmatpush1.bf16.msra.mxu0 0
  %417 = vmatprep.subr.bf16.mxu0 0
  %418 = vmatpush1.bf16.msra.mxu0 %v401
  %419 = vmatprep.subr.bf16.mxu0 0
  %420 = vmatpush2.bf16.msra.mxu0 0
  %421 = vmatprep.subr.bf16.mxu0 0
  %422 = vmatpush2.bf16.msra.mxu0 0
  %423 = vmatprep.subr.bf16.mxu0 0
  %424 = vmatpush2.bf16.msra.mxu0 0
  %425 = vmatprep.subr.bf16.mxu0 0
  %426 = vmatpush2.bf16.msra.mxu0 0
  %427 = vmatprep.subr.bf16.mxu0 0
  %428 = vmatpush2.bf16.msra.mxu0 0
  %429 = vmatprep.subr.bf16.mxu0 0
  %430 = vmatpush2.bf16.msra.mxu0 0
  %431 = vmatprep.subr.bf16.mxu0 0
  %432 = vmatpush2.bf16.msra.mxu0 0
  %433 = vmatprep.subr.bf16.mxu0 0
  %434 = vmatpush2.bf16.msra.mxu0 0
  %435 = vmatprep.mubr.bf16.mxu0 0
  %436 = vmatmul.mubr.bf16.gmra.mxu0 %v395
  %v437 = vpop.f32.mrf.mxu0
  %v438 = vadd.f32 0.0, %v437
  %v439 = vpop.f32.mrf.mxu0
  %v440 = vpop.f32.mrf.mxu0
  %v441 = vadd.f32 0.0, %v440
  %v442 = vpop.f32.mrf.mxu0
  %443 = vmatprep.mubr.bf16.mxu0 0
  %444 = vmatmul.mubr.bf16.gmra.mxu0 %v398
  %v445 = vpop.f32.mrf.mxu0
  %v446 = vadd.f32 0.0, %v445
  %v447 = vpop.f32.mrf.mxu0
  %v448 = vpop.f32.mrf.mxu0
  %v449 = vadd.f32 0.0, %v448
  %v450 = vpop.f32.mrf.mxu0
  %451 = vdwg.mxu0
  %v452 = vadd.f32 %v377, %v438
  %v453 = vadd.f32 %v378, %v441
  %v454 = vadd.f32 %v379, %v446
  %v455 = vadd.f32 %v380, %v449
  %v456 = vpack.c.bf16 %v138, %v137
  %v457 = vpack.c.bf16 %v140, %v139
  %s458 = scalar_lea.vmem %s7, 8
  %v459 = vld [vmem:[%s458] sm:$0x3]
  %v461 = vsel %vm167, %v456, 0
  %v464 = vsel %vm167, %v457, 0
  %v467 = vsel %vm174, %v459, 0
  %469 = vmatprep.subr.bf16.mxu0 0
  %470 = vmatpush1.bf16.msra.mxu0 0
  %471 = vmatprep.subr.bf16.mxu0 0
  %472 = vmatpush1.bf16.msra.mxu0 0
  %473 = vmatprep.subr.bf16.mxu0 0
  %474 = vmatpush1.bf16.msra.mxu0 0
  %475 = vmatprep.subr.bf16.mxu0 0
  %476 = vmatpush1.bf16.msra.mxu0 0
  %477 = vmatprep.subr.bf16.mxu0 0
  %478 = vmatpush1.bf16.msra.mxu0 0
  %479 = vmatprep.subr.bf16.mxu0 0
  %480 = vmatpush1.bf16.msra.mxu0 0
  %481 = vmatprep.subr.bf16.mxu0 0
  %482 = vmatpush1.bf16.msra.mxu0 0
  %483 = vmatprep.subr.bf16.mxu0 0
  %484 = vmatpush1.bf16.msra.mxu0 %v467
  %485 = vmatprep.subr.bf16.mxu0 0
  %486 = vmatpush2.bf16.msra.mxu0 0
  %487 = vmatprep.subr.bf16.mxu0 0
  %488 = vmatpush2.bf16.msra.mxu0 0
  %489 = vmatprep.subr.bf16.mxu0 0
  %490 = vmatpush2.bf16.msra.mxu0 0
  %491 = vmatprep.subr.bf16.mxu0 0
  %492 = vmatpush2.bf16.msra.mxu0 0
  %493 = vmatprep.subr.bf16.mxu0 0
  %494 = vmatpush2.bf16.msra.mxu0 0
  %495 = vmatprep.subr.bf16.mxu0 0
  %496 = vmatpush2.bf16.msra.mxu0 0
  %497 = vmatprep.subr.bf16.mxu0 0
  %498 = vmatpush2.bf16.msra.mxu0 0
  %499 = vmatprep.subr.bf16.mxu0 0
  %500 = vmatpush2.bf16.msra.mxu0 0
  %501 = vmatprep.mubr.bf16.mxu0 0
  %502 = vmatmul.mubr.bf16.gmra.mxu0 %v461
  %v503 = vpop.f32.mrf.mxu0
  %v504 = vadd.f32 0.0, %v503
  %v505 = vpop.f32.mrf.mxu0
  %v506 = vpop.f32.mrf.mxu0
  %v507 = vadd.f32 0.0, %v506
  %v508 = vpop.f32.mrf.mxu0
  %509 = vmatprep.mubr.bf16.mxu0 0
  %510 = vmatmul.mubr.bf16.gmra.mxu0 %v464
  %v511 = vpop.f32.mrf.mxu0
  %v512 = vadd.f32 0.0, %v511
  %v513 = vpop.f32.mrf.mxu0
  %v514 = vpop.f32.mrf.mxu0
  %v515 = vadd.f32 0.0, %v514
  %v516 = vpop.f32.mrf.mxu0
  %517 = vdwg.mxu0
  %v518 = vadd.f32 %v452, %v504
  %v519 = vadd.f32 %v453, %v507
  %v520 = vadd.f32 %v454, %v512
  %v521 = vadd.f32 %v455, %v515
  %523 = vset.pattern.permute.xlu0 0
  %524 = vperm.xlu0 %523, %v141
  %v525 = vpop.permute.xlu0 %524
  %528 = vset.pattern.permute.xlu0 0
  %529 = vperm.xlu0 %528, %v142
  %v530 = vpop.permute.xlu0 %529
  %533 = vset.pattern.permute.xlu0 0
  %534 = vperm.xlu0 %533, %v143
  %v535 = vpop.permute.xlu0 %534
  %538 = vset.pattern.permute.xlu0 0
  %539 = vperm.xlu0 %538, %v144
  %v540 = vpop.permute.xlu0 %539
  %v542 = vmul.f32 %v518, %v525
  %v543 = vmul.f32 %v519, %v530
  %v544 = vmul.f32 %v520, %v535
  %v545 = vmul.f32 %v521, %v540
  %vm546 = vcmask 261120
  %v547 = vsel %vm546, %v542, 0.0
  %v548 = vsel %vm546, %v543, 0.0
  %v549 = vadd.f32 %v547, %v548
  %v550 = vsel %vm546, %v544, 0.0
  %v551 = vadd.f32 %v549, %v550
  %v552 = vsel %vm546, %v545, 0.0
  %v553 = vadd.f32 %v551, %v552
  %v554 = vrot.slane %v553, 4
  %v555 = vadd.f32 %v553, %v554
  %v556 = vrot.slane %v555, 2
  %v557 = vadd.f32 %v555, %v556
  %v558 = vrot.slane %v557, 1
  %v559 = vadd.f32 %v557, %v558
  %v560 = vmul.f32 %v559, 0.041666668
  %v561 = vmul.f32 %v542, %v518
  %v562 = vmul.f32 %v543, %v519
  %v563 = vmul.f32 %v544, %v520
  %v564 = vmul.f32 %v545, %v521
  %v565 = vsel %vm546, %v561, 0.0
  %v566 = vsel %vm546, %v562, 0.0
  %v567 = vadd.f32 %v565, %v566
  %v568 = vsel %vm546, %v563, 0.0
  %v569 = vadd.f32 %v567, %v568
  %v570 = vsel %vm546, %v564, 0.0
  %v571 = vadd.f32 %v569, %v570
  %v572 = vrot.slane %v571, 4
  %v573 = vadd.f32 %v571, %v572
  %v574 = vrot.slane %v573, 2
  %v575 = vadd.f32 %v573, %v574
  %v576 = vrot.slane %v575, 1
  %v577 = vadd.f32 %v575, %v576
  %v578 = vmul.f32 %v577, 0.041666668
  %v579 = vmul.f32 %v560, %v560
  %v580 = vsub.f32 %v578, %v579
  %v581 = vsub.f32 %v518, %v560
  %v582 = vsub.f32 %v519, %v560
  %v583 = vsub.f32 %v520, %v560
  %v584 = vsub.f32 %v521, %v560
  %v585 = vadd.f32 %v580, 1e-05
  %v586 = vrsqrt.pop %v585
  %v587 = vmul.f32 %v581, %v586
  %v588 = vmul.f32 %v582, %v586
  %v589 = vmul.f32 %v583, %v586
  %v590 = vmul.f32 %v584, %v586
  %v591 = vld [vmem:[%s11] sm:$0x1]
  %v593 = vlaneseq
  %v594 = vshrl.u32 %v593, 7
  %v595 = vsub.s32 0, %v594
  %v596 = vrot.slane %v591, %v595
  %v598 = vmul.f32 %v587, %v596
  %v599 = vmul.f32 %v588, %v596
  %v600 = vmul.f32 %v589, %v596
  %v601 = vmul.f32 %v590, %v596
  %v602 = vld [vmem:[%s13] sm:$0x1]
  %v604 = vlaneseq
  %v605 = vshrl.u32 %v604, 7
  %v606 = vsub.s32 0, %v605
  %v607 = vrot.slane %v602, %v606
  %v609 = vadd.f32 %v598, %v607
  %v610 = vadd.f32 %v599, %v607
  %v611 = vadd.f32 %v600, %v607
  %v612 = vadd.f32 %v601, %v607
  %v613 = vxor.u32 %v609, 2147483648
  %v614 = vxor.u32 %v610, 2147483648
  %v615 = vxor.u32 %v611, 2147483648
  %v616 = vxor.u32 %v612, 2147483648
  %v617 = vmul.f32 %v613, 1.442695
  %v618 = vpow.pop %v617
  %v619 = vmul.f32 %v614, 1.442695
  %v620 = vpow.pop %v619
  %v621 = vmul.f32 %v615, 1.442695
  %v622 = vpow.pop %v621
  %v623 = vmul.f32 %v616, 1.442695
  %v624 = vpow.pop %v623
  %v625 = vadd.f32 %v618, 1.0
  %v626 = vadd.f32 %v620, 1.0
  %v627 = vadd.f32 %v622, 1.0
  %v628 = vadd.f32 %v624, 1.0
  %v629 = vrcp.pop %v625
  %v630 = vmul.f32 1.0, %v629
  %v631 = vrcp.pop %v626
  %v632 = vmul.f32 1.0, %v631
  %v633 = vrcp.pop %v627
  %v634 = vmul.f32 1.0, %v633
  %v635 = vrcp.pop %v628
  %v636 = vmul.f32 1.0, %v635
  %v637 = vmul.f32 %v609, %v630
  %v638 = vmul.f32 %v610, %v632
  %v639 = vmul.f32 %v611, %v634
  %v640 = vmul.f32 %v612, %v636
  %v641 = vmul.f32 %v637, %v525
  %v642 = vmul.f32 %v638, %v530
  %v643 = vmul.f32 %v639, %v535
  %v644 = vmul.f32 %v640, %v540
  %v645 = vld [vmem:[%s17] sm:$0x1]
  %v647 = vlaneseq
  %v648 = vshrl.u32 %v647, 7
  %v649 = vsub.s32 0, %v648
  %v650 = vrot.slane %v645, %v649
  %v652 = vadd.f32 %v650, 0.0
  %v653 = vrot.slane %v641, 4
  %v654 = vrot.slane %v642, 4
  %v655 = vrot.slane %v643, 4
  %v656 = vrot.slane %v644, 4
  %v657 = vsel %vm159, %v655, %v656
  %v658 = vsel %vm159, %v654, %v655
  %v659 = vsel %vm159, %v653, %v654
  %v660 = vsel %vm159, %v656, %v653
  %v661 = vpack.c.bf16 %v659, %v660
  %v662 = vpack.c.bf16 %v657, %v658
  %v663 = vld [vmem:[%s15] sm:$0xf]
  %v664 = vld [vmem:[%s15 + $0x4] sm:$0xf]
  %v665 = vld [vmem:[%s15 + $0x8] sm:$0xf]
  %v666 = vld [vmem:[%s15 + $0xc] sm:$0xf]
  %v671 = vunpack.c.l.b16 %v663
  %v672 = vunpack.c.l.b16 %v664
  %v673 = vunpack.c.l.b16 %v665
  %v674 = vunpack.c.l.b16 %v666
  %v675 = vpack.c.b16 %v672, %v671
  %v676 = vpack.c.b16 %v674, %v673
  %v680 = vsel %vm546, %v661, 0
  %v683 = vsel %vm546, %v662, 0
  %685 = vmatprep.subr.bf16.mxu0 0
  %686 = vmatpush1.bf16.msra.mxu0 0
  %687 = vmatprep.subr.bf16.mxu0 0
  %688 = vmatpush1.bf16.msra.mxu0 0
  %689 = vmatprep.subr.bf16.mxu0 0
  %690 = vmatpush1.bf16.msra.mxu0 0
  %691 = vmatprep.subr.bf16.mxu0 0
  %692 = vmatpush1.bf16.msra.mxu0 0
  %693 = vmatprep.subr.bf16.mxu0 0
  %694 = vmatpush1.bf16.msra.mxu0 0
  %695 = vmatprep.subr.bf16.mxu0 0
  %696 = vmatpush1.bf16.msra.mxu0 0
  %697 = vmatprep.subr.bf16.mxu0 0
  %698 = vmatpush1.bf16.msra.mxu0 %v676
  %699 = vmatprep.subr.bf16.mxu0 0
  %700 = vmatpush1.bf16.msra.mxu0 %v675
  %701 = vmatprep.subr.bf16.mxu0 0
  %702 = vmatpush2.bf16.msra.mxu0 0
  %703 = vmatprep.subr.bf16.mxu0 0
  %704 = vmatpush2.bf16.msra.mxu0 0
  %705 = vmatprep.subr.bf16.mxu0 0
  %706 = vmatpush2.bf16.msra.mxu0 0
  %707 = vmatprep.subr.bf16.mxu0 0
  %708 = vmatpush2.bf16.msra.mxu0 0
  %709 = vmatprep.subr.bf16.mxu0 0
  %710 = vmatpush2.bf16.msra.mxu0 0
  %711 = vmatprep.subr.bf16.mxu0 0
  %712 = vmatpush2.bf16.msra.mxu0 0
  %713 = vmatprep.subr.bf16.mxu0 0
  %714 = vmatpush2.bf16.msra.mxu0 0
  %715 = vmatprep.subr.bf16.mxu0 0
  %716 = vmatpush2.bf16.msra.mxu0 0
  %717 = vmatprep.mubr.bf16.mxu0 0
  %718 = vmatmul.mubr.bf16.gmra.mxu0 %v680
  %v719 = vpop.f32.mrf.mxu0
  %v720 = vadd.f32 0.0, %v719
  %v721 = vpop.f32.mrf.mxu0
  %v722 = vpop.f32.mrf.mxu0
  %v723 = vadd.f32 0.0, %v722
  %v724 = vpop.f32.mrf.mxu0
  %725 = vmatprep.mubr.bf16.mxu0 0
  %726 = vmatmul.mubr.bf16.gmra.mxu0 %v683
  %v727 = vpop.f32.mrf.mxu0
  %v728 = vadd.f32 0.0, %v727
  %v729 = vpop.f32.mrf.mxu0
  %v730 = vpop.f32.mrf.mxu0
  %v731 = vadd.f32 0.0, %v730
  %v732 = vpop.f32.mrf.mxu0
  %733 = vdwg.mxu0
  %v734 = vadd.f32 %v652, %v720
  %v735 = vadd.f32 %v652, %v723
  %v736 = vadd.f32 %v652, %v728
  %v737 = vadd.f32 %v652, %v731
  %v738 = vrot.slane %v641, 5
  %v739 = vrot.slane %v642, 5
  %v740 = vrot.slane %v643, 5
  %v741 = vrot.slane %v644, 5
  %v742 = vsel %vm235, %v740, %v741
  %v743 = vsel %vm235, %v739, %v740
  %v744 = vsel %vm235, %v738, %v739
  %v745 = vsel %vm235, %v741, %v738
  %v746 = vpack.c.bf16 %v744, %v745
  %v747 = vpack.c.bf16 %v742, %v743
  %s748 = scalar_lea.vmem %s15, 16
  %v749 = vld [vmem:[%s748] sm:$0xf]
  %v750 = vld [vmem:[%s748 + $0x4] sm:$0xf]
  %v751 = vld [vmem:[%s748 + $0x8] sm:$0xf]
  %v752 = vld [vmem:[%s748 + $0xc] sm:$0xf]
  %v757 = vunpack.c.l.b16 %v749
  %v758 = vunpack.c.l.b16 %v750
  %v759 = vunpack.c.l.b16 %v751
  %v760 = vunpack.c.l.b16 %v752
  %v761 = vpack.c.b16 %v758, %v757
  %v762 = vpack.c.b16 %v760, %v759
  %v766 = vsel %vm546, %v746, 0
  %v769 = vsel %vm546, %v747, 0
  %771 = vmatprep.subr.bf16.mxu0 0
  %772 = vmatpush1.bf16.msra.mxu0 0
  %773 = vmatprep.subr.bf16.mxu0 0
  %774 = vmatpush1.bf16.msra.mxu0 0
  %775 = vmatprep.subr.bf16.mxu0 0
  %776 = vmatpush1.bf16.msra.mxu0 0
  %777 = vmatprep.subr.bf16.mxu0 0
  %778 = vmatpush1.bf16.msra.mxu0 0
  %779 = vmatprep.subr.bf16.mxu0 0
  %780 = vmatpush1.bf16.msra.mxu0 0
  %781 = vmatprep.subr.bf16.mxu0 0
  %782 = vmatpush1.bf16.msra.mxu0 0
  %783 = vmatprep.subr.bf16.mxu0 0
  %784 = vmatpush1.bf16.msra.mxu0 %v762
  %785 = vmatprep.subr.bf16.mxu0 0
  %786 = vmatpush1.bf16.msra.mxu0 %v761
  %787 = vmatprep.subr.bf16.mxu0 0
  %788 = vmatpush2.bf16.msra.mxu0 0
  %789 = vmatprep.subr.bf16.mxu0 0
  %790 = vmatpush2.bf16.msra.mxu0 0
  %791 = vmatprep.subr.bf16.mxu0 0
  %792 = vmatpush2.bf16.msra.mxu0 0
  %793 = vmatprep.subr.bf16.mxu0 0
  %794 = vmatpush2.bf16.msra.mxu0 0
  %795 = vmatprep.subr.bf16.mxu0 0
  %796 = vmatpush2.bf16.msra.mxu0 0
  %797 = vmatprep.subr.bf16.mxu0 0
  %798 = vmatpush2.bf16.msra.mxu0 0
  %799 = vmatprep.subr.bf16.mxu0 0
  %800 = vmatpush2.bf16.msra.mxu0 0
  %801 = vmatprep.subr.bf16.mxu0 0
  %802 = vmatpush2.bf16.msra.mxu0 0
  %803 = vmatprep.mubr.bf16.mxu0 0
  %804 = vmatmul.mubr.bf16.gmra.mxu0 %v766
  %v805 = vpop.f32.mrf.mxu0
  %v806 = vadd.f32 0.0, %v805
  %v807 = vpop.f32.mrf.mxu0
  %v808 = vpop.f32.mrf.mxu0
  %v809 = vadd.f32 0.0, %v808
  %v810 = vpop.f32.mrf.mxu0
  %811 = vmatprep.mubr.bf16.mxu0 0
  %812 = vmatmul.mubr.bf16.gmra.mxu0 %v769
  %v813 = vpop.f32.mrf.mxu0
  %v814 = vadd.f32 0.0, %v813
  %v815 = vpop.f32.mrf.mxu0
  %v816 = vpop.f32.mrf.mxu0
  %v817 = vadd.f32 0.0, %v816
  %v818 = vpop.f32.mrf.mxu0
  %819 = vdwg.mxu0
  %v820 = vadd.f32 %v734, %v806
  %v821 = vadd.f32 %v735, %v809
  %v822 = vadd.f32 %v736, %v814
  %v823 = vadd.f32 %v737, %v817
  %v824 = vrot.slane %v641, 6
  %v825 = vrot.slane %v642, 6
  %v826 = vrot.slane %v643, 6
  %v827 = vrot.slane %v644, 6
  %v828 = vsel %vm310, %v826, %v827
  %v829 = vsel %vm310, %v825, %v826
  %v830 = vsel %vm310, %v824, %v825
  %v831 = vsel %vm310, %v827, %v824
  %v832 = vpack.c.bf16 %v830, %v831
  %v833 = vpack.c.bf16 %v828, %v829
  %s834 = scalar_lea.vmem %s15, 32
  %v835 = vld [vmem:[%s834] sm:$0xf]
  %v836 = vld [vmem:[%s834 + $0x4] sm:$0xf]
  %v837 = vld [vmem:[%s834 + $0x8] sm:$0xf]
  %v838 = vld [vmem:[%s834 + $0xc] sm:$0xf]
  %v843 = vunpack.c.l.b16 %v835
  %v844 = vunpack.c.l.b16 %v836
  %v845 = vunpack.c.l.b16 %v837
  %v846 = vunpack.c.l.b16 %v838
  %v847 = vpack.c.b16 %v844, %v843
  %v848 = vpack.c.b16 %v846, %v845
  %v852 = vsel %vm546, %v832, 0
  %v855 = vsel %vm546, %v833, 0
  %857 = vmatprep.subr.bf16.mxu0 0
  %858 = vmatpush1.bf16.msra.mxu0 0
  %859 = vmatprep.subr.bf16.mxu0 0
  %860 = vmatpush1.bf16.msra.mxu0 0
  %861 = vmatprep.subr.bf16.mxu0 0
  %862 = vmatpush1.bf16.msra.mxu0 0
  %863 = vmatprep.subr.bf16.mxu0 0
  %864 = vmatpush1.bf16.msra.mxu0 0
  %865 = vmatprep.subr.bf16.mxu0 0
  %866 = vmatpush1.bf16.msra.mxu0 0
  %867 = vmatprep.subr.bf16.mxu0 0
  %868 = vmatpush1.bf16.msra.mxu0 0
  %869 = vmatprep.subr.bf16.mxu0 0
  %870 = vmatpush1.bf16.msra.mxu0 %v848
  %871 = vmatprep.subr.bf16.mxu0 0
  %872 = vmatpush1.bf16.msra.mxu0 %v847
  %873 = vmatprep.subr.bf16.mxu0 0
  %874 = vmatpush2.bf16.msra.mxu0 0
  %875 = vmatprep.subr.bf16.mxu0 0
  %876 = vmatpush2.bf16.msra.mxu0 0
  %877 = vmatprep.subr.bf16.mxu0 0
  %878 = vmatpush2.bf16.msra.mxu0 0
  %879 = vmatprep.subr.bf16.mxu0 0
  %880 = vmatpush2.bf16.msra.mxu0 0
  %881 = vmatprep.subr.bf16.mxu0 0
  %882 = vmatpush2.bf16.msra.mxu0 0
  %883 = vmatprep.subr.bf16.mxu0 0
  %884 = vmatpush2.bf16.msra.mxu0 0
  %885 = vmatprep.subr.bf16.mxu0 0
  %886 = vmatpush2.bf16.msra.mxu0 0
  %887 = vmatprep.subr.bf16.mxu0 0
  %888 = vmatpush2.bf16.msra.mxu0 0
  %889 = vmatprep.mubr.bf16.mxu0 0
  %890 = vmatmul.mubr.bf16.gmra.mxu0 %v852
  %v891 = vpop.f32.mrf.mxu0
  %v892 = vadd.f32 0.0, %v891
  %v893 = vpop.f32.mrf.mxu0
  %v894 = vpop.f32.mrf.mxu0
  %v895 = vadd.f32 0.0, %v894
  %v896 = vpop.f32.mrf.mxu0
  %897 = vmatprep.mubr.bf16.mxu0 0
  %898 = vmatmul.mubr.bf16.gmra.mxu0 %v855
  %v899 = vpop.f32.mrf.mxu0
  %v900 = vadd.f32 0.0, %v899
  %v901 = vpop.f32.mrf.mxu0
  %v902 = vpop.f32.mrf.mxu0
  %v903 = vadd.f32 0.0, %v902
  %v904 = vpop.f32.mrf.mxu0
  %905 = vdwg.mxu0
  %v906 = vadd.f32 %v820, %v892
  %v907 = vadd.f32 %v821, %v895
  %v908 = vadd.f32 %v822, %v900
  %v909 = vadd.f32 %v823, %v903
  %v910 = vrot.slane %v641, 7
  %v911 = vrot.slane %v642, 7
  %v912 = vrot.slane %v643, 7
  %v913 = vrot.slane %v644, 7
  %v914 = vsel %vm385, %v912, %v913
  %v915 = vsel %vm385, %v911, %v912
  %v916 = vsel %vm385, %v910, %v911
  %v917 = vsel %vm385, %v913, %v910
  %v918 = vpack.c.bf16 %v916, %v917
  %v919 = vpack.c.bf16 %v914, %v915
  %s920 = scalar_lea.vmem %s15, 48
  %v921 = vld [vmem:[%s920] sm:$0xf]
  %v922 = vld [vmem:[%s920 + $0x4] sm:$0xf]
  %v923 = vld [vmem:[%s920 + $0x8] sm:$0xf]
  %v924 = vld [vmem:[%s920 + $0xc] sm:$0xf]
  %v929 = vunpack.c.l.b16 %v921
  %v930 = vunpack.c.l.b16 %v922
  %v931 = vunpack.c.l.b16 %v923
  %v932 = vunpack.c.l.b16 %v924
  %v933 = vpack.c.b16 %v930, %v929
  %v934 = vpack.c.b16 %v932, %v931
  %v938 = vsel %vm546, %v918, 0
  %v941 = vsel %vm546, %v919, 0
  %943 = vmatprep.subr.bf16.mxu0 0
  %944 = vmatpush1.bf16.msra.mxu0 0
  %945 = vmatprep.subr.bf16.mxu0 0
  %946 = vmatpush1.bf16.msra.mxu0 0
  %947 = vmatprep.subr.bf16.mxu0 0
  %948 = vmatpush1.bf16.msra.mxu0 0
  %949 = vmatprep.subr.bf16.mxu0 0
  %950 = vmatpush1.bf16.msra.mxu0 0
  %951 = vmatprep.subr.bf16.mxu0 0
  %952 = vmatpush1.bf16.msra.mxu0 0
  %953 = vmatprep.subr.bf16.mxu0 0
  %954 = vmatpush1.bf16.msra.mxu0 0
  %955 = vmatprep.subr.bf16.mxu0 0
  %956 = vmatpush1.bf16.msra.mxu0 %v934
  %957 = vmatprep.subr.bf16.mxu0 0
  %958 = vmatpush1.bf16.msra.mxu0 %v933
  %959 = vmatprep.subr.bf16.mxu0 0
  %960 = vmatpush2.bf16.msra.mxu0 0
  %961 = vmatprep.subr.bf16.mxu0 0
  %962 = vmatpush2.bf16.msra.mxu0 0
  %963 = vmatprep.subr.bf16.mxu0 0
  %964 = vmatpush2.bf16.msra.mxu0 0
  %965 = vmatprep.subr.bf16.mxu0 0
  %966 = vmatpush2.bf16.msra.mxu0 0
  %967 = vmatprep.subr.bf16.mxu0 0
  %968 = vmatpush2.bf16.msra.mxu0 0
  %969 = vmatprep.subr.bf16.mxu0 0
  %970 = vmatpush2.bf16.msra.mxu0 0
  %971 = vmatprep.subr.bf16.mxu0 0
  %972 = vmatpush2.bf16.msra.mxu0 0
  %973 = vmatprep.subr.bf16.mxu0 0
  %974 = vmatpush2.bf16.msra.mxu0 0
  %975 = vmatprep.mubr.bf16.mxu0 0
  %976 = vmatmul.mubr.bf16.gmra.mxu0 %v938
  %v977 = vpop.f32.mrf.mxu0
  %v978 = vadd.f32 0.0, %v977
  %v979 = vpop.f32.mrf.mxu0
  %v980 = vpop.f32.mrf.mxu0
  %v981 = vadd.f32 0.0, %v980
  %v982 = vpop.f32.mrf.mxu0
  %983 = vmatprep.mubr.bf16.mxu0 0
  %984 = vmatmul.mubr.bf16.gmra.mxu0 %v941
  %v985 = vpop.f32.mrf.mxu0
  %v986 = vadd.f32 0.0, %v985
  %v987 = vpop.f32.mrf.mxu0
  %v988 = vpop.f32.mrf.mxu0
  %v989 = vadd.f32 0.0, %v988
  %v990 = vpop.f32.mrf.mxu0
  %991 = vdwg.mxu0
  %v992 = vadd.f32 %v906, %v978
  %v993 = vadd.f32 %v907, %v981
  %v994 = vadd.f32 %v908, %v986
  %v995 = vadd.f32 %v909, %v989
  %v996 = vpack.c.bf16 %v642, %v641
  %v997 = vpack.c.bf16 %v644, %v643
  %s998 = scalar_lea.vmem %s15, 64
  %v999 = vld [vmem:[%s998] sm:$0xf]
  %v1000 = vld [vmem:[%s998 + $0x4] sm:$0xf]
  %v1001 = vld [vmem:[%s998 + $0x8] sm:$0xf]
  %v1002 = vld [vmem:[%s998 + $0xc] sm:$0xf]
  %v1007 = vunpack.c.l.b16 %v999
  %v1008 = vunpack.c.l.b16 %v1000
  %v1009 = vunpack.c.l.b16 %v1001
  %v1010 = vunpack.c.l.b16 %v1002
  %v1011 = vpack.c.b16 %v1008, %v1007
  %v1012 = vpack.c.b16 %v1010, %v1009
  %v1016 = vsel %vm546, %v996, 0
  %v1019 = vsel %vm546, %v997, 0
  %1021 = vmatprep.subr.bf16.mxu0 0
  %1022 = vmatpush1.bf16.msra.mxu0 0
  %1023 = vmatprep.subr.bf16.mxu0 0
  %1024 = vmatpush1.bf16.msra.mxu0 0
  %1025 = vmatprep.subr.bf16.mxu0 0
  %1026 = vmatpush1.bf16.msra.mxu0 0
  %1027 = vmatprep.subr.bf16.mxu0 0
  %1028 = vmatpush1.bf16.msra.mxu0 0
  %1029 = vmatprep.subr.bf16.mxu0 0
  %1030 = vmatpush1.bf16.msra.mxu0 0
  %1031 = vmatprep.subr.bf16.mxu0 0
  %1032 = vmatpush1.bf16.msra.mxu0 0
  %1033 = vmatprep.subr.bf16.mxu0 0
  %1034 = vmatpush1.bf16.msra.mxu0 %v1012
  %1035 = vmatprep.subr.bf16.mxu0 0
  %1036 = vmatpush1.bf16.msra.mxu0 %v1011
  %1037 = vmatprep.subr.bf16.mxu0 0
  %1038 = vmatpush2.bf16.msra.mxu0 0
  %1039 = vmatprep.subr.bf16.mxu0 0
  %1040 = vmatpush2.bf16.msra.mxu0 0
  %1041 = vmatprep.subr.bf16.mxu0 0
  %1042 = vmatpush2.bf16.msra.mxu0 0
  %1043 = vmatprep.subr.bf16.mxu0 0
  %1044 = vmatpush2.bf16.msra.mxu0 0
  %1045 = vmatprep.subr.bf16.mxu0 0
  %1046 = vmatpush2.bf16.msra.mxu0 0
  %1047 = vmatprep.subr.bf16.mxu0 0
  %1048 = vmatpush2.bf16.msra.mxu0 0
  %1049 = vmatprep.subr.bf16.mxu0 0
  %1050 = vmatpush2.bf16.msra.mxu0 0
  %1051 = vmatprep.subr.bf16.mxu0 0
  %1052 = vmatpush2.bf16.msra.mxu0 0
  %1053 = vmatprep.mubr.bf16.mxu0 0
  %1054 = vmatmul.mubr.bf16.gmra.mxu0 %v1016
  %v1055 = vpop.f32.mrf.mxu0
  %v1056 = vadd.f32 0.0, %v1055
  %v1057 = vpop.f32.mrf.mxu0
  %v1058 = vpop.f32.mrf.mxu0
  %v1059 = vadd.f32 0.0, %v1058
  %v1060 = vpop.f32.mrf.mxu0
  %1061 = vmatprep.mubr.bf16.mxu0 0
  %1062 = vmatmul.mubr.bf16.gmra.mxu0 %v1019
  %v1063 = vpop.f32.mrf.mxu0
  %v1064 = vadd.f32 0.0, %v1063
  %v1065 = vpop.f32.mrf.mxu0
  %v1066 = vpop.f32.mrf.mxu0
  %v1067 = vadd.f32 0.0, %v1066
  %v1068 = vpop.f32.mrf.mxu0
  %1069 = vdwg.mxu0
  %v1070 = vadd.f32 %v992, %v1056
  %v1071 = vadd.f32 %v993, %v1059
  %v1072 = vadd.f32 %v994, %v1064
  %v1073 = vadd.f32 %v995, %v1067
  %v1074 = vmul.f32 %v1070, %v525
  %v1075 = vmul.f32 %v1071, %v530
  %v1076 = vmul.f32 %v1072, %v535
  %v1077 = vmul.f32 %v1073, %v540
  %v1078 = vsel %vm546, %v1074, 0.0
  %v1079 = vsel %vm546, %v1075, 0.0
  %v1080 = vadd.f32 %v1078, %v1079
  %v1081 = vsel %vm546, %v1076, 0.0
  %v1082 = vadd.f32 %v1080, %v1081
  %v1083 = vsel %vm546, %v1077, 0.0
  %v1084 = vadd.f32 %v1082, %v1083
  %v1085 = vrot.slane %v1084, 4
  %v1086 = vadd.f32 %v1084, %v1085
  %v1087 = vrot.slane %v1086, 2
  %v1088 = vadd.f32 %v1086, %v1087
  %v1089 = vrot.slane %v1088, 1
  %v1090 = vadd.f32 %v1088, %v1089
  %v1091 = vmul.f32 %v1090, 0.041666668
  %v1092 = vmul.f32 %v1074, %v1070
  %v1093 = vmul.f32 %v1075, %v1071
  %v1094 = vmul.f32 %v1076, %v1072
  %v1095 = vmul.f32 %v1077, %v1073
  %v1096 = vsel %vm546, %v1092, 0.0
  %v1097 = vsel %vm546, %v1093, 0.0
  %v1098 = vadd.f32 %v1096, %v1097
  %v1099 = vsel %vm546, %v1094, 0.0
  %v1100 = vadd.f32 %v1098, %v1099
  %v1101 = vsel %vm546, %v1095, 0.0
  %v1102 = vadd.f32 %v1100, %v1101
  %v1103 = vrot.slane %v1102, 4
  %v1104 = vadd.f32 %v1102, %v1103
  %v1105 = vrot.slane %v1104, 2
  %v1106 = vadd.f32 %v1104, %v1105
  %v1107 = vrot.slane %v1106, 1
  %v1108 = vadd.f32 %v1106, %v1107
  %v1109 = vmul.f32 %v1108, 0.041666668
  %v1110 = vmul.f32 %v1091, %v1091
  %v1111 = vsub.f32 %v1109, %v1110
  %v1112 = vsub.f32 %v1070, %v1091
  %v1113 = vsub.f32 %v1071, %v1091
  %v1114 = vsub.f32 %v1072, %v1091
  %v1115 = vsub.f32 %v1073, %v1091
  %v1116 = vadd.f32 %v1111, 1e-05
  %v1117 = vrsqrt.pop %v1116
  %v1118 = vmul.f32 %v1112, %v1117
  %v1119 = vmul.f32 %v1113, %v1117
  %v1120 = vmul.f32 %v1114, %v1117
  %v1121 = vmul.f32 %v1115, %v1117
  %v1122 = vld [vmem:[%s19] sm:$0x1]
  %v1124 = vlaneseq
  %v1125 = vshrl.u32 %v1124, 7
  %v1126 = vsub.s32 0, %v1125
  %v1127 = vrot.slane %v1122, %v1126
  %v1129 = vmul.f32 %v1118, %v1127
  %v1130 = vmul.f32 %v1119, %v1127
  %v1131 = vmul.f32 %v1120, %v1127
  %v1132 = vmul.f32 %v1121, %v1127
  %v1133 = vld [vmem:[%s21] sm:$0x1]
  %v1135 = vlaneseq
  %v1136 = vshrl.u32 %v1135, 7
  %v1137 = vsub.s32 0, %v1136
  %v1138 = vrot.slane %v1133, %v1137
  %v1140 = vadd.f32 %v1129, %v1138
  %v1141 = vadd.f32 %v1130, %v1138
  %v1142 = vadd.f32 %v1131, %v1138
  %v1143 = vadd.f32 %v1132, %v1138
  %v1144 = vxor.u32 %v1140, 2147483648
  %v1145 = vxor.u32 %v1141, 2147483648
  %v1146 = vxor.u32 %v1142, 2147483648
  %v1147 = vxor.u32 %v1143, 2147483648
  %v1148 = vmul.f32 %v1144, 1.442695
  %v1149 = vpow.pop %v1148
  %v1150 = vmul.f32 %v1145, 1.442695
  %v1151 = vpow.pop %v1150
  %v1152 = vmul.f32 %v1146, 1.442695
  %v1153 = vpow.pop %v1152
  %v1154 = vmul.f32 %v1147, 1.442695
  %v1155 = vpow.pop %v1154
  %v1156 = vadd.f32 %v1149, 1.0
  %v1157 = vadd.f32 %v1151, 1.0
  %v1158 = vadd.f32 %v1153, 1.0
  %v1159 = vadd.f32 %v1155, 1.0
  %v1160 = vrcp.pop %v1156
  %v1161 = vmul.f32 1.0, %v1160
  %v1162 = vrcp.pop %v1157
  %v1163 = vmul.f32 1.0, %v1162
  %v1164 = vrcp.pop %v1158
  %v1165 = vmul.f32 1.0, %v1164
  %v1166 = vrcp.pop %v1159
  %v1167 = vmul.f32 1.0, %v1166
  %v1168 = vmul.f32 %v1140, %v1161
  %v1169 = vmul.f32 %v1141, %v1163
  %v1170 = vmul.f32 %v1142, %v1165
  %v1171 = vmul.f32 %v1143, %v1167
  %v1172 = vmul.f32 %v1168, %v525
  %v1173 = vmul.f32 %v1169, %v530
  %v1174 = vmul.f32 %v1170, %v535
  %v1175 = vmul.f32 %v1171, %v540
  %v1176 = vld [vmem:[%s25] sm:$0x1]
  %v1178 = vlaneseq
  %v1179 = vshrl.u32 %v1178, 7
  %v1180 = vsub.s32 0, %v1179
  %v1181 = vrot.slane %v1176, %v1180
  %v1183 = vadd.f32 %v1181, 0.0
  %v1184 = vrot.slane %v1172, 4
  %v1185 = vrot.slane %v1173, 4
  %v1186 = vrot.slane %v1174, 4
  %v1187 = vrot.slane %v1175, 4
  %v1188 = vsel %vm159, %v1186, %v1187
  %v1189 = vsel %vm159, %v1185, %v1186
  %v1190 = vsel %vm159, %v1184, %v1185
  %v1191 = vsel %vm159, %v1187, %v1184
  %v1192 = vpack.c.bf16 %v1190, %v1191
  %v1193 = vpack.c.bf16 %v1188, %v1189
  %v1194 = vld [vmem:[%s23] sm:$0xf]
  %v1195 = vld [vmem:[%s23 + $0x4] sm:$0xf]
  %v1196 = vld [vmem:[%s23 + $0x8] sm:$0xf]
  %v1197 = vld [vmem:[%s23 + $0xc] sm:$0xf]
  %v1202 = vunpack.c.l.b16 %v1194
  %v1203 = vunpack.c.l.b16 %v1195
  %v1204 = vunpack.c.l.b16 %v1196
  %v1205 = vunpack.c.l.b16 %v1197
  %v1206 = vpack.c.b16 %v1203, %v1202
  %v1207 = vpack.c.b16 %v1205, %v1204
  %v1211 = vsel %vm546, %v1192, 0
  %v1214 = vsel %vm546, %v1193, 0
  %1216 = vmatprep.subr.bf16.mxu0 0
  %1217 = vmatpush1.bf16.msra.mxu0 0
  %1218 = vmatprep.subr.bf16.mxu0 0
  %1219 = vmatpush1.bf16.msra.mxu0 0
  %1220 = vmatprep.subr.bf16.mxu0 0
  %1221 = vmatpush1.bf16.msra.mxu0 0
  %1222 = vmatprep.subr.bf16.mxu0 0
  %1223 = vmatpush1.bf16.msra.mxu0 0
  %1224 = vmatprep.subr.bf16.mxu0 0
  %1225 = vmatpush1.bf16.msra.mxu0 0
  %1226 = vmatprep.subr.bf16.mxu0 0
  %1227 = vmatpush1.bf16.msra.mxu0 0
  %1228 = vmatprep.subr.bf16.mxu0 0
  %1229 = vmatpush1.bf16.msra.mxu0 %v1207
  %1230 = vmatprep.subr.bf16.mxu0 0
  %1231 = vmatpush1.bf16.msra.mxu0 %v1206
  %1232 = vmatprep.subr.bf16.mxu0 0
  %1233 = vmatpush2.bf16.msra.mxu0 0
  %1234 = vmatprep.subr.bf16.mxu0 0
  %1235 = vmatpush2.bf16.msra.mxu0 0
  %1236 = vmatprep.subr.bf16.mxu0 0
  %1237 = vmatpush2.bf16.msra.mxu0 0
  %1238 = vmatprep.subr.bf16.mxu0 0
  %1239 = vmatpush2.bf16.msra.mxu0 0
  %1240 = vmatprep.subr.bf16.mxu0 0
  %1241 = vmatpush2.bf16.msra.mxu0 0
  %1242 = vmatprep.subr.bf16.mxu0 0
  %1243 = vmatpush2.bf16.msra.mxu0 0
  %1244 = vmatprep.subr.bf16.mxu0 0
  %1245 = vmatpush2.bf16.msra.mxu0 0
  %1246 = vmatprep.subr.bf16.mxu0 0
  %1247 = vmatpush2.bf16.msra.mxu0 0
  %1248 = vmatprep.mubr.bf16.mxu0 0
  %1249 = vmatmul.mubr.bf16.gmra.mxu0 %v1211
  %v1250 = vpop.f32.mrf.mxu0
  %v1251 = vadd.f32 0.0, %v1250
  %v1252 = vpop.f32.mrf.mxu0
  %v1253 = vpop.f32.mrf.mxu0
  %v1254 = vadd.f32 0.0, %v1253
  %v1255 = vpop.f32.mrf.mxu0
  %1256 = vmatprep.mubr.bf16.mxu0 0
  %1257 = vmatmul.mubr.bf16.gmra.mxu0 %v1214
  %v1258 = vpop.f32.mrf.mxu0
  %v1259 = vadd.f32 0.0, %v1258
  %v1260 = vpop.f32.mrf.mxu0
  %v1261 = vpop.f32.mrf.mxu0
  %v1262 = vadd.f32 0.0, %v1261
  %v1263 = vpop.f32.mrf.mxu0
  %1264 = vdwg.mxu0
  %v1265 = vadd.f32 %v1183, %v1251
  %v1266 = vadd.f32 %v1183, %v1254
  %v1267 = vadd.f32 %v1183, %v1259
  %v1268 = vadd.f32 %v1183, %v1262
  %v1269 = vrot.slane %v1172, 5
  %v1270 = vrot.slane %v1173, 5
  %v1271 = vrot.slane %v1174, 5
  %v1272 = vrot.slane %v1175, 5
  %v1273 = vsel %vm235, %v1271, %v1272
  %v1274 = vsel %vm235, %v1270, %v1271
  %v1275 = vsel %vm235, %v1269, %v1270
  %v1276 = vsel %vm235, %v1272, %v1269
  %v1277 = vpack.c.bf16 %v1275, %v1276
  %v1278 = vpack.c.bf16 %v1273, %v1274
  %s1279 = scalar_lea.vmem %s23, 16
  %v1280 = vld [vmem:[%s1279] sm:$0xf]
  %v1281 = vld [vmem:[%s1279 + $0x4] sm:$0xf]
  %v1282 = vld [vmem:[%s1279 + $0x8] sm:$0xf]
  %v1283 = vld [vmem:[%s1279 + $0xc] sm:$0xf]
  %v1288 = vunpack.c.l.b16 %v1280
  %v1289 = vunpack.c.l.b16 %v1281
  %v1290 = vunpack.c.l.b16 %v1282
  %v1291 = vunpack.c.l.b16 %v1283
  %v1292 = vpack.c.b16 %v1289, %v1288
  %v1293 = vpack.c.b16 %v1291, %v1290
  %v1297 = vsel %vm546, %v1277, 0
  %v1300 = vsel %vm546, %v1278, 0
  %1302 = vmatprep.subr.bf16.mxu0 0
  %1303 = vmatpush1.bf16.msra.mxu0 0
  %1304 = vmatprep.subr.bf16.mxu0 0
  %1305 = vmatpush1.bf16.msra.mxu0 0
  %1306 = vmatprep.subr.bf16.mxu0 0
  %1307 = vmatpush1.bf16.msra.mxu0 0
  %1308 = vmatprep.subr.bf16.mxu0 0
  %1309 = vmatpush1.bf16.msra.mxu0 0
  %1310 = vmatprep.subr.bf16.mxu0 0
  %1311 = vmatpush1.bf16.msra.mxu0 0
  %1312 = vmatprep.subr.bf16.mxu0 0
  %1313 = vmatpush1.bf16.msra.mxu0 0
  %1314 = vmatprep.subr.bf16.mxu0 0
  %1315 = vmatpush1.bf16.msra.mxu0 %v1293
  %1316 = vmatprep.subr.bf16.mxu0 0
  %1317 = vmatpush1.bf16.msra.mxu0 %v1292
  %1318 = vmatprep.subr.bf16.mxu0 0
  %1319 = vmatpush2.bf16.msra.mxu0 0
  %1320 = vmatprep.subr.bf16.mxu0 0
  %1321 = vmatpush2.bf16.msra.mxu0 0
  %1322 = vmatprep.subr.bf16.mxu0 0
  %1323 = vmatpush2.bf16.msra.mxu0 0
  %1324 = vmatprep.subr.bf16.mxu0 0
  %1325 = vmatpush2.bf16.msra.mxu0 0
  %1326 = vmatprep.subr.bf16.mxu0 0
  %1327 = vmatpush2.bf16.msra.mxu0 0
  %1328 = vmatprep.subr.bf16.mxu0 0
  %1329 = vmatpush2.bf16.msra.mxu0 0
  %1330 = vmatprep.subr.bf16.mxu0 0
  %1331 = vmatpush2.bf16.msra.mxu0 0
  %1332 = vmatprep.subr.bf16.mxu0 0
  %1333 = vmatpush2.bf16.msra.mxu0 0
  %1334 = vmatprep.mubr.bf16.mxu0 0
  %1335 = vmatmul.mubr.bf16.gmra.mxu0 %v1297
  %v1336 = vpop.f32.mrf.mxu0
  %v1337 = vadd.f32 0.0, %v1336
  %v1338 = vpop.f32.mrf.mxu0
  %v1339 = vpop.f32.mrf.mxu0
  %v1340 = vadd.f32 0.0, %v1339
  %v1341 = vpop.f32.mrf.mxu0
  %1342 = vmatprep.mubr.bf16.mxu0 0
  %1343 = vmatmul.mubr.bf16.gmra.mxu0 %v1300
  %v1344 = vpop.f32.mrf.mxu0
  %v1345 = vadd.f32 0.0, %v1344
  %v1346 = vpop.f32.mrf.mxu0
  %v1347 = vpop.f32.mrf.mxu0
  %v1348 = vadd.f32 0.0, %v1347
  %v1349 = vpop.f32.mrf.mxu0
  %1350 = vdwg.mxu0
  %v1351 = vadd.f32 %v1265, %v1337
  %v1352 = vadd.f32 %v1266, %v1340
  %v1353 = vadd.f32 %v1267, %v1345
  %v1354 = vadd.f32 %v1268, %v1348
  %v1355 = vrot.slane %v1172, 6
  %v1356 = vrot.slane %v1173, 6
  %v1357 = vrot.slane %v1174, 6
  %v1358 = vrot.slane %v1175, 6
  %v1359 = vsel %vm310, %v1357, %v1358
  %v1360 = vsel %vm310, %v1356, %v1357
  %v1361 = vsel %vm310, %v1355, %v1356
  %v1362 = vsel %vm310, %v1358, %v1355
  %v1363 = vpack.c.bf16 %v1361, %v1362
  %v1364 = vpack.c.bf16 %v1359, %v1360
  %s1365 = scalar_lea.vmem %s23, 32
  %v1366 = vld [vmem:[%s1365] sm:$0xf]
  %v1367 = vld [vmem:[%s1365 + $0x4] sm:$0xf]
  %v1368 = vld [vmem:[%s1365 + $0x8] sm:$0xf]
  %v1369 = vld [vmem:[%s1365 + $0xc] sm:$0xf]
  %v1374 = vunpack.c.l.b16 %v1366
  %v1375 = vunpack.c.l.b16 %v1367
  %v1376 = vunpack.c.l.b16 %v1368
  %v1377 = vunpack.c.l.b16 %v1369
  %v1378 = vpack.c.b16 %v1375, %v1374
  %v1379 = vpack.c.b16 %v1377, %v1376
  %v1383 = vsel %vm546, %v1363, 0
  %v1386 = vsel %vm546, %v1364, 0
  %1388 = vmatprep.subr.bf16.mxu0 0
  %1389 = vmatpush1.bf16.msra.mxu0 0
  %1390 = vmatprep.subr.bf16.mxu0 0
  %1391 = vmatpush1.bf16.msra.mxu0 0
  %1392 = vmatprep.subr.bf16.mxu0 0
  %1393 = vmatpush1.bf16.msra.mxu0 0
  %1394 = vmatprep.subr.bf16.mxu0 0
  %1395 = vmatpush1.bf16.msra.mxu0 0
  %1396 = vmatprep.subr.bf16.mxu0 0
  %1397 = vmatpush1.bf16.msra.mxu0 0
  %1398 = vmatprep.subr.bf16.mxu0 0
  %1399 = vmatpush1.bf16.msra.mxu0 0
  %1400 = vmatprep.subr.bf16.mxu0 0
  %1401 = vmatpush1.bf16.msra.mxu0 %v1379
  %1402 = vmatprep.subr.bf16.mxu0 0
  %1403 = vmatpush1.bf16.msra.mxu0 %v1378
  %1404 = vmatprep.subr.bf16.mxu0 0
  %1405 = vmatpush2.bf16.msra.mxu0 0
  %1406 = vmatprep.subr.bf16.mxu0 0
  %1407 = vmatpush2.bf16.msra.mxu0 0
  %1408 = vmatprep.subr.bf16.mxu0 0
  %1409 = vmatpush2.bf16.msra.mxu0 0
  %1410 = vmatprep.subr.bf16.mxu0 0
  %1411 = vmatpush2.bf16.msra.mxu0 0
  %1412 = vmatprep.subr.bf16.mxu0 0
  %1413 = vmatpush2.bf16.msra.mxu0 0
  %1414 = vmatprep.subr.bf16.mxu0 0
  %1415 = vmatpush2.bf16.msra.mxu0 0
  %1416 = vmatprep.subr.bf16.mxu0 0
  %1417 = vmatpush2.bf16.msra.mxu0 0
  %1418 = vmatprep.subr.bf16.mxu0 0
  %1419 = vmatpush2.bf16.msra.mxu0 0
  %1420 = vmatprep.mubr.bf16.mxu0 0
  %1421 = vmatmul.mubr.bf16.gmra.mxu0 %v1383
  %v1422 = vpop.f32.mrf.mxu0
  %v1423 = vadd.f32 0.0, %v1422
  %v1424 = vpop.f32.mrf.mxu0
  %v1425 = vpop.f32.mrf.mxu0
  %v1426 = vadd.f32 0.0, %v1425
  %v1427 = vpop.f32.mrf.mxu0
  %1428 = vmatprep.mubr.bf16.mxu0 0
  %1429 = vmatmul.mubr.bf16.gmra.mxu0 %v1386
  %v1430 = vpop.f32.mrf.mxu0
  %v1431 = vadd.f32 0.0, %v1430
  %v1432 = vpop.f32.mrf.mxu0
  %v1433 = vpop.f32.mrf.mxu0
  %v1434 = vadd.f32 0.0, %v1433
  %v1435 = vpop.f32.mrf.mxu0
  %1436 = vdwg.mxu0
  %v1437 = vadd.f32 %v1351, %v1423
  %v1438 = vadd.f32 %v1352, %v1426
  %v1439 = vadd.f32 %v1353, %v1431
  %v1440 = vadd.f32 %v1354, %v1434
  %v1441 = vrot.slane %v1172, 7
  %v1442 = vrot.slane %v1173, 7
  %v1443 = vrot.slane %v1174, 7
  %v1444 = vrot.slane %v1175, 7
  %v1445 = vsel %vm385, %v1443, %v1444
  %v1446 = vsel %vm385, %v1442, %v1443
  %v1447 = vsel %vm385, %v1441, %v1442
  %v1448 = vsel %vm385, %v1444, %v1441
  %v1449 = vpack.c.bf16 %v1447, %v1448
  %v1450 = vpack.c.bf16 %v1445, %v1446
  %s1451 = scalar_lea.vmem %s23, 48
  %v1452 = vld [vmem:[%s1451] sm:$0xf]
  %v1453 = vld [vmem:[%s1451 + $0x4] sm:$0xf]
  %v1454 = vld [vmem:[%s1451 + $0x8] sm:$0xf]
  %v1455 = vld [vmem:[%s1451 + $0xc] sm:$0xf]
  %v1460 = vunpack.c.l.b16 %v1452
  %v1461 = vunpack.c.l.b16 %v1453
  %v1462 = vunpack.c.l.b16 %v1454
  %v1463 = vunpack.c.l.b16 %v1455
  %v1464 = vpack.c.b16 %v1461, %v1460
  %v1465 = vpack.c.b16 %v1463, %v1462
  %v1469 = vsel %vm546, %v1449, 0
  %v1472 = vsel %vm546, %v1450, 0
  %1474 = vmatprep.subr.bf16.mxu0 0
  %1475 = vmatpush1.bf16.msra.mxu0 0
  %1476 = vmatprep.subr.bf16.mxu0 0
  %1477 = vmatpush1.bf16.msra.mxu0 0
  %1478 = vmatprep.subr.bf16.mxu0 0
  %1479 = vmatpush1.bf16.msra.mxu0 0
  %1480 = vmatprep.subr.bf16.mxu0 0
  %1481 = vmatpush1.bf16.msra.mxu0 0
  %1482 = vmatprep.subr.bf16.mxu0 0
  %1483 = vmatpush1.bf16.msra.mxu0 0
  %1484 = vmatprep.subr.bf16.mxu0 0
  %1485 = vmatpush1.bf16.msra.mxu0 0
  %1486 = vmatprep.subr.bf16.mxu0 0
  %1487 = vmatpush1.bf16.msra.mxu0 %v1465
  %1488 = vmatprep.subr.bf16.mxu0 0
  %1489 = vmatpush1.bf16.msra.mxu0 %v1464
  %1490 = vmatprep.subr.bf16.mxu0 0
  %1491 = vmatpush2.bf16.msra.mxu0 0
  %1492 = vmatprep.subr.bf16.mxu0 0
  %1493 = vmatpush2.bf16.msra.mxu0 0
  %1494 = vmatprep.subr.bf16.mxu0 0
  %1495 = vmatpush2.bf16.msra.mxu0 0
  %1496 = vmatprep.subr.bf16.mxu0 0
  %1497 = vmatpush2.bf16.msra.mxu0 0
  %1498 = vmatprep.subr.bf16.mxu0 0
  %1499 = vmatpush2.bf16.msra.mxu0 0
  %1500 = vmatprep.subr.bf16.mxu0 0
  %1501 = vmatpush2.bf16.msra.mxu0 0
  %1502 = vmatprep.subr.bf16.mxu0 0
  %1503 = vmatpush2.bf16.msra.mxu0 0
  %1504 = vmatprep.subr.bf16.mxu0 0
  %1505 = vmatpush2.bf16.msra.mxu0 0
  %1506 = vmatprep.mubr.bf16.mxu0 0
  %1507 = vmatmul.mubr.bf16.gmra.mxu0 %v1469
  %v1508 = vpop.f32.mrf.mxu0
  %v1509 = vadd.f32 0.0, %v1508
  %v1510 = vpop.f32.mrf.mxu0
  %v1511 = vpop.f32.mrf.mxu0
  %v1512 = vadd.f32 0.0, %v1511
  %v1513 = vpop.f32.mrf.mxu0
  %1514 = vmatprep.mubr.bf16.mxu0 0
  %1515 = vmatmul.mubr.bf16.gmra.mxu0 %v1472
  %v1516 = vpop.f32.mrf.mxu0
  %v1517 = vadd.f32 0.0, %v1516
  %v1518 = vpop.f32.mrf.mxu0
  %v1519 = vpop.f32.mrf.mxu0
  %v1520 = vadd.f32 0.0, %v1519
  %v1521 = vpop.f32.mrf.mxu0
  %1522 = vdwg.mxu0
  %v1523 = vadd.f32 %v1437, %v1509
  %v1524 = vadd.f32 %v1438, %v1512
  %v1525 = vadd.f32 %v1439, %v1517
  %v1526 = vadd.f32 %v1440, %v1520
  %v1527 = vpack.c.bf16 %v1173, %v1172
  %v1528 = vpack.c.bf16 %v1175, %v1174
  %s1529 = scalar_lea.vmem %s23, 64
  %v1530 = vld [vmem:[%s1529] sm:$0xf]
  %v1531 = vld [vmem:[%s1529 + $0x4] sm:$0xf]
  %v1532 = vld [vmem:[%s1529 + $0x8] sm:$0xf]
  %v1533 = vld [vmem:[%s1529 + $0xc] sm:$0xf]
  %v1538 = vunpack.c.l.b16 %v1530
  %v1539 = vunpack.c.l.b16 %v1531
  %v1540 = vunpack.c.l.b16 %v1532
  %v1541 = vunpack.c.l.b16 %v1533
  %v1542 = vpack.c.b16 %v1539, %v1538
  %v1543 = vpack.c.b16 %v1541, %v1540
  %v1547 = vsel %vm546, %v1527, 0
  %v1550 = vsel %vm546, %v1528, 0
  %1552 = vmatprep.subr.bf16.mxu0 0
  %1553 = vmatpush1.bf16.msra.mxu0 0
  %1554 = vmatprep.subr.bf16.mxu0 0
  %1555 = vmatpush1.bf16.msra.mxu0 0
  %1556 = vmatprep.subr.bf16.mxu0 0
  %1557 = vmatpush1.bf16.msra.mxu0 0
  %1558 = vmatprep.subr.bf16.mxu0 0
  %1559 = vmatpush1.bf16.msra.mxu0 0
  %1560 = vmatprep.subr.bf16.mxu0 0
  %1561 = vmatpush1.bf16.msra.mxu0 0
  %1562 = vmatprep.subr.bf16.mxu0 0
  %1563 = vmatpush1.bf16.msra.mxu0 0
  %1564 = vmatprep.subr.bf16.mxu0 0
  %1565 = vmatpush1.bf16.msra.mxu0 %v1543
  %1566 = vmatprep.subr.bf16.mxu0 0
  %1567 = vmatpush1.bf16.msra.mxu0 %v1542
  %1568 = vmatprep.subr.bf16.mxu0 0
  %1569 = vmatpush2.bf16.msra.mxu0 0
  %1570 = vmatprep.subr.bf16.mxu0 0
  %1571 = vmatpush2.bf16.msra.mxu0 0
  %1572 = vmatprep.subr.bf16.mxu0 0
  %1573 = vmatpush2.bf16.msra.mxu0 0
  %1574 = vmatprep.subr.bf16.mxu0 0
  %1575 = vmatpush2.bf16.msra.mxu0 0
  %1576 = vmatprep.subr.bf16.mxu0 0
  %1577 = vmatpush2.bf16.msra.mxu0 0
  %1578 = vmatprep.subr.bf16.mxu0 0
  %1579 = vmatpush2.bf16.msra.mxu0 0
  %1580 = vmatprep.subr.bf16.mxu0 0
  %1581 = vmatpush2.bf16.msra.mxu0 0
  %1582 = vmatprep.subr.bf16.mxu0 0
  %1583 = vmatpush2.bf16.msra.mxu0 0
  %1584 = vmatprep.mubr.bf16.mxu0 0
  %1585 = vmatmul.mubr.bf16.gmra.mxu0 %v1547
  %v1586 = vpop.f32.mrf.mxu0
  %v1587 = vadd.f32 0.0, %v1586
  %v1588 = vpop.f32.mrf.mxu0
  %v1589 = vpop.f32.mrf.mxu0
  %v1590 = vadd.f32 0.0, %v1589
  %v1591 = vpop.f32.mrf.mxu0
  %1592 = vmatprep.mubr.bf16.mxu0 0
  %1593 = vmatmul.mubr.bf16.gmra.mxu0 %v1550
  %v1594 = vpop.f32.mrf.mxu0
  %v1595 = vadd.f32 0.0, %v1594
  %v1596 = vpop.f32.mrf.mxu0
  %v1597 = vpop.f32.mrf.mxu0
  %v1598 = vadd.f32 0.0, %v1597
  %v1599 = vpop.f32.mrf.mxu0
  %1600 = vdwg.mxu0
  %v1601 = vadd.f32 %v1523, %v1587
  %v1602 = vadd.f32 %v1524, %v1590
  %v1603 = vadd.f32 %v1525, %v1595
  %v1604 = vadd.f32 %v1526, %v1598
  %v1605 = vadd.f32 %v518, %v1601
  %v1606 = vadd.f32 %v519, %v1602
  %v1607 = vadd.f32 %v520, %v1603
  %v1608 = vadd.f32 %v521, %v1604
  %v1609 = vmul.f32 %v1605, %v525
  %v1610 = vmul.f32 %v1606, %v530
  %v1611 = vmul.f32 %v1607, %v535
  %v1612 = vmul.f32 %v1608, %v540
  %v1613 = vsel %vm546, %v1609, 0.0
  %v1614 = vsel %vm546, %v1610, 0.0
  %v1615 = vadd.f32 %v1613, %v1614
  %v1616 = vsel %vm546, %v1611, 0.0
  %v1617 = vadd.f32 %v1615, %v1616
  %v1618 = vsel %vm546, %v1612, 0.0
  %v1619 = vadd.f32 %v1617, %v1618
  %v1620 = vrot.slane %v1619, 4
  %v1621 = vadd.f32 %v1619, %v1620
  %v1622 = vrot.slane %v1621, 2
  %v1623 = vadd.f32 %v1621, %v1622
  %v1624 = vrot.slane %v1623, 1
  %v1625 = vadd.f32 %v1623, %v1624
  %v1626 = vmul.f32 %v1625, 0.041666668
  %v1627 = vmul.f32 %v1609, %v1605
  %v1628 = vmul.f32 %v1610, %v1606
  %v1629 = vmul.f32 %v1611, %v1607
  %v1630 = vmul.f32 %v1612, %v1608
  %v1631 = vsel %vm546, %v1627, 0.0
  %v1632 = vsel %vm546, %v1628, 0.0
  %v1633 = vadd.f32 %v1631, %v1632
  %v1634 = vsel %vm546, %v1629, 0.0
  %v1635 = vadd.f32 %v1633, %v1634
  %v1636 = vsel %vm546, %v1630, 0.0
  %v1637 = vadd.f32 %v1635, %v1636
  %v1638 = vrot.slane %v1637, 4
  %v1639 = vadd.f32 %v1637, %v1638
  %v1640 = vrot.slane %v1639, 2
  %v1641 = vadd.f32 %v1639, %v1640
  %v1642 = vrot.slane %v1641, 1
  %v1643 = vadd.f32 %v1641, %v1642
  %v1644 = vmul.f32 %v1643, 0.041666668
  %v1645 = vmul.f32 %v1626, %v1626
  %v1646 = vsub.f32 %v1644, %v1645
  %v1647 = vsub.f32 %v1605, %v1626
  %v1648 = vsub.f32 %v1606, %v1626
  %v1649 = vsub.f32 %v1607, %v1626
  %v1650 = vsub.f32 %v1608, %v1626
  %v1651 = vadd.f32 %v1646, 1e-05
  %v1652 = vrsqrt.pop %v1651
  %v1653 = vmul.f32 %v1647, %v1652
  %v1654 = vmul.f32 %v1648, %v1652
  %v1655 = vmul.f32 %v1649, %v1652
  %v1656 = vmul.f32 %v1650, %v1652
  %v1657 = vld [vmem:[%s27] sm:$0x1]
  %v1659 = vlaneseq
  %v1660 = vshrl.u32 %v1659, 7
  %v1661 = vsub.s32 0, %v1660
  %v1662 = vrot.slane %v1657, %v1661
  %v1664 = vmul.f32 %v1653, %v1662
  %v1665 = vmul.f32 %v1654, %v1662
  %v1666 = vmul.f32 %v1655, %v1662
  %v1667 = vmul.f32 %v1656, %v1662
  %v1668 = vld [vmem:[%s29] sm:$0x1]
  %v1670 = vlaneseq
  %v1671 = vshrl.u32 %v1670, 7
  %v1672 = vsub.s32 0, %v1671
  %v1673 = vrot.slane %v1668, %v1672
  %v1675 = vadd.f32 %v1664, %v1673
  %v1676 = vadd.f32 %v1665, %v1673
  %v1677 = vadd.f32 %v1666, %v1673
  %v1678 = vadd.f32 %v1667, %v1673
  %v1679 = vxor.u32 %v1675, 2147483648
  %v1680 = vxor.u32 %v1676, 2147483648
  %v1681 = vxor.u32 %v1677, 2147483648
  %v1682 = vxor.u32 %v1678, 2147483648
  %v1683 = vmul.f32 %v1679, 1.442695
  %v1684 = vpow.pop %v1683
  %v1685 = vmul.f32 %v1680, 1.442695
  %v1686 = vpow.pop %v1685
  %v1687 = vmul.f32 %v1681, 1.442695
  %v1688 = vpow.pop %v1687
  %v1689 = vmul.f32 %v1682, 1.442695
  %v1690 = vpow.pop %v1689
  %v1691 = vadd.f32 %v1684, 1.0
  %v1692 = vadd.f32 %v1686, 1.0
  %v1693 = vadd.f32 %v1688, 1.0
  %v1694 = vadd.f32 %v1690, 1.0
  %v1695 = vrcp.pop %v1691
  %v1696 = vmul.f32 1.0, %v1695
  %v1697 = vrcp.pop %v1692
  %v1698 = vmul.f32 1.0, %v1697
  %v1699 = vrcp.pop %v1693
  %v1700 = vmul.f32 1.0, %v1699
  %v1701 = vrcp.pop %v1694
  %v1702 = vmul.f32 1.0, %v1701
  %v1703 = vmul.f32 %v1675, %v1696
  %v1704 = vmul.f32 %v1676, %v1698
  %v1705 = vmul.f32 %v1677, %v1700
  %v1706 = vmul.f32 %v1678, %v1702
  %v1707 = vmul.f32 %v1703, %v525
  %v1708 = vmul.f32 %v1704, %v530
  %v1709 = vmul.f32 %v1705, %v535
  %v1710 = vmul.f32 %v1706, %v540
  %1711 = vst.msk [vmem:[#allocation2] sm:$0xff] %vm546, %v1707
  %1712 = vst.msk [vmem:[#allocation2 + $0x8] sm:$0xff] %vm546, %v1708
  %1713 = vst.msk [vmem:[#allocation2 + $0x10] sm:$0xff] %vm546, %v1709
  %1714 = vst.msk [vmem:[#allocation2 + $0x18] sm:$0xff] %vm546, %v1710
  %v1715 = vld [vmem:[#allocation2] ss:$2 sm:$0xff]
  %s1716 = scalar_lea.vmem [#allocation2], 16
  %v1717 = vld [vmem:[%s1716] ss:$2 sm:$0xff]
  %s1718 = scalar_lea.vmem [#allocation2], 1
  %v1719 = vld [vmem:[%s1718] ss:$2 sm:$0xff]
  %s1720 = scalar_lea.vmem [#allocation2], 17
  %v1721 = vld [vmem:[%s1720] ss:$2 sm:$0xff]
  %v1722 = vmax.f32 %v1715, %v1719
  %v1723 = vmax.f32 %v1717, %v1721
  %v1724 = vld [vmem:[%s5] sm:$0xff]
  %v1725 = vld [vmem:[%s5 + $0x8] sm:$0xff]
  %v1726 = vld [vmem:[%s33] sm:$0x1]
  %v1728 = vlaneseq
  %v1729 = vshrl.u32 %v1728, 7
  %v1730 = vsub.s32 0, %v1729
  %v1731 = vrot.slane %v1726, %v1730
  %v1733 = vadd.f32 %v1731, 0.0
  %v1734 = vrot.slane %v1722, 4
  %v1735 = vrot.slane %v1723, 4
  %v1736 = vsel %vm159, %v1734, %v1735
  %v1737 = vsel %vm159, %v1735, %v1734
  %v1738 = vpack.c.bf16 %v1736, %v1737
  %v1739 = vld [vmem:[%s31] sm:$0xf]
  %v1740 = vld [vmem:[%s31 + $0x4] sm:$0xf]
  %v1741 = vld [vmem:[%s31 + $0x8] sm:$0xf]
  %v1742 = vld [vmem:[%s31 + $0xc] sm:$0xf]
  %v1747 = vunpack.c.l.b16 %v1739
  %v1748 = vunpack.c.l.b16 %v1740
  %v1749 = vunpack.c.l.b16 %v1741
  %v1750 = vunpack.c.l.b16 %v1742
  %v1751 = vpack.c.b16 %v1748, %v1747
  %v1752 = vpack.c.b16 %v1750, %v1749
  %v1756 = vsel %vm546, %v1738, 0
  %1758 = vmatprep.subr.bf16.mxu0 0
  %1759 = vmatpush1.bf16.msra.mxu0 0
  %1760 = vmatprep.subr.bf16.mxu0 0
  %1761 = vmatpush1.bf16.msra.mxu0 0
  %1762 = vmatprep.subr.bf16.mxu0 0
  %1763 = vmatpush1.bf16.msra.mxu0 0
  %1764 = vmatprep.subr.bf16.mxu0 0
  %1765 = vmatpush1.bf16.msra.mxu0 0
  %1766 = vmatprep.subr.bf16.mxu0 0
  %1767 = vmatpush1.bf16.msra.mxu0 0
  %1768 = vmatprep.subr.bf16.mxu0 0
  %1769 = vmatpush1.bf16.msra.mxu0 0
  %1770 = vmatprep.subr.bf16.mxu0 0
  %1771 = vmatpush1.bf16.msra.mxu0 %v1752
  %1772 = vmatprep.subr.bf16.mxu0 0
  %1773 = vmatpush1.bf16.msra.mxu0 %v1751
  %1774 = vmatprep.subr.bf16.mxu0 0
  %1775 = vmatpush2.bf16.msra.mxu0 0
  %1776 = vmatprep.subr.bf16.mxu0 0
  %1777 = vmatpush2.bf16.msra.mxu0 0
  %1778 = vmatprep.subr.bf16.mxu0 0
  %1779 = vmatpush2.bf16.msra.mxu0 0
  %1780 = vmatprep.subr.bf16.mxu0 0
  %1781 = vmatpush2.bf16.msra.mxu0 0
  %1782 = vmatprep.subr.bf16.mxu0 0
  %1783 = vmatpush2.bf16.msra.mxu0 0
  %1784 = vmatprep.subr.bf16.mxu0 0
  %1785 = vmatpush2.bf16.msra.mxu0 0
  %1786 = vmatprep.subr.bf16.mxu0 0
  %1787 = vmatpush2.bf16.msra.mxu0 0
  %1788 = vmatprep.subr.bf16.mxu0 0
  %1789 = vmatpush2.bf16.msra.mxu0 0
  %1790 = vmatprep.mubr.bf16.mxu0 0
  %1791 = vmatmul.mubr.bf16.gmra.mxu0 %v1756
  %v1792 = vpop.f32.mrf.mxu0
  %v1793 = vadd.f32 0.0, %v1792
  %v1794 = vpop.f32.mrf.mxu0
  %v1795 = vpop.f32.mrf.mxu0
  %v1796 = vadd.f32 0.0, %v1795
  %v1797 = vpop.f32.mrf.mxu0
  %1798 = vdwg.mxu0
  %v1799 = vadd.f32 %v1733, %v1793
  %v1800 = vadd.f32 %v1733, %v1796
  %v1801 = vrot.slane %v1722, 5
  %v1802 = vrot.slane %v1723, 5
  %v1803 = vsel %vm235, %v1801, %v1802
  %v1804 = vsel %vm235, %v1802, %v1801
  %v1805 = vpack.c.bf16 %v1803, %v1804
  %s1806 = scalar_lea.vmem %s31, 16
  %v1807 = vld [vmem:[%s1806] sm:$0xf]
  %v1808 = vld [vmem:[%s1806 + $0x4] sm:$0xf]
  %v1809 = vld [vmem:[%s1806 + $0x8] sm:$0xf]
  %v1810 = vld [vmem:[%s1806 + $0xc] sm:$0xf]
  %v1815 = vunpack.c.l.b16 %v1807
  %v1816 = vunpack.c.l.b16 %v1808
  %v1817 = vunpack.c.l.b16 %v1809
  %v1818 = vunpack.c.l.b16 %v1810
  %v1819 = vpack.c.b16 %v1816, %v1815
  %v1820 = vpack.c.b16 %v1818, %v1817
  %v1824 = vsel %vm546, %v1805, 0
  %1826 = vmatprep.subr.bf16.mxu0 0
  %1827 = vmatpush1.bf16.msra.mxu0 0
  %1828 = vmatprep.subr.bf16.mxu0 0
  %1829 = vmatpush1.bf16.msra.mxu0 0
  %1830 = vmatprep.subr.bf16.mxu0 0
  %1831 = vmatpush1.bf16.msra.mxu0 0
  %1832 = vmatprep.subr.bf16.mxu0 0
  %1833 = vmatpush1.bf16.msra.mxu0 0
  %1834 = vmatprep.subr.bf16.mxu0 0
  %1835 = vmatpush1.bf16.msra.mxu0 0
  %1836 = vmatprep.subr.bf16.mxu0 0
  %1837 = vmatpush1.bf16.msra.mxu0 0
  %1838 = vmatprep.subr.bf16.mxu0 0
  %1839 = vmatpush1.bf16.msra.mxu0 %v1820
  %1840 = vmatprep.subr.bf16.mxu0 0
  %1841 = vmatpush1.bf16.msra.mxu0 %v1819
  %1842 = vmatprep.subr.bf16.mxu0 0
  %1843 = vmatpush2.bf16.msra.mxu0 0
  %1844 = vmatprep.subr.bf16.mxu0 0
  %1845 = vmatpush2.bf16.msra.mxu0 0
  %1846 = vmatprep.subr.bf16.mxu0 0
  %1847 = vmatpush2.bf16.msra.mxu0 0
  %1848 = vmatprep.subr.bf16.mxu0 0
  %1849 = vmatpush2.bf16.msra.mxu0 0
  %1850 = vmatprep.subr.bf16.mxu0 0
  %1851 = vmatpush2.bf16.msra.mxu0 0
  %1852 = vmatprep.subr.bf16.mxu0 0
  %1853 = vmatpush2.bf16.msra.mxu0 0
  %1854 = vmatprep.subr.bf16.mxu0 0
  %1855 = vmatpush2.bf16.msra.mxu0 0
  %1856 = vmatprep.subr.bf16.mxu0 0
  %1857 = vmatpush2.bf16.msra.mxu0 0
  %1858 = vmatprep.mubr.bf16.mxu0 0
  %1859 = vmatmul.mubr.bf16.gmra.mxu0 %v1824
  %v1860 = vpop.f32.mrf.mxu0
  %v1861 = vadd.f32 0.0, %v1860
  %v1862 = vpop.f32.mrf.mxu0
  %v1863 = vpop.f32.mrf.mxu0
  %v1864 = vadd.f32 0.0, %v1863
  %v1865 = vpop.f32.mrf.mxu0
  %1866 = vdwg.mxu0
  %v1867 = vadd.f32 %v1799, %v1861
  %v1868 = vadd.f32 %v1800, %v1864
  %v1869 = vrot.slane %v1722, 6
  %v1870 = vrot.slane %v1723, 6
  %v1871 = vsel %vm310, %v1869, %v1870
  %v1872 = vsel %vm310, %v1870, %v1869
  %v1873 = vpack.c.bf16 %v1871, %v1872
  %s1874 = scalar_lea.vmem %s31, 32
  %v1875 = vld [vmem:[%s1874] sm:$0xf]
  %v1876 = vld [vmem:[%s1874 + $0x4] sm:$0xf]
  %v1877 = vld [vmem:[%s1874 + $0x8] sm:$0xf]
  %v1878 = vld [vmem:[%s1874 + $0xc] sm:$0xf]
  %v1883 = vunpack.c.l.b16 %v1875
  %v1884 = vunpack.c.l.b16 %v1876
  %v1885 = vunpack.c.l.b16 %v1877
  %v1886 = vunpack.c.l.b16 %v1878
  %v1887 = vpack.c.b16 %v1884, %v1883
  %v1888 = vpack.c.b16 %v1886, %v1885
  %v1892 = vsel %vm546, %v1873, 0
  %1894 = vmatprep.subr.bf16.mxu0 0
  %1895 = vmatpush1.bf16.msra.mxu0 0
  %1896 = vmatprep.subr.bf16.mxu0 0
  %1897 = vmatpush1.bf16.msra.mxu0 0
  %1898 = vmatprep.subr.bf16.mxu0 0
  %1899 = vmatpush1.bf16.msra.mxu0 0
  %1900 = vmatprep.subr.bf16.mxu0 0
  %1901 = vmatpush1.bf16.msra.mxu0 0
  %1902 = vmatprep.subr.bf16.mxu0 0
  %1903 = vmatpush1.bf16.msra.mxu0 0
  %1904 = vmatprep.subr.bf16.mxu0 0
  %1905 = vmatpush1.bf16.msra.mxu0 0
  %1906 = vmatprep.subr.bf16.mxu0 0
  %1907 = vmatpush1.bf16.msra.mxu0 %v1888
  %1908 = vmatprep.subr.bf16.mxu0 0
  %1909 = vmatpush1.bf16.msra.mxu0 %v1887
  %1910 = vmatprep.subr.bf16.mxu0 0
  %1911 = vmatpush2.bf16.msra.mxu0 0
  %1912 = vmatprep.subr.bf16.mxu0 0
  %1913 = vmatpush2.bf16.msra.mxu0 0
  %1914 = vmatprep.subr.bf16.mxu0 0
  %1915 = vmatpush2.bf16.msra.mxu0 0
  %1916 = vmatprep.subr.bf16.mxu0 0
  %1917 = vmatpush2.bf16.msra.mxu0 0
  %1918 = vmatprep.subr.bf16.mxu0 0
  %1919 = vmatpush2.bf16.msra.mxu0 0
  %1920 = vmatprep.subr.bf16.mxu0 0
  %1921 = vmatpush2.bf16.msra.mxu0 0
  %1922 = vmatprep.subr.bf16.mxu0 0
  %1923 = vmatpush2.bf16.msra.mxu0 0
  %1924 = vmatprep.subr.bf16.mxu0 0
  %1925 = vmatpush2.bf16.msra.mxu0 0
  %1926 = vmatprep.mubr.bf16.mxu0 0
  %1927 = vmatmul.mubr.bf16.gmra.mxu0 %v1892
  %v1928 = vpop.f32.mrf.mxu0
  %v1929 = vadd.f32 0.0, %v1928
  %v1930 = vpop.f32.mrf.mxu0
  %v1931 = vpop.f32.mrf.mxu0
  %v1932 = vadd.f32 0.0, %v1931
  %v1933 = vpop.f32.mrf.mxu0
  %1934 = vdwg.mxu0
  %v1935 = vadd.f32 %v1867, %v1929
  %v1936 = vadd.f32 %v1868, %v1932
  %v1937 = vrot.slane %v1722, 7
  %v1938 = vrot.slane %v1723, 7
  %v1939 = vsel %vm385, %v1937, %v1938
  %v1940 = vsel %vm385, %v1938, %v1937
  %v1941 = vpack.c.bf16 %v1939, %v1940
  %s1942 = scalar_lea.vmem %s31, 48
  %v1943 = vld [vmem:[%s1942] sm:$0xf]
  %v1944 = vld [vmem:[%s1942 + $0x4] sm:$0xf]
  %v1945 = vld [vmem:[%s1942 + $0x8] sm:$0xf]
  %v1946 = vld [vmem:[%s1942 + $0xc] sm:$0xf]
  %v1951 = vunpack.c.l.b16 %v1943
  %v1952 = vunpack.c.l.b16 %v1944
  %v1953 = vunpack.c.l.b16 %v1945
  %v1954 = vunpack.c.l.b16 %v1946
  %v1955 = vpack.c.b16 %v1952, %v1951
  %v1956 = vpack.c.b16 %v1954, %v1953
  %v1960 = vsel %vm546, %v1941, 0
  %1962 = vmatprep.subr.bf16.mxu0 0
  %1963 = vmatpush1.bf16.msra.mxu0 0
  %1964 = vmatprep.subr.bf16.mxu0 0
  %1965 = vmatpush1.bf16.msra.mxu0 0
  %1966 = vmatprep.subr.bf16.mxu0 0
  %1967 = vmatpush1.bf16.msra.mxu0 0
  %1968 = vmatprep.subr.bf16.mxu0 0
  %1969 = vmatpush1.bf16.msra.mxu0 0
  %1970 = vmatprep.subr.bf16.mxu0 0
  %1971 = vmatpush1.bf16.msra.mxu0 0
  %1972 = vmatprep.subr.bf16.mxu0 0
  %1973 = vmatpush1.bf16.msra.mxu0 0
  %1974 = vmatprep.subr.bf16.mxu0 0
  %1975 = vmatpush1.bf16.msra.mxu0 %v1956
  %1976 = vmatprep.subr.bf16.mxu0 0
  %1977 = vmatpush1.bf16.msra.mxu0 %v1955
  %1978 = vmatprep.subr.bf16.mxu0 0
  %1979 = vmatpush2.bf16.msra.mxu0 0
  %1980 = vmatprep.subr.bf16.mxu0 0
  %1981 = vmatpush2.bf16.msra.mxu0 0
  %1982 = vmatprep.subr.bf16.mxu0 0
  %1983 = vmatpush2.bf16.msra.mxu0 0
  %1984 = vmatprep.subr.bf16.mxu0 0
  %1985 = vmatpush2.bf16.msra.mxu0 0
  %1986 = vmatprep.subr.bf16.mxu0 0
  %1987 = vmatpush2.bf16.msra.mxu0 0
  %1988 = vmatprep.subr.bf16.mxu0 0
  %1989 = vmatpush2.bf16.msra.mxu0 0
  %1990 = vmatprep.subr.bf16.mxu0 0
  %1991 = vmatpush2.bf16.msra.mxu0 0
  %1992 = vmatprep.subr.bf16.mxu0 0
  %1993 = vmatpush2.bf16.msra.mxu0 0
  %1994 = vmatprep.mubr.bf16.mxu0 0
  %1995 = vmatmul.mubr.bf16.gmra.mxu0 %v1960
  %v1996 = vpop.f32.mrf.mxu0
  %v1997 = vadd.f32 0.0, %v1996
  %v1998 = vpop.f32.mrf.mxu0
  %v1999 = vpop.f32.mrf.mxu0
  %v2000 = vadd.f32 0.0, %v1999
  %v2001 = vpop.f32.mrf.mxu0
  %2002 = vdwg.mxu0
  %v2003 = vadd.f32 %v1935, %v1997
  %v2004 = vadd.f32 %v1936, %v2000
  %v2005 = vpack.c.bf16 %v1723, %v1722
  %s2006 = scalar_lea.vmem %s31, 64
  %v2007 = vld [vmem:[%s2006] sm:$0xf]
  %v2008 = vld [vmem:[%s2006 + $0x4] sm:$0xf]
  %v2009 = vld [vmem:[%s2006 + $0x8] sm:$0xf]
  %v2010 = vld [vmem:[%s2006 + $0xc] sm:$0xf]
  %v2015 = vunpack.c.l.b16 %v2007
  %v2016 = vunpack.c.l.b16 %v2008
  %v2017 = vunpack.c.l.b16 %v2009
  %v2018 = vunpack.c.l.b16 %v2010
  %v2019 = vpack.c.b16 %v2016, %v2015
  %v2020 = vpack.c.b16 %v2018, %v2017
  %v2024 = vsel %vm546, %v2005, 0
  %2026 = vmatprep.subr.bf16.mxu0 0
  %2027 = vmatpush1.bf16.msra.mxu0 0
  %2028 = vmatprep.subr.bf16.mxu0 0
  %2029 = vmatpush1.bf16.msra.mxu0 0
  %2030 = vmatprep.subr.bf16.mxu0 0
  %2031 = vmatpush1.bf16.msra.mxu0 0
  %2032 = vmatprep.subr.bf16.mxu0 0
  %2033 = vmatpush1.bf16.msra.mxu0 0
  %2034 = vmatprep.subr.bf16.mxu0 0
  %2035 = vmatpush1.bf16.msra.mxu0 0
  %2036 = vmatprep.subr.bf16.mxu0 0
  %2037 = vmatpush1.bf16.msra.mxu0 0
  %2038 = vmatprep.subr.bf16.mxu0 0
  %2039 = vmatpush1.bf16.msra.mxu0 %v2020
  %2040 = vmatprep.subr.bf16.mxu0 0
  %2041 = vmatpush1.bf16.msra.mxu0 %v2019
  %2042 = vmatprep.subr.bf16.mxu0 0
  %2043 = vmatpush2.bf16.msra.mxu0 0
  %2044 = vmatprep.subr.bf16.mxu0 0
  %2045 = vmatpush2.bf16.msra.mxu0 0
  %2046 = vmatprep.subr.bf16.mxu0 0
  %2047 = vmatpush2.bf16.msra.mxu0 0
  %2048 = vmatprep.subr.bf16.mxu0 0
  %2049 = vmatpush2.bf16.msra.mxu0 0
  %2050 = vmatprep.subr.bf16.mxu0 0
  %2051 = vmatpush2.bf16.msra.mxu0 0
  %2052 = vmatprep.subr.bf16.mxu0 0
  %2053 = vmatpush2.bf16.msra.mxu0 0
  %2054 = vmatprep.subr.bf16.mxu0 0
  %2055 = vmatpush2.bf16.msra.mxu0 0
  %2056 = vmatprep.subr.bf16.mxu0 0
  %2057 = vmatpush2.bf16.msra.mxu0 0
  %2058 = vmatprep.mubr.bf16.mxu0 0
  %2059 = vmatmul.mubr.bf16.gmra.mxu0 %v2024
  %v2060 = vpop.f32.mrf.mxu0
  %v2061 = vadd.f32 0.0, %v2060
  %v2062 = vpop.f32.mrf.mxu0
  %v2063 = vpop.f32.mrf.mxu0
  %v2064 = vadd.f32 0.0, %v2063
  %v2065 = vpop.f32.mrf.mxu0
  %2066 = vdwg.mxu0
  %v2067 = vadd.f32 %v2003, %v2061
  %v2068 = vadd.f32 %v2004, %v2064
  %2070 = vset.pattern.permute.xlu0 0
  %2071 = vperm.xlu0 %2070, %v1724
  %v2072 = vpop.permute.xlu0 %2071
  %2075 = vset.pattern.permute.xlu0 0
  %2076 = vperm.xlu0 %2075, %v1725
  %v2077 = vpop.permute.xlu0 %2076
  %v2079 = vmul.f32 %v2067, %v2072
  %v2080 = vmul.f32 %v2068, %v2077
  %v2081 = vsel %vm546, %v2079, 0.0
  %v2082 = vsel %vm546, %v2080, 0.0
  %v2083 = vadd.f32 %v2081, %v2082
  %v2084 = vrot.slane %v2083, 4
  %v2085 = vadd.f32 %v2083, %v2084
  %v2086 = vrot.slane %v2085, 2
  %v2087 = vadd.f32 %v2085, %v2086
  %v2088 = vrot.slane %v2087, 1
  %v2089 = vadd.f32 %v2087, %v2088
  %v2090 = vmul.f32 %v2089, 0.125
  %v2091 = vmul.f32 %v2079, %v2067
  %v2092 = vmul.f32 %v2080, %v2068
  %v2093 = vsel %vm546, %v2091, 0.0
  %v2094 = vsel %vm546, %v2092, 0.0
  %v2095 = vadd.f32 %v2093, %v2094
  %v2096 = vrot.slane %v2095, 4
  %v2097 = vadd.f32 %v2095, %v2096
  %v2098 = vrot.slane %v2097, 2
  %v2099 = vadd.f32 %v2097, %v2098
  %v2100 = vrot.slane %v2099, 1
  %v2101 = vadd.f32 %v2099, %v2100
  %v2102 = vmul.f32 %v2101, 0.125
  %v2103 = vmul.f32 %v2090, %v2090
  %v2104 = vsub.f32 %v2102, %v2103
  %v2105 = vsub.f32 %v2067, %v2090
  %v2106 = vsub.f32 %v2068, %v2090
  %v2107 = vadd.f32 %v2104, 1e-05
  %v2108 = vrsqrt.pop %v2107
  %v2109 = vmul.f32 %v2105, %v2108
  %v2110 = vmul.f32 %v2106, %v2108
  %v2111 = vld [vmem:[%s35] sm:$0x1]
  %v2113 = vlaneseq
  %v2114 = vshrl.u32 %v2113, 7
  %v2115 = vsub.s32 0, %v2114
  %v2116 = vrot.slane %v2111, %v2115
  %v2118 = vmul.f32 %v2109, %v2116
  %v2119 = vmul.f32 %v2110, %v2116
  %v2120 = vld [vmem:[%s37] sm:$0x1]
  %v2122 = vlaneseq
  %v2123 = vshrl.u32 %v2122, 7
  %v2124 = vsub.s32 0, %v2123
  %v2125 = vrot.slane %v2120, %v2124
  %v2127 = vadd.f32 %v2118, %v2125
  %v2128 = vadd.f32 %v2119, %v2125
  %v2129 = vxor.u32 %v2127, 2147483648
  %v2130 = vxor.u32 %v2128, 2147483648
  %v2131 = vmul.f32 %v2129, 1.442695
  %v2132 = vpow.pop %v2131
  %v2133 = vmul.f32 %v2130, 1.442695
  %v2134 = vpow.pop %v2133
  %v2135 = vadd.f32 %v2132, 1.0
  %v2136 = vadd.f32 %v2134, 1.0
  %v2137 = vrcp.pop %v2135
  %v2138 = vmul.f32 1.0, %v2137
  %v2139 = vrcp.pop %v2136
  %v2140 = vmul.f32 1.0, %v2139
  %v2141 = vmul.f32 %v2127, %v2138
  %v2142 = vmul.f32 %v2128, %v2140
  %v2143 = vmul.f32 %v2141, %v2072
  %v2144 = vmul.f32 %v2142, %v2077
  %v2145 = vld [vmem:[%s41] sm:$0x1]
  %v2147 = vlaneseq
  %v2148 = vshrl.u32 %v2147, 7
  %v2149 = vsub.s32 0, %v2148
  %v2150 = vrot.slane %v2145, %v2149
  %v2152 = vadd.f32 %v2150, 0.0
  %v2153 = vrot.slane %v2143, 4
  %v2154 = vrot.slane %v2144, 4
  %v2155 = vsel %vm159, %v2153, %v2154
  %v2156 = vsel %vm159, %v2154, %v2153
  %v2157 = vpack.c.bf16 %v2155, %v2156
  %v2158 = vld [vmem:[%s39] sm:$0xf]
  %v2159 = vld [vmem:[%s39 + $0x4] sm:$0xf]
  %v2160 = vld [vmem:[%s39 + $0x8] sm:$0xf]
  %v2161 = vld [vmem:[%s39 + $0xc] sm:$0xf]
  %v2166 = vunpack.c.l.b16 %v2158
  %v2167 = vunpack.c.l.b16 %v2159
  %v2168 = vunpack.c.l.b16 %v2160
  %v2169 = vunpack.c.l.b16 %v2161
  %v2170 = vpack.c.b16 %v2167, %v2166
  %v2171 = vpack.c.b16 %v2169, %v2168
  %v2175 = vsel %vm546, %v2157, 0
  %2177 = vmatprep.subr.bf16.mxu0 0
  %2178 = vmatpush1.bf16.msra.mxu0 0
  %2179 = vmatprep.subr.bf16.mxu0 0
  %2180 = vmatpush1.bf16.msra.mxu0 0
  %2181 = vmatprep.subr.bf16.mxu0 0
  %2182 = vmatpush1.bf16.msra.mxu0 0
  %2183 = vmatprep.subr.bf16.mxu0 0
  %2184 = vmatpush1.bf16.msra.mxu0 0
  %2185 = vmatprep.subr.bf16.mxu0 0
  %2186 = vmatpush1.bf16.msra.mxu0 0
  %2187 = vmatprep.subr.bf16.mxu0 0
  %2188 = vmatpush1.bf16.msra.mxu0 0
  %2189 = vmatprep.subr.bf16.mxu0 0
  %2190 = vmatpush1.bf16.msra.mxu0 %v2171
  %2191 = vmatprep.subr.bf16.mxu0 0
  %2192 = vmatpush1.bf16.msra.mxu0 %v2170
  %2193 = vmatprep.subr.bf16.mxu0 0
  %2194 = vmatpush2.bf16.msra.mxu0 0
  %2195 = vmatprep.subr.bf16.mxu0 0
  %2196 = vmatpush2.bf16.msra.mxu0 0
  %2197 = vmatprep.subr.bf16.mxu0 0
  %2198 = vmatpush2.bf16.msra.mxu0 0
  %2199 = vmatprep.subr.bf16.mxu0 0
  %2200 = vmatpush2.bf16.msra.mxu0 0
  %2201 = vmatprep.subr.bf16.mxu0 0
  %2202 = vmatpush2.bf16.msra.mxu0 0
  %2203 = vmatprep.subr.bf16.mxu0 0
  %2204 = vmatpush2.bf16.msra.mxu0 0
  %2205 = vmatprep.subr.bf16.mxu0 0
  %2206 = vmatpush2.bf16.msra.mxu0 0
  %2207 = vmatprep.subr.bf16.mxu0 0
  %2208 = vmatpush2.bf16.msra.mxu0 0
  %2209 = vmatprep.mubr.bf16.mxu0 0
  %2210 = vmatmul.mubr.bf16.gmra.mxu0 %v2175
  %v2211 = vpop.f32.mrf.mxu0
  %v2212 = vadd.f32 0.0, %v2211
  %v2213 = vpop.f32.mrf.mxu0
  %v2214 = vpop.f32.mrf.mxu0
  %v2215 = vadd.f32 0.0, %v2214
  %v2216 = vpop.f32.mrf.mxu0
  %2217 = vdwg.mxu0
  %v2218 = vadd.f32 %v2152, %v2212
  %v2219 = vadd.f32 %v2152, %v2215
  %v2220 = vrot.slane %v2143, 5
  %v2221 = vrot.slane %v2144, 5
  %v2222 = vsel %vm235, %v2220, %v2221
  %v2223 = vsel %vm235, %v2221, %v2220
  %v2224 = vpack.c.bf16 %v2222, %v2223
  %s2225 = scalar_lea.vmem %s39, 16
  %v2226 = vld [vmem:[%s2225] sm:$0xf]
  %v2227 = vld [vmem:[%s2225 + $0x4] sm:$0xf]
  %v2228 = vld [vmem:[%s2225 + $0x8] sm:$0xf]
  %v2229 = vld [vmem:[%s2225 + $0xc] sm:$0xf]
  %v2234 = vunpack.c.l.b16 %v2226
  %v2235 = vunpack.c.l.b16 %v2227
  %v2236 = vunpack.c.l.b16 %v2228
  %v2237 = vunpack.c.l.b16 %v2229
  %v2238 = vpack.c.b16 %v2235, %v2234
  %v2239 = vpack.c.b16 %v2237, %v2236
  %v2243 = vsel %vm546, %v2224, 0
  %2245 = vmatprep.subr.bf16.mxu0 0
  %2246 = vmatpush1.bf16.msra.mxu0 0
  %2247 = vmatprep.subr.bf16.mxu0 0
  %2248 = vmatpush1.bf16.msra.mxu0 0
  %2249 = vmatprep.subr.bf16.mxu0 0
  %2250 = vmatpush1.bf16.msra.mxu0 0
  %2251 = vmatprep.subr.bf16.mxu0 0
  %2252 = vmatpush1.bf16.msra.mxu0 0
  %2253 = vmatprep.subr.bf16.mxu0 0
  %2254 = vmatpush1.bf16.msra.mxu0 0
  %2255 = vmatprep.subr.bf16.mxu0 0
  %2256 = vmatpush1.bf16.msra.mxu0 0
  %2257 = vmatprep.subr.bf16.mxu0 0
  %2258 = vmatpush1.bf16.msra.mxu0 %v2239
  %2259 = vmatprep.subr.bf16.mxu0 0
  %2260 = vmatpush1.bf16.msra.mxu0 %v2238
  %2261 = vmatprep.subr.bf16.mxu0 0
  %2262 = vmatpush2.bf16.msra.mxu0 0
  %2263 = vmatprep.subr.bf16.mxu0 0
  %2264 = vmatpush2.bf16.msra.mxu0 0
  %2265 = vmatprep.subr.bf16.mxu0 0
  %2266 = vmatpush2.bf16.msra.mxu0 0
  %2267 = vmatprep.subr.bf16.mxu0 0
  %2268 = vmatpush2.bf16.msra.mxu0 0
  %2269 = vmatprep.subr.bf16.mxu0 0
  %2270 = vmatpush2.bf16.msra.mxu0 0
  %2271 = vmatprep.subr.bf16.mxu0 0
  %2272 = vmatpush2.bf16.msra.mxu0 0
  %2273 = vmatprep.subr.bf16.mxu0 0
  %2274 = vmatpush2.bf16.msra.mxu0 0
  %2275 = vmatprep.subr.bf16.mxu0 0
  %2276 = vmatpush2.bf16.msra.mxu0 0
  %2277 = vmatprep.mubr.bf16.mxu0 0
  %2278 = vmatmul.mubr.bf16.gmra.mxu0 %v2243
  %v2279 = vpop.f32.mrf.mxu0
  %v2280 = vadd.f32 0.0, %v2279
  %v2281 = vpop.f32.mrf.mxu0
  %v2282 = vpop.f32.mrf.mxu0
  %v2283 = vadd.f32 0.0, %v2282
  %v2284 = vpop.f32.mrf.mxu0
  %2285 = vdwg.mxu0
  %v2286 = vadd.f32 %v2218, %v2280
  %v2287 = vadd.f32 %v2219, %v2283
  %v2288 = vrot.slane %v2143, 6
  %v2289 = vrot.slane %v2144, 6
  %v2290 = vsel %vm310, %v2288, %v2289
  %v2291 = vsel %vm310, %v2289, %v2288
  %v2292 = vpack.c.bf16 %v2290, %v2291
  %s2293 = scalar_lea.vmem %s39, 32
  %v2294 = vld [vmem:[%s2293] sm:$0xf]
  %v2295 = vld [vmem:[%s2293 + $0x4] sm:$0xf]
  %v2296 = vld [vmem:[%s2293 + $0x8] sm:$0xf]
  %v2297 = vld [vmem:[%s2293 + $0xc] sm:$0xf]
  %v2302 = vunpack.c.l.b16 %v2294
  %v2303 = vunpack.c.l.b16 %v2295
  %v2304 = vunpack.c.l.b16 %v2296
  %v2305 = vunpack.c.l.b16 %v2297
  %v2306 = vpack.c.b16 %v2303, %v2302
  %v2307 = vpack.c.b16 %v2305, %v2304
  %v2311 = vsel %vm546, %v2292, 0
  %2313 = vmatprep.subr.bf16.mxu0 0
  %2314 = vmatpush1.bf16.msra.mxu0 0
  %2315 = vmatprep.subr.bf16.mxu0 0
  %2316 = vmatpush1.bf16.msra.mxu0 0
  %2317 = vmatprep.subr.bf16.mxu0 0
  %2318 = vmatpush1.bf16.msra.mxu0 0
  %2319 = vmatprep.subr.bf16.mxu0 0
  %2320 = vmatpush1.bf16.msra.mxu0 0
  %2321 = vmatprep.subr.bf16.mxu0 0
  %2322 = vmatpush1.bf16.msra.mxu0 0
  %2323 = vmatprep.subr.bf16.mxu0 0
  %2324 = vmatpush1.bf16.msra.mxu0 0
  %2325 = vmatprep.subr.bf16.mxu0 0
  %2326 = vmatpush1.bf16.msra.mxu0 %v2307
  %2327 = vmatprep.subr.bf16.mxu0 0
  %2328 = vmatpush1.bf16.msra.mxu0 %v2306
  %2329 = vmatprep.subr.bf16.mxu0 0
  %2330 = vmatpush2.bf16.msra.mxu0 0
  %2331 = vmatprep.subr.bf16.mxu0 0
  %2332 = vmatpush2.bf16.msra.mxu0 0
  %2333 = vmatprep.subr.bf16.mxu0 0
  %2334 = vmatpush2.bf16.msra.mxu0 0
  %2335 = vmatprep.subr.bf16.mxu0 0
  %2336 = vmatpush2.bf16.msra.mxu0 0
  %2337 = vmatprep.subr.bf16.mxu0 0
  %2338 = vmatpush2.bf16.msra.mxu0 0
  %2339 = vmatprep.subr.bf16.mxu0 0
  %2340 = vmatpush2.bf16.msra.mxu0 0
  %2341 = vmatprep.subr.bf16.mxu0 0
  %2342 = vmatpush2.bf16.msra.mxu0 0
  %2343 = vmatprep.subr.bf16.mxu0 0
  %2344 = vmatpush2.bf16.msra.mxu0 0
  %2345 = vmatprep.mubr.bf16.mxu0 0
  %2346 = vmatmul.mubr.bf16.gmra.mxu0 %v2311
  %v2347 = vpop.f32.mrf.mxu0
  %v2348 = vadd.f32 0.0, %v2347
  %v2349 = vpop.f32.mrf.mxu0
  %v2350 = vpop.f32.mrf.mxu0
  %v2351 = vadd.f32 0.0, %v2350
  %v2352 = vpop.f32.mrf.mxu0
  %2353 = vdwg.mxu0
  %v2354 = vadd.f32 %v2286, %v2348
  %v2355 = vadd.f32 %v2287, %v2351
  %v2356 = vrot.slane %v2143, 7
  %v2357 = vrot.slane %v2144, 7
  %v2358 = vsel %vm385, %v2356, %v2357
  %v2359 = vsel %vm385, %v2357, %v2356
  %v2360 = vpack.c.bf16 %v2358, %v2359
  %s2361 = scalar_lea.vmem %s39, 48
  %v2362 = vld [vmem:[%s2361] sm:$0xf]
  %v2363 = vld [vmem:[%s2361 + $0x4] sm:$0xf]
  %v2364 = vld [vmem:[%s2361 + $0x8] sm:$0xf]
  %v2365 = vld [vmem:[%s2361 + $0xc] sm:$0xf]
  %v2370 = vunpack.c.l.b16 %v2362
  %v2371 = vunpack.c.l.b16 %v2363
  %v2372 = vunpack.c.l.b16 %v2364
  %v2373 = vunpack.c.l.b16 %v2365
  %v2374 = vpack.c.b16 %v2371, %v2370
  %v2375 = vpack.c.b16 %v2373, %v2372
  %v2379 = vsel %vm546, %v2360, 0
  %2381 = vmatprep.subr.bf16.mxu0 0
  %2382 = vmatpush1.bf16.msra.mxu0 0
  %2383 = vmatprep.subr.bf16.mxu0 0
  %2384 = vmatpush1.bf16.msra.mxu0 0
  %2385 = vmatprep.subr.bf16.mxu0 0
  %2386 = vmatpush1.bf16.msra.mxu0 0
  %2387 = vmatprep.subr.bf16.mxu0 0
  %2388 = vmatpush1.bf16.msra.mxu0 0
  %2389 = vmatprep.subr.bf16.mxu0 0
  %2390 = vmatpush1.bf16.msra.mxu0 0
  %2391 = vmatprep.subr.bf16.mxu0 0
  %2392 = vmatpush1.bf16.msra.mxu0 0
  %2393 = vmatprep.subr.bf16.mxu0 0
  %2394 = vmatpush1.bf16.msra.mxu0 %v2375
  %2395 = vmatprep.subr.bf16.mxu0 0
  %2396 = vmatpush1.bf16.msra.mxu0 %v2374
  %2397 = vmatprep.subr.bf16.mxu0 0
  %2398 = vmatpush2.bf16.msra.mxu0 0
  %2399 = vmatprep.subr.bf16.mxu0 0
  %2400 = vmatpush2.bf16.msra.mxu0 0
  %2401 = vmatprep.subr.bf16.mxu0 0
  %2402 = vmatpush2.bf16.msra.mxu0 0
  %2403 = vmatprep.subr.bf16.mxu0 0
  %2404 = vmatpush2.bf16.msra.mxu0 0
  %2405 = vmatprep.subr.bf16.mxu0 0
  %2406 = vmatpush2.bf16.msra.mxu0 0
  %2407 = vmatprep.subr.bf16.mxu0 0
  %2408 = vmatpush2.bf16.msra.mxu0 0
  %2409 = vmatprep.subr.bf16.mxu0 0
  %2410 = vmatpush2.bf16.msra.mxu0 0
  %2411 = vmatprep.subr.bf16.mxu0 0
  %2412 = vmatpush2.bf16.msra.mxu0 0
  %2413 = vmatprep.mubr.bf16.mxu0 0
  %2414 = vmatmul.mubr.bf16.gmra.mxu0 %v2379
  %v2415 = vpop.f32.mrf.mxu0
  %v2416 = vadd.f32 0.0, %v2415
  %v2417 = vpop.f32.mrf.mxu0
  %v2418 = vpop.f32.mrf.mxu0
  %v2419 = vadd.f32 0.0, %v2418
  %v2420 = vpop.f32.mrf.mxu0
  %2421 = vdwg.mxu0
  %v2422 = vadd.f32 %v2354, %v2416
  %v2423 = vadd.f32 %v2355, %v2419
  %v2424 = vpack.c.bf16 %v2144, %v2143
  %s2425 = scalar_lea.vmem %s39, 64
  %v2426 = vld [vmem:[%s2425] sm:$0xf]
  %v2427 = vld [vmem:[%s2425 + $0x4] sm:$0xf]
  %v2428 = vld [vmem:[%s2425 + $0x8] sm:$0xf]
  %v2429 = vld [vmem:[%s2425 + $0xc] sm:$0xf]
  %v2434 = vunpack.c.l.b16 %v2426
  %v2435 = vunpack.c.l.b16 %v2427
  %v2436 = vunpack.c.l.b16 %v2428
  %v2437 = vunpack.c.l.b16 %v2429
  %v2438 = vpack.c.b16 %v2435, %v2434
  %v2439 = vpack.c.b16 %v2437, %v2436
  %v2443 = vsel %vm546, %v2424, 0
  %2445 = vmatprep.subr.bf16.mxu0 0
  %2446 = vmatpush1.bf16.msra.mxu0 0
  %2447 = vmatprep.subr.bf16.mxu0 0
  %2448 = vmatpush1.bf16.msra.mxu0 0
  %2449 = vmatprep.subr.bf16.mxu0 0
  %2450 = vmatpush1.bf16.msra.mxu0 0
  %2451 = vmatprep.subr.bf16.mxu0 0
  %2452 = vmatpush1.bf16.msra.mxu0 0
  %2453 = vmatprep.subr.bf16.mxu0 0
  %2454 = vmatpush1.bf16.msra.mxu0 0
  %2455 = vmatprep.subr.bf16.mxu0 0
  %2456 = vmatpush1.bf16.msra.mxu0 0
  %2457 = vmatprep.subr.bf16.mxu0 0
  %2458 = vmatpush1.bf16.msra.mxu0 %v2439
  %2459 = vmatprep.subr.bf16.mxu0 0
  %2460 = vmatpush1.bf16.msra.mxu0 %v2438
  %2461 = vmatprep.subr.bf16.mxu0 0
  %2462 = vmatpush2.bf16.msra.mxu0 0
  %2463 = vmatprep.subr.bf16.mxu0 0
  %2464 = vmatpush2.bf16.msra.mxu0 0
  %2465 = vmatprep.subr.bf16.mxu0 0
  %2466 = vmatpush2.bf16.msra.mxu0 0
  %2467 = vmatprep.subr.bf16.mxu0 0
  %2468 = vmatpush2.bf16.msra.mxu0 0
  %2469 = vmatprep.subr.bf16.mxu0 0
  %2470 = vmatpush2.bf16.msra.mxu0 0
  %2471 = vmatprep.subr.bf16.mxu0 0
  %2472 = vmatpush2.bf16.msra.mxu0 0
  %2473 = vmatprep.subr.bf16.mxu0 0
  %2474 = vmatpush2.bf16.msra.mxu0 0
  %2475 = vmatprep.subr.bf16.mxu0 0
  %2476 = vmatpush2.bf16.msra.mxu0 0
  %2477 = vmatprep.mubr.bf16.mxu0 0
  %2478 = vmatmul.mubr.bf16.gmra.mxu0 %v2443
  %v2479 = vpop.f32.mrf.mxu0
  %v2480 = vadd.f32 0.0, %v2479
  %v2481 = vpop.f32.mrf.mxu0
  %v2482 = vpop.f32.mrf.mxu0
  %v2483 = vadd.f32 0.0, %v2482
  %v2484 = vpop.f32.mrf.mxu0
  %2485 = vdwg.mxu0
  %v2486 = vadd.f32 %v2422, %v2480
  %v2487 = vadd.f32 %v2423, %v2483
  %v2488 = vmul.f32 %v2486, %v2072
  %v2489 = vmul.f32 %v2487, %v2077
  %v2490 = vsel %vm546, %v2488, 0.0
  %v2491 = vsel %vm546, %v2489, 0.0
  %v2492 = vadd.f32 %v2490, %v2491
  %v2493 = vrot.slane %v2492, 4
  %v2494 = vadd.f32 %v2492, %v2493
  %v2495 = vrot.slane %v2494, 2
  %v2496 = vadd.f32 %v2494, %v2495
  %v2497 = vrot.slane %v2496, 1
  %v2498 = vadd.f32 %v2496, %v2497
  %v2499 = vmul.f32 %v2498, 0.125
  %v2500 = vmul.f32 %v2488, %v2486
  %v2501 = vmul.f32 %v2489, %v2487
  %v2502 = vsel %vm546, %v2500, 0.0
  %v2503 = vsel %vm546, %v2501, 0.0
  %v2504 = vadd.f32 %v2502, %v2503
  %v2505 = vrot.slane %v2504, 4
  %v2506 = vadd.f32 %v2504, %v2505
  %v2507 = vrot.slane %v2506, 2
  %v2508 = vadd.f32 %v2506, %v2507
  %v2509 = vrot.slane %v2508, 1
  %v2510 = vadd.f32 %v2508, %v2509
  %v2511 = vmul.f32 %v2510, 0.125
  %v2512 = vmul.f32 %v2499, %v2499
  %v2513 = vsub.f32 %v2511, %v2512
  %v2514 = vsub.f32 %v2486, %v2499
  %v2515 = vsub.f32 %v2487, %v2499
  %v2516 = vadd.f32 %v2513, 1e-05
  %v2517 = vrsqrt.pop %v2516
  %v2518 = vmul.f32 %v2514, %v2517
  %v2519 = vmul.f32 %v2515, %v2517
  %v2520 = vld [vmem:[%s43] sm:$0x1]
  %v2522 = vlaneseq
  %v2523 = vshrl.u32 %v2522, 7
  %v2524 = vsub.s32 0, %v2523
  %v2525 = vrot.slane %v2520, %v2524
  %v2527 = vmul.f32 %v2518, %v2525
  %v2528 = vmul.f32 %v2519, %v2525
  %v2529 = vld [vmem:[%s45] sm:$0x1]
  %v2531 = vlaneseq
  %v2532 = vshrl.u32 %v2531, 7
  %v2533 = vsub.s32 0, %v2532
  %v2534 = vrot.slane %v2529, %v2533
  %v2536 = vadd.f32 %v2527, %v2534
  %v2537 = vadd.f32 %v2528, %v2534
  %v2538 = vxor.u32 %v2536, 2147483648
  %v2539 = vxor.u32 %v2537, 2147483648
  %v2540 = vmul.f32 %v2538, 1.442695
  %v2541 = vpow.pop %v2540
  %v2542 = vmul.f32 %v2539, 1.442695
  %v2543 = vpow.pop %v2542
  %v2544 = vadd.f32 %v2541, 1.0
  %v2545 = vadd.f32 %v2543, 1.0
  %v2546 = vrcp.pop %v2544
  %v2547 = vmul.f32 1.0, %v2546
  %v2548 = vrcp.pop %v2545
  %v2549 = vmul.f32 1.0, %v2548
  %v2550 = vmul.f32 %v2536, %v2547
  %v2551 = vmul.f32 %v2537, %v2549
  %v2552 = vmul.f32 %v2550, %v2072
  %v2553 = vmul.f32 %v2551, %v2077
  %v2554 = vld [vmem:[%s49] sm:$0x1]
  %v2556 = vlaneseq
  %v2557 = vshrl.u32 %v2556, 7
  %v2558 = vsub.s32 0, %v2557
  %v2559 = vrot.slane %v2554, %v2558
  %v2561 = vadd.f32 %v2559, 0.0
  %v2562 = vrot.slane %v2552, 4
  %v2563 = vrot.slane %v2553, 4
  %v2564 = vsel %vm159, %v2562, %v2563
  %v2565 = vsel %vm159, %v2563, %v2562
  %v2566 = vpack.c.bf16 %v2564, %v2565
  %v2567 = vld [vmem:[%s47] sm:$0xf]
  %v2568 = vld [vmem:[%s47 + $0x4] sm:$0xf]
  %v2569 = vld [vmem:[%s47 + $0x8] sm:$0xf]
  %v2570 = vld [vmem:[%s47 + $0xc] sm:$0xf]
  %v2575 = vunpack.c.l.b16 %v2567
  %v2576 = vunpack.c.l.b16 %v2568
  %v2577 = vunpack.c.l.b16 %v2569
  %v2578 = vunpack.c.l.b16 %v2570
  %v2579 = vpack.c.b16 %v2576, %v2575
  %v2580 = vpack.c.b16 %v2578, %v2577
  %v2584 = vsel %vm546, %v2566, 0
  %2586 = vmatprep.subr.bf16.mxu0 0
  %2587 = vmatpush1.bf16.msra.mxu0 0
  %2588 = vmatprep.subr.bf16.mxu0 0
  %2589 = vmatpush1.bf16.msra.mxu0 0
  %2590 = vmatprep.subr.bf16.mxu0 0
  %2591 = vmatpush1.bf16.msra.mxu0 0
  %2592 = vmatprep.subr.bf16.mxu0 0
  %2593 = vmatpush1.bf16.msra.mxu0 0
  %2594 = vmatprep.subr.bf16.mxu0 0
  %2595 = vmatpush1.bf16.msra.mxu0 0
  %2596 = vmatprep.subr.bf16.mxu0 0
  %2597 = vmatpush1.bf16.msra.mxu0 0
  %2598 = vmatprep.subr.bf16.mxu0 0
  %2599 = vmatpush1.bf16.msra.mxu0 %v2580
  %2600 = vmatprep.subr.bf16.mxu0 0
  %2601 = vmatpush1.bf16.msra.mxu0 %v2579
  %2602 = vmatprep.subr.bf16.mxu0 0
  %2603 = vmatpush2.bf16.msra.mxu0 0
  %2604 = vmatprep.subr.bf16.mxu0 0
  %2605 = vmatpush2.bf16.msra.mxu0 0
  %2606 = vmatprep.subr.bf16.mxu0 0
  %2607 = vmatpush2.bf16.msra.mxu0 0
  %2608 = vmatprep.subr.bf16.mxu0 0
  %2609 = vmatpush2.bf16.msra.mxu0 0
  %2610 = vmatprep.subr.bf16.mxu0 0
  %2611 = vmatpush2.bf16.msra.mxu0 0
  %2612 = vmatprep.subr.bf16.mxu0 0
  %2613 = vmatpush2.bf16.msra.mxu0 0
  %2614 = vmatprep.subr.bf16.mxu0 0
  %2615 = vmatpush2.bf16.msra.mxu0 0
  %2616 = vmatprep.subr.bf16.mxu0 0
  %2617 = vmatpush2.bf16.msra.mxu0 0
  %2618 = vmatprep.mubr.bf16.mxu0 0
  %2619 = vmatmul.mubr.bf16.gmra.mxu0 %v2584
  %v2620 = vpop.f32.mrf.mxu0
  %v2621 = vadd.f32 0.0, %v2620
  %v2622 = vpop.f32.mrf.mxu0
  %v2623 = vpop.f32.mrf.mxu0
  %v2624 = vadd.f32 0.0, %v2623
  %v2625 = vpop.f32.mrf.mxu0
  %2626 = vdwg.mxu0
  %v2627 = vadd.f32 %v2561, %v2621
  %v2628 = vadd.f32 %v2561, %v2624
  %v2629 = vrot.slane %v2552, 5
  %v2630 = vrot.slane %v2553, 5
  %v2631 = vsel %vm235, %v2629, %v2630
  %v2632 = vsel %vm235, %v2630, %v2629
  %v2633 = vpack.c.bf16 %v2631, %v2632
  %s2634 = scalar_lea.vmem %s47, 16
  %v2635 = vld [vmem:[%s2634] sm:$0xf]
  %v2636 = vld [vmem:[%s2634 + $0x4] sm:$0xf]
  %v2637 = vld [vmem:[%s2634 + $0x8] sm:$0xf]
  %v2638 = vld [vmem:[%s2634 + $0xc] sm:$0xf]
  %v2643 = vunpack.c.l.b16 %v2635
  %v2644 = vunpack.c.l.b16 %v2636
  %v2645 = vunpack.c.l.b16 %v2637
  %v2646 = vunpack.c.l.b16 %v2638
  %v2647 = vpack.c.b16 %v2644, %v2643
  %v2648 = vpack.c.b16 %v2646, %v2645
  %v2652 = vsel %vm546, %v2633, 0
  %2654 = vmatprep.subr.bf16.mxu0 0
  %2655 = vmatpush1.bf16.msra.mxu0 0
  %2656 = vmatprep.subr.bf16.mxu0 0
  %2657 = vmatpush1.bf16.msra.mxu0 0
  %2658 = vmatprep.subr.bf16.mxu0 0
  %2659 = vmatpush1.bf16.msra.mxu0 0
  %2660 = vmatprep.subr.bf16.mxu0 0
  %2661 = vmatpush1.bf16.msra.mxu0 0
  %2662 = vmatprep.subr.bf16.mxu0 0
  %2663 = vmatpush1.bf16.msra.mxu0 0
  %2664 = vmatprep.subr.bf16.mxu0 0
  %2665 = vmatpush1.bf16.msra.mxu0 0
  %2666 = vmatprep.subr.bf16.mxu0 0
  %2667 = vmatpush1.bf16.msra.mxu0 %v2648
  %2668 = vmatprep.subr.bf16.mxu0 0
  %2669 = vmatpush1.bf16.msra.mxu0 %v2647
  %2670 = vmatprep.subr.bf16.mxu0 0
  %2671 = vmatpush2.bf16.msra.mxu0 0
  %2672 = vmatprep.subr.bf16.mxu0 0
  %2673 = vmatpush2.bf16.msra.mxu0 0
  %2674 = vmatprep.subr.bf16.mxu0 0
  %2675 = vmatpush2.bf16.msra.mxu0 0
  %2676 = vmatprep.subr.bf16.mxu0 0
  %2677 = vmatpush2.bf16.msra.mxu0 0
  %2678 = vmatprep.subr.bf16.mxu0 0
  %2679 = vmatpush2.bf16.msra.mxu0 0
  %2680 = vmatprep.subr.bf16.mxu0 0
  %2681 = vmatpush2.bf16.msra.mxu0 0
  %2682 = vmatprep.subr.bf16.mxu0 0
  %2683 = vmatpush2.bf16.msra.mxu0 0
  %2684 = vmatprep.subr.bf16.mxu0 0
  %2685 = vmatpush2.bf16.msra.mxu0 0
  %2686 = vmatprep.mubr.bf16.mxu0 0
  %2687 = vmatmul.mubr.bf16.gmra.mxu0 %v2652
  %v2688 = vpop.f32.mrf.mxu0
  %v2689 = vadd.f32 0.0, %v2688
  %v2690 = vpop.f32.mrf.mxu0
  %v2691 = vpop.f32.mrf.mxu0
  %v2692 = vadd.f32 0.0, %v2691
  %v2693 = vpop.f32.mrf.mxu0
  %2694 = vdwg.mxu0
  %v2695 = vadd.f32 %v2627, %v2689
  %v2696 = vadd.f32 %v2628, %v2692
  %v2697 = vrot.slane %v2552, 6
  %v2698 = vrot.slane %v2553, 6
  %v2699 = vsel %vm310, %v2697, %v2698
  %v2700 = vsel %vm310, %v2698, %v2697
  %v2701 = vpack.c.bf16 %v2699, %v2700
  %s2702 = scalar_lea.vmem %s47, 32
  %v2703 = vld [vmem:[%s2702] sm:$0xf]
  %v2704 = vld [vmem:[%s2702 + $0x4] sm:$0xf]
  %v2705 = vld [vmem:[%s2702 + $0x8] sm:$0xf]
  %v2706 = vld [vmem:[%s2702 + $0xc] sm:$0xf]
  %v2711 = vunpack.c.l.b16 %v2703
  %v2712 = vunpack.c.l.b16 %v2704
  %v2713 = vunpack.c.l.b16 %v2705
  %v2714 = vunpack.c.l.b16 %v2706
  %v2715 = vpack.c.b16 %v2712, %v2711
  %v2716 = vpack.c.b16 %v2714, %v2713
  %v2720 = vsel %vm546, %v2701, 0
  %2722 = vmatprep.subr.bf16.mxu0 0
  %2723 = vmatpush1.bf16.msra.mxu0 0
  %2724 = vmatprep.subr.bf16.mxu0 0
  %2725 = vmatpush1.bf16.msra.mxu0 0
  %2726 = vmatprep.subr.bf16.mxu0 0
  %2727 = vmatpush1.bf16.msra.mxu0 0
  %2728 = vmatprep.subr.bf16.mxu0 0
  %2729 = vmatpush1.bf16.msra.mxu0 0
  %2730 = vmatprep.subr.bf16.mxu0 0
  %2731 = vmatpush1.bf16.msra.mxu0 0
  %2732 = vmatprep.subr.bf16.mxu0 0
  %2733 = vmatpush1.bf16.msra.mxu0 0
  %2734 = vmatprep.subr.bf16.mxu0 0
  %2735 = vmatpush1.bf16.msra.mxu0 %v2716
  %2736 = vmatprep.subr.bf16.mxu0 0
  %2737 = vmatpush1.bf16.msra.mxu0 %v2715
  %2738 = vmatprep.subr.bf16.mxu0 0
  %2739 = vmatpush2.bf16.msra.mxu0 0
  %2740 = vmatprep.subr.bf16.mxu0 0
  %2741 = vmatpush2.bf16.msra.mxu0 0
  %2742 = vmatprep.subr.bf16.mxu0 0
  %2743 = vmatpush2.bf16.msra.mxu0 0
  %2744 = vmatprep.subr.bf16.mxu0 0
  %2745 = vmatpush2.bf16.msra.mxu0 0
  %2746 = vmatprep.subr.bf16.mxu0 0
  %2747 = vmatpush2.bf16.msra.mxu0 0
  %2748 = vmatprep.subr.bf16.mxu0 0
  %2749 = vmatpush2.bf16.msra.mxu0 0
  %2750 = vmatprep.subr.bf16.mxu0 0
  %2751 = vmatpush2.bf16.msra.mxu0 0
  %2752 = vmatprep.subr.bf16.mxu0 0
  %2753 = vmatpush2.bf16.msra.mxu0 0
  %2754 = vmatprep.mubr.bf16.mxu0 0
  %2755 = vmatmul.mubr.bf16.gmra.mxu0 %v2720
  %v2756 = vpop.f32.mrf.mxu0
  %v2757 = vadd.f32 0.0, %v2756
  %v2758 = vpop.f32.mrf.mxu0
  %v2759 = vpop.f32.mrf.mxu0
  %v2760 = vadd.f32 0.0, %v2759
  %v2761 = vpop.f32.mrf.mxu0
  %2762 = vdwg.mxu0
  %v2763 = vadd.f32 %v2695, %v2757
  %v2764 = vadd.f32 %v2696, %v2760
  %v2765 = vrot.slane %v2552, 7
  %v2766 = vrot.slane %v2553, 7
  %v2767 = vsel %vm385, %v2765, %v2766
  %v2768 = vsel %vm385, %v2766, %v2765
  %v2769 = vpack.c.bf16 %v2767, %v2768
  %s2770 = scalar_lea.vmem %s47, 48
  %v2771 = vld [vmem:[%s2770] sm:$0xf]
  %v2772 = vld [vmem:[%s2770 + $0x4] sm:$0xf]
  %v2773 = vld [vmem:[%s2770 + $0x8] sm:$0xf]
  %v2774 = vld [vmem:[%s2770 + $0xc] sm:$0xf]
  %v2779 = vunpack.c.l.b16 %v2771
  %v2780 = vunpack.c.l.b16 %v2772
  %v2781 = vunpack.c.l.b16 %v2773
  %v2782 = vunpack.c.l.b16 %v2774
  %v2783 = vpack.c.b16 %v2780, %v2779
  %v2784 = vpack.c.b16 %v2782, %v2781
  %v2788 = vsel %vm546, %v2769, 0
  %2790 = vmatprep.subr.bf16.mxu0 0
  %2791 = vmatpush1.bf16.msra.mxu0 0
  %2792 = vmatprep.subr.bf16.mxu0 0
  %2793 = vmatpush1.bf16.msra.mxu0 0
  %2794 = vmatprep.subr.bf16.mxu0 0
  %2795 = vmatpush1.bf16.msra.mxu0 0
  %2796 = vmatprep.subr.bf16.mxu0 0
  %2797 = vmatpush1.bf16.msra.mxu0 0
  %2798 = vmatprep.subr.bf16.mxu0 0
  %2799 = vmatpush1.bf16.msra.mxu0 0
  %2800 = vmatprep.subr.bf16.mxu0 0
  %2801 = vmatpush1.bf16.msra.mxu0 0
  %2802 = vmatprep.subr.bf16.mxu0 0
  %2803 = vmatpush1.bf16.msra.mxu0 %v2784
  %2804 = vmatprep.subr.bf16.mxu0 0
  %2805 = vmatpush1.bf16.msra.mxu0 %v2783
  %2806 = vmatprep.subr.bf16.mxu0 0
  %2807 = vmatpush2.bf16.msra.mxu0 0
  %2808 = vmatprep.subr.bf16.mxu0 0
  %2809 = vmatpush2.bf16.msra.mxu0 0
  %2810 = vmatprep.subr.bf16.mxu0 0
  %2811 = vmatpush2.bf16.msra.mxu0 0
  %2812 = vmatprep.subr.bf16.mxu0 0
  %2813 = vmatpush2.bf16.msra.mxu0 0
  %2814 = vmatprep.subr.bf16.mxu0 0
  %2815 = vmatpush2.bf16.msra.mxu0 0
  %2816 = vmatprep.subr.bf16.mxu0 0
  %2817 = vmatpush2.bf16.msra.mxu0 0
  %2818 = vmatprep.subr.bf16.mxu0 0
  %2819 = vmatpush2.bf16.msra.mxu0 0
  %2820 = vmatprep.subr.bf16.mxu0 0
  %2821 = vmatpush2.bf16.msra.mxu0 0
  %2822 = vmatprep.mubr.bf16.mxu0 0
  %2823 = vmatmul.mubr.bf16.gmra.mxu0 %v2788
  %v2824 = vpop.f32.mrf.mxu0
  %v2825 = vadd.f32 0.0, %v2824
  %v2826 = vpop.f32.mrf.mxu0
  %v2827 = vpop.f32.mrf.mxu0
  %v2828 = vadd.f32 0.0, %v2827
  %v2829 = vpop.f32.mrf.mxu0
  %2830 = vdwg.mxu0
  %v2831 = vadd.f32 %v2763, %v2825
  %v2832 = vadd.f32 %v2764, %v2828
  %v2833 = vpack.c.bf16 %v2553, %v2552
  %s2834 = scalar_lea.vmem %s47, 64
  %v2835 = vld [vmem:[%s2834] sm:$0xf]
  %v2836 = vld [vmem:[%s2834 + $0x4] sm:$0xf]
  %v2837 = vld [vmem:[%s2834 + $0x8] sm:$0xf]
  %v2838 = vld [vmem:[%s2834 + $0xc] sm:$0xf]
  %v2843 = vunpack.c.l.b16 %v2835
  %v2844 = vunpack.c.l.b16 %v2836
  %v2845 = vunpack.c.l.b16 %v2837
  %v2846 = vunpack.c.l.b16 %v2838
  %v2847 = vpack.c.b16 %v2844, %v2843
  %v2848 = vpack.c.b16 %v2846, %v2845
  %v2852 = vsel %vm546, %v2833, 0
  %2854 = vmatprep.subr.bf16.mxu0 0
  %2855 = vmatpush1.bf16.msra.mxu0 0
  %2856 = vmatprep.subr.bf16.mxu0 0
  %2857 = vmatpush1.bf16.msra.mxu0 0
  %2858 = vmatprep.subr.bf16.mxu0 0
  %2859 = vmatpush1.bf16.msra.mxu0 0
  %2860 = vmatprep.subr.bf16.mxu0 0
  %2861 = vmatpush1.bf16.msra.mxu0 0
  %2862 = vmatprep.subr.bf16.mxu0 0
  %2863 = vmatpush1.bf16.msra.mxu0 0
  %2864 = vmatprep.subr.bf16.mxu0 0
  %2865 = vmatpush1.bf16.msra.mxu0 0
  %2866 = vmatprep.subr.bf16.mxu0 0
  %2867 = vmatpush1.bf16.msra.mxu0 %v2848
  %2868 = vmatprep.subr.bf16.mxu0 0
  %2869 = vmatpush1.bf16.msra.mxu0 %v2847
  %2870 = vmatprep.subr.bf16.mxu0 0
  %2871 = vmatpush2.bf16.msra.mxu0 0
  %2872 = vmatprep.subr.bf16.mxu0 0
  %2873 = vmatpush2.bf16.msra.mxu0 0
  %2874 = vmatprep.subr.bf16.mxu0 0
  %2875 = vmatpush2.bf16.msra.mxu0 0
  %2876 = vmatprep.subr.bf16.mxu0 0
  %2877 = vmatpush2.bf16.msra.mxu0 0
  %2878 = vmatprep.subr.bf16.mxu0 0
  %2879 = vmatpush2.bf16.msra.mxu0 0
  %2880 = vmatprep.subr.bf16.mxu0 0
  %2881 = vmatpush2.bf16.msra.mxu0 0
  %2882 = vmatprep.subr.bf16.mxu0 0
  %2883 = vmatpush2.bf16.msra.mxu0 0
  %2884 = vmatprep.subr.bf16.mxu0 0
  %2885 = vmatpush2.bf16.msra.mxu0 0
  %2886 = vmatprep.mubr.bf16.mxu0 0
  %2887 = vmatmul.mubr.bf16.gmra.mxu0 %v2852
  %v2888 = vpop.f32.mrf.mxu0
  %v2889 = vadd.f32 0.0, %v2888
  %v2890 = vpop.f32.mrf.mxu0
  %v2891 = vpop.f32.mrf.mxu0
  %v2892 = vadd.f32 0.0, %v2891
  %v2893 = vpop.f32.mrf.mxu0
  %2894 = vdwg.mxu0
  %v2895 = vadd.f32 %v2831, %v2889
  %v2896 = vadd.f32 %v2832, %v2892
  %v2897 = vadd.f32 %v2067, %v2895
  %v2898 = vadd.f32 %v2068, %v2896
  %v2899 = vmul.f32 %v2897, %v2072
  %v2900 = vmul.f32 %v2898, %v2077
  %v2901 = vsel %vm546, %v2899, 0.0
  %v2902 = vsel %vm546, %v2900, 0.0
  %v2903 = vadd.f32 %v2901, %v2902
  %v2904 = vrot.slane %v2903, 4
  %v2905 = vadd.f32 %v2903, %v2904
  %v2906 = vrot.slane %v2905, 2
  %v2907 = vadd.f32 %v2905, %v2906
  %v2908 = vrot.slane %v2907, 1
  %v2909 = vadd.f32 %v2907, %v2908
  %v2910 = vmul.f32 %v2909, 0.125
  %v2911 = vmul.f32 %v2899, %v2897
  %v2912 = vmul.f32 %v2900, %v2898
  %v2913 = vsel %vm546, %v2911, 0.0
  %v2914 = vsel %vm546, %v2912, 0.0
  %v2915 = vadd.f32 %v2913, %v2914
  %v2916 = vrot.slane %v2915, 4
  %v2917 = vadd.f32 %v2915, %v2916
  %v2918 = vrot.slane %v2917, 2
  %v2919 = vadd.f32 %v2917, %v2918
  %v2920 = vrot.slane %v2919, 1
  %v2921 = vadd.f32 %v2919, %v2920
  %v2922 = vmul.f32 %v2921, 0.125
  %v2923 = vmul.f32 %v2910, %v2910
  %v2924 = vsub.f32 %v2922, %v2923
  %v2925 = vsub.f32 %v2897, %v2910
  %v2926 = vsub.f32 %v2898, %v2910
  %v2927 = vadd.f32 %v2924, 1e-05
  %v2928 = vrsqrt.pop %v2927
  %v2929 = vmul.f32 %v2925, %v2928
  %v2930 = vmul.f32 %v2926, %v2928
  %v2931 = vld [vmem:[%s51] sm:$0x1]
  %v2933 = vlaneseq
  %v2934 = vshrl.u32 %v2933, 7
  %v2935 = vsub.s32 0, %v2934
  %v2936 = vrot.slane %v2931, %v2935
  %v2938 = vmul.f32 %v2929, %v2936
  %v2939 = vmul.f32 %v2930, %v2936
  %v2940 = vld [vmem:[%s53] sm:$0x1]
  %v2942 = vlaneseq
  %v2943 = vshrl.u32 %v2942, 7
  %v2944 = vsub.s32 0, %v2943
  %v2945 = vrot.slane %v2940, %v2944
  %v2947 = vadd.f32 %v2938, %v2945
  %v2948 = vadd.f32 %v2939, %v2945
  %v2949 = vxor.u32 %v2947, 2147483648
  %v2950 = vxor.u32 %v2948, 2147483648
  %v2951 = vmul.f32 %v2949, 1.442695
  %v2952 = vpow.pop %v2951
  %v2953 = vmul.f32 %v2950, 1.442695
  %v2954 = vpow.pop %v2953
  %v2955 = vadd.f32 %v2952, 1.0
  %v2956 = vadd.f32 %v2954, 1.0
  %v2957 = vrcp.pop %v2955
  %v2958 = vmul.f32 1.0, %v2957
  %v2959 = vrcp.pop %v2956
  %v2960 = vmul.f32 1.0, %v2959
  %v2961 = vmul.f32 %v2947, %v2958
  %v2962 = vmul.f32 %v2948, %v2960
  %v2963 = vmul.f32 %v2961, %v2072
  %v2964 = vmul.f32 %v2962, %v2077
  %2965 = vst.msk [vmem:[#allocation3] sm:$0xff] %vm546, %v2963
  %2966 = vst.msk [vmem:[#allocation3 + $0x8] sm:$0xff] %vm546, %v2964
  %v2967 = vld [vmem:[#allocation3] ss:$2 sm:$0xff]
  %s2968 = scalar_lea.vmem [#allocation3], 1
  %v2969 = vld [vmem:[%s2968] ss:$2 sm:$0xff]
  %v2970 = vmax.f32 %v2967, %v2969
  %v2971 = vpack.c.bf16 %v2970, %v2970
  %v2972 = vld [vmem:[%s55] sm:$0xf]
  %v2973 = vld [vmem:[%s55 + $0x4] sm:$0xf]
  %v2974 = vld [vmem:[%s55 + $0x8] sm:$0xf]
  %v2975 = vld [vmem:[%s55 + $0xc] sm:$0xf]
  %v2976 = vld [vmem:[%s57] sm:$0x1]
  %v2978 = vlaneseq
  %v2979 = vshrl.u32 %v2978, 7
  %v2980 = vsub.s32 0, %v2979
  %v2981 = vrot.slane %v2976, %v2980
  %v2987 = vunpack.c.l.b16 %v2972
  %v2988 = vunpack.c.l.b16 %v2973
  %v2989 = vunpack.c.l.b16 %v2974
  %v2990 = vunpack.c.l.b16 %v2975
  %v2991 = vpack.c.b16 %v2988, %v2987
  %v2992 = vpack.c.b16 %v2990, %v2989
  %v2996 = vsel %vm546, %v2971, 0
  %2998 = vmatprep.subr.bf16.mxu0 0
  %2999 = vmatpush1.bf16.msra.mxu0 0
  %3000 = vmatprep.subr.bf16.mxu0 0
  %3001 = vmatpush1.bf16.msra.mxu0 0
  %3002 = vmatprep.subr.bf16.mxu0 0
  %3003 = vmatpush1.bf16.msra.mxu0 0
  %3004 = vmatprep.subr.bf16.mxu0 0
  %3005 = vmatpush1.bf16.msra.mxu0 0
  %3006 = vmatprep.subr.bf16.mxu0 0
  %3007 = vmatpush1.bf16.msra.mxu0 0
  %3008 = vmatprep.subr.bf16.mxu0 0
  %3009 = vmatpush1.bf16.msra.mxu0 0
  %3010 = vmatprep.subr.bf16.mxu0 0
  %3011 = vmatpush1.bf16.msra.mxu0 %v2992
  %3012 = vmatprep.subr.bf16.mxu0 0
  %3013 = vmatpush1.bf16.msra.mxu0 %v2991
  %3014 = vmatprep.subr.bf16.mxu0 0
  %3015 = vmatpush2.bf16.msra.mxu0 0
  %3016 = vmatprep.subr.bf16.mxu0 0
  %3017 = vmatpush2.bf16.msra.mxu0 0
  %3018 = vmatprep.subr.bf16.mxu0 0
  %3019 = vmatpush2.bf16.msra.mxu0 0
  %3020 = vmatprep.subr.bf16.mxu0 0
  %3021 = vmatpush2.bf16.msra.mxu0 0
  %3022 = vmatprep.subr.bf16.mxu0 0
  %3023 = vmatpush2.bf16.msra.mxu0 0
  %3024 = vmatprep.subr.bf16.mxu0 0
  %3025 = vmatpush2.bf16.msra.mxu0 0
  %3026 = vmatprep.subr.bf16.mxu0 0
  %3027 = vmatpush2.bf16.msra.mxu0 0
  %3028 = vmatprep.subr.bf16.mxu0 0
  %3029 = vmatpush2.bf16.msra.mxu0 0
  %3030 = vmatprep.mubr.bf16.mxu0 0
  %3031 = vmatmul.mubr.bf16.gmra.mxu0 %v2996
  %v3032 = vpop.f32.mrf.mxu0
  %v3033 = vadd.f32 %v2981, %v3032
  %v3034 = vpop.f32.mrf.mxu0
  %v3035 = vpop.f32.mrf.mxu0
  %v3036 = vpop.f32.mrf.mxu0
  %3037 = vdwg.mxu0
  %3038 = vst [vmem:[#allocation4] sm:$0xff] %v3033
  %v3039 = vld [vmem:[%s59] sm:$0xf]
  %v3040 = vld [vmem:[%s59 + $0x4] sm:$0xf]
  %v3041 = vld [vmem:[%s59 + $0x8] sm:$0xf]
  %v3042 = vld [vmem:[%s59 + $0xc] sm:$0xf]
  %v3043 = vlaneseq
  %v3044 = vand.u32 %v3043, 127
  %vm3045 = vcmp.ge.s32.totalorder %v3044, 64
  %vm3046 = vcmp.lt.s32.totalorder %v3044, 96
  %vm3047 = vmand %vm3045, %vm3046
  %v3048 = vld [vmem:[#allocation4] ss:$4 sm:$0x3]
  %v3053 = vunpack.c.l.b16 %v3039
  %v3054 = vunpack.c.l.b16 %v3040
  %v3055 = vunpack.c.l.b16 %v3041
  %v3056 = vunpack.c.l.b16 %v3042
  %v3057 = vpack.c.b16 %v3054, %v3053
  %v3058 = vpack.c.b16 %v3056, %v3055
  %v3062 = vsel %vm546, 0, 0
  %3064 = vmatprep.subr.bf16.mxu0 0
  %3065 = vmatpush1.bf16.msra.mxu0 0
  %3066 = vmatprep.subr.bf16.mxu0 0
  %3067 = vmatpush1.bf16.msra.mxu0 0
  %3068 = vmatprep.subr.bf16.mxu0 0
  %3069 = vmatpush1.bf16.msra.mxu0 0
  %3070 = vmatprep.subr.bf16.mxu0 0
  %3071 = vmatpush1.bf16.msra.mxu0 0
  %3072 = vmatprep.subr.bf16.mxu0 0
  %3073 = vmatpush1.bf16.msra.mxu0 0
  %3074 = vmatprep.subr.bf16.mxu0 0
  %3075 = vmatpush1.bf16.msra.mxu0 0
  %3076 = vmatprep.subr.bf16.mxu0 0
  %3077 = vmatpush1.bf16.msra.mxu0 %v3058
  %3078 = vmatprep.subr.bf16.mxu0 0
  %3079 = vmatpush1.bf16.msra.mxu0 %v3057
  %3080 = vmatprep.subr.bf16.mxu0 0
  %3081 = vmatpush2.bf16.msra.mxu0 0
  %3082 = vmatprep.subr.bf16.mxu0 0
  %3083 = vmatpush2.bf16.msra.mxu0 0
  %3084 = vmatprep.subr.bf16.mxu0 0
  %3085 = vmatpush2.bf16.msra.mxu0 0
  %3086 = vmatprep.subr.bf16.mxu0 0
  %3087 = vmatpush2.bf16.msra.mxu0 0
  %3088 = vmatprep.subr.bf16.mxu0 0
  %3089 = vmatpush2.bf16.msra.mxu0 0
  %3090 = vmatprep.subr.bf16.mxu0 0
  %3091 = vmatpush2.bf16.msra.mxu0 0
  %3092 = vmatprep.subr.bf16.mxu0 0
  %3093 = vmatpush2.bf16.msra.mxu0 0
  %3094 = vmatprep.subr.bf16.mxu0 0
  %3095 = vmatpush2.bf16.msra.mxu0 0
  %3096 = vmatprep.mubr.bf16.mxu0 0
  %3097 = vmatmul.mubr.bf16.gmra.mxu0 %v3062
  %v3098 = vpop.f32.mrf.mxu0
  %v3099 = vadd.f32 0.0, %v3098
  %v3100 = vpop.f32.mrf.mxu0
  %v3101 = vpop.f32.mrf.mxu0
  %v3102 = vpop.f32.mrf.mxu0
  %3103 = vdwg.mxu0
  %v3104 = vadd.f32 %v3048, %v3099
  %v3105 = vmul.f32 %v3104, 2.0
  %v3106 = vsel %vm3047, %v3105, %v3104
  %v3107 = vxor.u32 %v3106, 2147483648
  %v3108 = vmul.f32 %v3107, 1.442695
  %v3109 = vpow.pop %v3108
  %v3110 = vadd.f32 %v3109, 1.0
  %v3111 = vrcp.pop %v3110
  %v3112 = vmul.f32 1.0, %v3111
  %v3113 = vmul.f32 %v3112, 2.0
  %v3114 = vsub.f32 %v3113, 1.0
  %v3115 = vsel %vm3047, %v3114, %v3112
  %v3116 = vmul.f32 %v3115, 0.0
  %3118 = vrot.lane.b32.xlu0 %v3115, 64
  %v3119 = vpop.permute.xlu0 %3118
  %v3121 = vmul.f32 %v3115, %v3119
  %3123 = vrot.lane.b32.xlu0 %v3121, 32
  %v3124 = vpop.permute.xlu0 %3123
  %v3126 = vadd.f32 %v3116, %v3124
  %v3127 = vtanh.pop %v3126
  %3129 = vrot.lane.b32.xlu0 %v3127, 64
  %v3130 = vpop.permute.xlu0 %3129
  %v3132 = vmul.f32 %v3115, %v3130
  %v3133 = vadd.f32 %v3132, 0.0
  %s3134 = scalar_lea.vmem [#allocation4], 1
  %v3135 = vld [vmem:[%s3134] ss:$4 sm:$0x3]
  %v3136 = vpack.c.bf16 %v3132, %v3132
  %3138 = vrot.lane.b32.xlu0 %v3136, 32
  %v3139 = vpop.permute.xlu0 %3138
  %v3141 = vsel %vm546, %v3139, 0
  %3143 = vmatprep.subr.bf16.mxu0 0
  %3144 = vmatpush1.bf16.msra.mxu0 0
  %3145 = vmatprep.subr.bf16.mxu0 0
  %3146 = vmatpush1.bf16.msra.mxu0 0
  %3147 = vmatprep.subr.bf16.mxu0 0
  %3148 = vmatpush1.bf16.msra.mxu0 0
  %3149 = vmatprep.subr.bf16.mxu0 0
  %3150 = vmatpush1.bf16.msra.mxu0 0
  %3151 = vmatprep.subr.bf16.mxu0 0
  %3152 = vmatpush1.bf16.msra.mxu0 0
  %3153 = vmatprep.subr.bf16.mxu0 0
  %3154 = vmatpush1.bf16.msra.mxu0 0
  %3155 = vmatprep.subr.bf16.mxu0 0
  %3156 = vmatpush1.bf16.msra.mxu0 %v3058
  %3157 = vmatprep.subr.bf16.mxu0 0
  %3158 = vmatpush1.bf16.msra.mxu0 %v3057
  %3159 = vmatprep.subr.bf16.mxu0 0
  %3160 = vmatpush2.bf16.msra.mxu0 0
  %3161 = vmatprep.subr.bf16.mxu0 0
  %3162 = vmatpush2.bf16.msra.mxu0 0
  %3163 = vmatprep.subr.bf16.mxu0 0
  %3164 = vmatpush2.bf16.msra.mxu0 0
  %3165 = vmatprep.subr.bf16.mxu0 0
  %3166 = vmatpush2.bf16.msra.mxu0 0
  %3167 = vmatprep.subr.bf16.mxu0 0
  %3168 = vmatpush2.bf16.msra.mxu0 0
  %3169 = vmatprep.subr.bf16.mxu0 0
  %3170 = vmatpush2.bf16.msra.mxu0 0
  %3171 = vmatprep.subr.bf16.mxu0 0
  %3172 = vmatpush2.bf16.msra.mxu0 0
  %3173 = vmatprep.subr.bf16.mxu0 0
  %3174 = vmatpush2.bf16.msra.mxu0 0
  %3175 = vmatprep.mubr.bf16.mxu0 0
  %3176 = vmatmul.mubr.bf16.gmra.mxu0 %v3141
  %v3177 = vpop.f32.mrf.mxu0
  %v3178 = vadd.f32 0.0, %v3177
  %v3179 = vpop.f32.mrf.mxu0
  %v3180 = vpop.f32.mrf.mxu0
  %v3181 = vpop.f32.mrf.mxu0
  %3182 = vdwg.mxu0
  %v3183 = vadd.f32 %v3135, %v3178
  %v3184 = vmul.f32 %v3183, 2.0
  %v3185 = vsel %vm3047, %v3184, %v3183
  %v3186 = vxor.u32 %v3185, 2147483648
  %v3187 = vmul.f32 %v3186, 1.442695
  %v3188 = vpow.pop %v3187
  %v3189 = vadd.f32 %v3188, 1.0
  %v3190 = vrcp.pop %v3189
  %v3191 = vmul.f32 1.0, %v3190
  %v3192 = vmul.f32 %v3191, 2.0
  %v3193 = vsub.f32 %v3192, 1.0
  %v3194 = vsel %vm3047, %v3193, %v3191
  %v3195 = vmul.f32 %v3194, %v3126
  %3197 = vrot.lane.b32.xlu0 %v3194, 64
  %v3198 = vpop.permute.xlu0 %3197
  %v3200 = vmul.f32 %v3194, %v3198
  %3202 = vrot.lane.b32.xlu0 %v3200, 32
  %v3203 = vpop.permute.xlu0 %3202
  %v3205 = vadd.f32 %v3195, %v3203
  %v3206 = vtanh.pop %v3205
  %3208 = vrot.lane.b32.xlu0 %v3206, 64
  %v3209 = vpop.permute.xlu0 %3208
  %v3211 = vmul.f32 %v3194, %v3209
  %v3212 = vadd.f32 %v3133, %v3211
  %s3213 = scalar_lea.vmem [#allocation4], 2
  %v3214 = vld [vmem:[%s3213] ss:$4 sm:$0x3]
  %v3215 = vpack.c.bf16 %v3211, %v3211
  %3217 = vrot.lane.b32.xlu0 %v3215, 32
  %v3218 = vpop.permute.xlu0 %3217
  %v3220 = vsel %vm546, %v3218, 0
  %3222 = vmatprep.subr.bf16.mxu0 0
  %3223 = vmatpush1.bf16.msra.mxu0 0
  %3224 = vmatprep.subr.bf16.mxu0 0
  %3225 = vmatpush1.bf16.msra.mxu0 0
  %3226 = vmatprep.subr.bf16.mxu0 0
  %3227 = vmatpush1.bf16.msra.mxu0 0
  %3228 = vmatprep.subr.bf16.mxu0 0
  %3229 = vmatpush1.bf16.msra.mxu0 0
  %3230 = vmatprep.subr.bf16.mxu0 0
  %3231 = vmatpush1.bf16.msra.mxu0 0
  %3232 = vmatprep.subr.bf16.mxu0 0
  %3233 = vmatpush1.bf16.msra.mxu0 0
  %3234 = vmatprep.subr.bf16.mxu0 0
  %3235 = vmatpush1.bf16.msra.mxu0 %v3058
  %3236 = vmatprep.subr.bf16.mxu0 0
  %3237 = vmatpush1.bf16.msra.mxu0 %v3057
  %3238 = vmatprep.subr.bf16.mxu0 0
  %3239 = vmatpush2.bf16.msra.mxu0 0
  %3240 = vmatprep.subr.bf16.mxu0 0
  %3241 = vmatpush2.bf16.msra.mxu0 0
  %3242 = vmatprep.subr.bf16.mxu0 0
  %3243 = vmatpush2.bf16.msra.mxu0 0
  %3244 = vmatprep.subr.bf16.mxu0 0
  %3245 = vmatpush2.bf16.msra.mxu0 0
  %3246 = vmatprep.subr.bf16.mxu0 0
  %3247 = vmatpush2.bf16.msra.mxu0 0
  %3248 = vmatprep.subr.bf16.mxu0 0
  %3249 = vmatpush2.bf16.msra.mxu0 0
  %3250 = vmatprep.subr.bf16.mxu0 0
  %3251 = vmatpush2.bf16.msra.mxu0 0
  %3252 = vmatprep.subr.bf16.mxu0 0
  %3253 = vmatpush2.bf16.msra.mxu0 0
  %3254 = vmatprep.mubr.bf16.mxu0 0
  %3255 = vmatmul.mubr.bf16.gmra.mxu0 %v3220
  %v3256 = vpop.f32.mrf.mxu0
  %v3257 = vadd.f32 0.0, %v3256
  %v3258 = vpop.f32.mrf.mxu0
  %v3259 = vpop.f32.mrf.mxu0
  %v3260 = vpop.f32.mrf.mxu0
  %3261 = vdwg.mxu0
  %v3262 = vadd.f32 %v3214, %v3257
  %v3263 = vmul.f32 %v3262, 2.0
  %v3264 = vsel %vm3047, %v3263, %v3262
  %v3265 = vxor.u32 %v3264, 2147483648
  %v3266 = vmul.f32 %v3265, 1.442695
  %v3267 = vpow.pop %v3266
  %v3268 = vadd.f32 %v3267, 1.0
  %v3269 = vrcp.pop %v3268
  %v3270 = vmul.f32 1.0, %v3269
  %v3271 = vmul.f32 %v3270, 2.0
  %v3272 = vsub.f32 %v3271, 1.0
  %v3273 = vsel %vm3047, %v3272, %v3270
  %v3274 = vmul.f32 %v3273, %v3205
  %3276 = vrot.lane.b32.xlu0 %v3273, 64
  %v3277 = vpop.permute.xlu0 %3276
  %v3279 = vmul.f32 %v3273, %v3277
  %3281 = vrot.lane.b32.xlu0 %v3279, 32
  %v3282 = vpop.permute.xlu0 %3281
  %v3284 = vadd.f32 %v3274, %v3282
  %v3285 = vtanh.pop %v3284
  %3287 = vrot.lane.b32.xlu0 %v3285, 64
  %v3288 = vpop.permute.xlu0 %3287
  %v3290 = vmul.f32 %v3273, %v3288
  %v3291 = vadd.f32 %v3212, %v3290
  %s3292 = scalar_lea.vmem [#allocation4], 3
  %v3293 = vld [vmem:[%s3292] ss:$4 sm:$0x3]
  %v3294 = vpack.c.bf16 %v3290, %v3290
  %3296 = vrot.lane.b32.xlu0 %v3294, 32
  %v3297 = vpop.permute.xlu0 %3296
  %v3299 = vsel %vm546, %v3297, 0
  %3301 = vmatprep.subr.bf16.mxu0 0
  %3302 = vmatpush1.bf16.msra.mxu0 0
  %3303 = vmatprep.subr.bf16.mxu0 0
  %3304 = vmatpush1.bf16.msra.mxu0 0
  %3305 = vmatprep.subr.bf16.mxu0 0
  %3306 = vmatpush1.bf16.msra.mxu0 0
  %3307 = vmatprep.subr.bf16.mxu0 0
  %3308 = vmatpush1.bf16.msra.mxu0 0
  %3309 = vmatprep.subr.bf16.mxu0 0
  %3310 = vmatpush1.bf16.msra.mxu0 0
  %3311 = vmatprep.subr.bf16.mxu0 0
  %3312 = vmatpush1.bf16.msra.mxu0 0
  %3313 = vmatprep.subr.bf16.mxu0 0
  %3314 = vmatpush1.bf16.msra.mxu0 %v3058
  %3315 = vmatprep.subr.bf16.mxu0 0
  %3316 = vmatpush1.bf16.msra.mxu0 %v3057
  %3317 = vmatprep.subr.bf16.mxu0 0
  %3318 = vmatpush2.bf16.msra.mxu0 0
  %3319 = vmatprep.subr.bf16.mxu0 0
  %3320 = vmatpush2.bf16.msra.mxu0 0
  %3321 = vmatprep.subr.bf16.mxu0 0
  %3322 = vmatpush2.bf16.msra.mxu0 0
  %3323 = vmatprep.subr.bf16.mxu0 0
  %3324 = vmatpush2.bf16.msra.mxu0 0
  %3325 = vmatprep.subr.bf16.mxu0 0
  %3326 = vmatpush2.bf16.msra.mxu0 0
  %3327 = vmatprep.subr.bf16.mxu0 0
  %3328 = vmatpush2.bf16.msra.mxu0 0
  %3329 = vmatprep.subr.bf16.mxu0 0
  %3330 = vmatpush2.bf16.msra.mxu0 0
  %3331 = vmatprep.subr.bf16.mxu0 0
  %3332 = vmatpush2.bf16.msra.mxu0 0
  %3333 = vmatprep.mubr.bf16.mxu0 0
  %3334 = vmatmul.mubr.bf16.gmra.mxu0 %v3299
  %v3335 = vpop.f32.mrf.mxu0
  %v3336 = vadd.f32 0.0, %v3335
  %v3337 = vpop.f32.mrf.mxu0
  %v3338 = vpop.f32.mrf.mxu0
  %v3339 = vpop.f32.mrf.mxu0
  %3340 = vdwg.mxu0
  %v3341 = vadd.f32 %v3293, %v3336
  %v3342 = vmul.f32 %v3341, 2.0
  %v3343 = vsel %vm3047, %v3342, %v3341
  %v3344 = vxor.u32 %v3343, 2147483648
  %v3345 = vmul.f32 %v3344, 1.442695
  %v3346 = vpow.pop %v3345
  %v3347 = vadd.f32 %v3346, 1.0
  %v3348 = vrcp.pop %v3347
  %v3349 = vmul.f32 1.0, %v3348
  %v3350 = vmul.f32 %v3349, 2.0
  %v3351 = vsub.f32 %v3350, 1.0
  %v3352 = vsel %vm3047, %v3351, %v3349
  %v3353 = vmul.f32 %v3352, %v3284
  %3355 = vrot.lane.b32.xlu0 %v3352, 64
  %v3356 = vpop.permute.xlu0 %3355
  %v3358 = vmul.f32 %v3352, %v3356
  %3360 = vrot.lane.b32.xlu0 %v3358, 32
  %v3361 = vpop.permute.xlu0 %3360
  %v3363 = vadd.f32 %v3353, %v3361
  %v3364 = vtanh.pop %v3363
  %3366 = vrot.lane.b32.xlu0 %v3364, 64
  %v3367 = vpop.permute.xlu0 %3366
  %v3369 = vmul.f32 %v3352, %v3367
  %v3370 = vadd.f32 %v3291, %v3369
  %v3371 = vmul.f32 %v3370, 0.25
  %v3372 = vld [vmem:[%s61] sm:$0x1]
  %v3374 = vlaneseq
  %v3375 = vshrl.u32 %v3374, 7
  %v3376 = vsub.s32 0, %v3375
  %v3377 = vrot.slane %v3372, %v3376
  %3378 = vrot.lane.b32.xlu0 %v3377, 96
  %v3379 = vpop.permute.xlu0 %3378
  %v3381 = vmul.f32 %v3371, %v3379
  %3383 = vrot.lane.b32.xlu0 %v3381, 32
  %v3384 = vpop.permute.xlu0 %3383
  %vm3386 = vcmask 254976
  %v3387 = vsel %vm3386, %v3384, 0.0
  %3388 = vadd.xlane.f32.xlu0 %v3387
  %v3389 = vpop.xlane.xlu0 %3388
  %v3390 = vld [vmem:[#allocation5] sm:$0x1]
  %v3392 = vlaneseq
  %v3393 = vshrl.u32 %v3392, 7
  %v3394 = vsub.s32 0, %v3393
  %v3395 = vrot.slane %v3390, %v3394
  %v3397 = vadd.f32 %v3389, %v3395
  %v3398 = vxor.u32 %v3397, 2147483648
  %v3399 = vmul.f32 %v3398, 1.442695
  %v3400 = vpow.pop %v3399
  %v3401 = vadd.f32 %v3400, 1.0
  %v3402 = vrcp.pop %v3401
  %v3403 = vmul.f32 1.0, %v3402
  %vm3404 = vcmask 1024
  %3405 = vst.msk [vmem:[%s65] sm:$0x3] %vm3404, %v3403
  // Predicated region
  $region130: #{rnn_model_forward.1} parent=0 // pred_check
    _
  $region131: #{rnn_model_forward.1} parent=0 // pred_check_branch
    %3407 = sbr.rel (0) target = $region133
  $region132: #{rnn_model_forward.1} parent=0 // pred_region
    _
  $region133: #{rnn_model_forward.1} parent=0 // pred_fallthru
    _
  // Predicated region
  $region134: #{rnn_model_forward.1} parent=0 // pred_check
    _
  $region135: #{rnn_model_forward.1} parent=0 // pred_check_branch
    %3409 = sbr.rel (0) target = $region137
  $region136: #{rnn_model_forward.1} parent=0 // pred_region
    _
  $region137: #{rnn_model_forward.1} parent=0 // pred_fallthru
    _

</llo_original>
